<compile_context>
chip_gen: v5e
topology: v5e:2x2
jax: 0.10.0
libtpu: 0.0.40
codegen_flags: <defaults>
</compile_context>

<pallas_src>
import jax
import jax.numpy as jnp
from jax.experimental import pallas as pl
from jax.experimental.pallas import tpu as pltpu


# --------------------------------------------------------------------------------
# Kernel 1: GRU over time (torch.nn.GRU, batch_first, h0 = 0), row-0-only
# recurrence, fused + 128-lane-padded gates, hoisted input projections, and the
# reference's buggy output gather folded in.  pack_padded/pad_packed are
# emulated by the (t < lengths[0]) mask on the selector.
# --------------------------------------------------------------------------------
def gru_kernel(x_ref, len_ref, wih_ref, whh_ref, bih_ref, bhh_ref, out_ref):
    T = x_ref.shape[0]
    GP = whh_ref.shape[0]            # per-gate 128-lane padded segment width
    B, HID = out_ref.shape

    # Hoisted input-side projections for row 0: one (T,E)@(E,3*GP) matmul.
    gi_all = (
        jnp.dot(x_ref[...], wih_ref[...], preferred_element_type=jnp.float32)
        + bih_ref[...]
    )                                                   # (T, 3*GP), gates r|z|n
    bhh = bhh_ref[...]                                  # (1, 3*GP) hoisted broadcast
    lens = len_ref[...]                                 # (B, 1) int32
    len0 = lens[0:1, :]                                 # (1, 1)

    h = jnp.zeros((1, GP), dtype=jnp.float32)           # padded lanes stay exactly 0
    acc = jnp.zeros((B, GP), dtype=jnp.float32)

    for t in range(T):                                  # static unroll (T is small)
        gi = gi_all[t:t + 1, :]                         # (1, 3*GP)
        gh = jnp.dot(h, whh_ref[...], preferred_element_type=jnp.float32) + bhh
        r = jax.nn.sigmoid(gi[:, 0:GP] + gh[:, 0:GP])           # vreg-aligned slices
        z = jax.nn.sigmoid(gi[:, GP:2 * GP] + gh[:, GP:2 * GP])
        n = jnp.tanh(gi[:, 2 * GP:3 * GP] + r * gh[:, 2 * GP:3 * GP])
        h = (1.0 - z) * n + z * h
        # Reference's buggy torch.index_select(unpacked, 1, lengths-1)[0]:
        #   out[j] = hidden of batch row 0 at t == lengths[j]-1,
        #   zero when that t lies outside batch-0's packed region (t >= lengths[0]).
        sel = jnp.logical_and(lens - 1 == t, t < len0).astype(jnp.float32)  # (B, 1)
        acc = acc + sel * h
    out_ref[...] = acc[:, 0:HID]


def run_gru(x0, len_col, wih_p, whh_p, bih_p, bhh_p, B, HID):
    # TODO(synk): at production T/HID add a time/batch grid + BlockSpecs and set
    # pltpu.CompilerParams(vmem_limit_bytes=...) so the resident inputs stay
    # inside v7x's 64 MiB VMEM; at these toy sizes everything fits comfortably.
    return pl.pallas_call(
        gru_kernel,
        out_shape=jax.ShapeDtypeStruct((B, HID), jnp.float32),
    )(x0, len_col, wih_p, whh_p, bih_p, bhh_p)


# --------------------------------------------------------------------------------
# Kernel 2: fc_transform_img + the full stacked attention loop, grid over batch.
#   img2_ref: (1, A, C)        reference's raw (B,A,C) view of the image
#   img3_ref: (1, HID, R*C)    raw view feeding the buggy (HID,A) layout matmul
#   u0_ref  : (1, HID, 1)      GRU output as a column
# --------------------------------------------------------------------------------
def attn_kernel(img2_ref, img3_ref, u0_ref, wt_ref, bt_ref, wtbig_ref, btbig_ref,
                wimgc_ref, wq_ref, bq_ref, wp_ref, bp_ref, out_ref,
                vtr_scr, timg_scr):
    L = wq_ref.shape[0]
    K = wq_ref.shape[2]

    # fc_transform_img fused in, in BOTH layouts the reference uses:
    #   vt  (A, HID): the ordinary linear output, feeds the image projections.
    #   vtr (HID, A): the reference's buggy raw reshape of vt, produced directly
    #                 by a second matmul against a block-diagonal copy of wt so
    #                 no in-kernel relayout / transpose is ever needed.
    vt = (
        jnp.dot(img2_ref[0], wt_ref[...], preferred_element_type=jnp.float32)
        + bt_ref[...]
    )                                                                # (A, HID)
    vtr_scr[...] = (
        jnp.dot(img3_ref[0], wtbig_ref[...], preferred_element_type=jnp.float32)
        + btbig_ref[...]
    )                                                                # (HID, A)

    # Hoisted, u-independent image projections for ALL layers at once
    # (lane-dense L*K = 128), kept in VMEM scratch.
    timg_scr[...] = jnp.dot(vt, wimgc_ref[...], preferred_element_type=jnp.float32)

    u = u0_ref[0]                                       # (HID, 1) column
    for i in range(L):                                  # static unroll over layers
        timg = timg_scr[:, i * K:(i + 1) * K]           # (A, K)
        # tu = u^T @ wq[i] + bq[i] as a VPU multiply + sublane reduce: u stays a
        # column and no M=1 MXU pass / transpose is needed.
        tu = jnp.sum(u * wq_ref[i], axis=0, keepdims=True) + bq_ref[i]   # (1, K)
        h_a = jnp.tanh(timg + tu)                        # (A, K)
        # fc_prob as VPU multiply + lane reduce (no N=1 MXU pass).
        logits = jnp.sum(h_a * wp_ref[i], axis=1, keepdims=True) + bp_ref[i]  # (A, 1)
        logits = logits - jnp.max(logits, axis=0, keepdims=True)
        e = jnp.exp(logits)
        p = e / jnp.sum(e, axis=0, keepdims=True)        # softmax over areas
        # bmm(reshape(out_img,(HID,A)), p) on the MXU; result stays a column.
        u = u + jnp.dot(vtr_scr[...], p, preferred_element_type=jnp.float32)  # (HID, 1)
    out_ref[0] = u


def run_attn(img2, img3, u0, wt, bt, wt_big, bt_big, wimg_c, wq, bq, wp_row, bp):
    B, A, C = img2.shape
    HID = wt.shape[1]
    RC = img3.shape[2]
    L, _, K = wq.shape
    # TODO(synk): on single-TC v5e/v6e this per-batch grid could be collapsed to
    # one invocation batching over B; kept as a 2-way "parallel" split for v7x.
    out = pl.pallas_call(
        attn_kernel,
        out_shape=jax.ShapeDtypeStruct((B, HID, 1), jnp.float32),
        grid=(B,),
        in_specs=[
            pl.BlockSpec((1, A, C), lambda b: (b, 0, 0)),
            pl.BlockSpec((1, HID, RC), lambda b: (b, 0, 0)),
            pl.BlockSpec((1, HID, 1), lambda b: (b, 0, 0)),
            pl.BlockSpec((C, HID), lambda b: (0, 0)),
            pl.BlockSpec((1, HID), lambda b: (0, 0)),
            pl.BlockSpec((RC, A), lambda b: (0, 0)),
            pl.BlockSpec((1, A), lambda b: (0, 0)),
            pl.BlockSpec((HID, L * K), lambda b: (0, 0)),
            pl.BlockSpec((L, HID, K), lambda b: (0, 0, 0)),
            pl.BlockSpec((L, 1, K), lambda b: (0, 0, 0)),
            pl.BlockSpec((L, 1, K), lambda b: (0, 0, 0)),
            pl.BlockSpec((L, 1, 1), lambda b: (0, 0, 0)),
        ],
        out_specs=pl.BlockSpec((1, HID, 1), lambda b: (b, 0, 0)),
        scratch_shapes=[
            pltpu.VMEM((HID, A), jnp.float32),      # vtr: buggy (HID,A) layout of vt
            pltpu.VMEM((A, L * K), jnp.float32),    # fused per-layer image projections
        ],
        compiler_params=pltpu.CompilerParams(dimension_semantics=("parallel",)),
    )(img2, img3, u0, wt, bt, wt_big, bt_big, wimg_c, wq, bq, wp_row, bp)
    return out[:, :, 0]


# --------------------------------------------------------------------------------
# One-time parameter preparation (hoisted out of the jitted forward).
# --------------------------------------------------------------------------------
def prepare_params(params, num_areas):
    wih, whh, bih, bhh = params["wih"], params["whh"], params["bih"], params["bhh"]
    E, H = wih.shape[1], wih.shape[2]
    GP = ((H + 127) // 128) * 128          # pad each fused gate to its own 128-lane segment

    wih_p = jnp.zeros((E, 3 * GP), jnp.float32)
    whh_p = jnp.zeros((GP, 3 * GP), jnp.float32)
    bih_p = jnp.zeros((1, 3 * GP), jnp.float32)
    bhh_p = jnp.zeros((1, 3 * GP), jnp.float32)
    for g in range(3):                     # gate order r | z | n
        wih_p = wih_p.at[:, g * GP:g * GP + H].set(wih[g])
        whh_p = whh_p.at[0:H, g * GP:g * GP + H].set(whh[g])
        bih_p = bih_p.at[:, g * GP:g * GP + H].set(bih[g])
        bhh_p = bhh_p.at[:, g * GP:g * GP + H].set(bhh[g])

    wt, bt = params["wt"], params["bt"]
    HID = wt.shape[1]
    # The buggy (A,HID)->(HID,A) raw reshape is realized as a block-diagonal
    # matmul; this needs A to be a multiple of HID (true here: 256 = 8*32).
    # TODO(synk): fall back to a glue-side reshape if num_areas % HID != 0.
    assert num_areas % HID == 0, (num_areas, HID)
    R = num_areas // HID
    wt_big = jnp.kron(jnp.eye(R, dtype=jnp.float32), wt)       # (R*C, A) block-diag
    bt_big = jnp.tile(bt, (1, R))                               # (1, A)

    wimg = params["wimg"]
    L, _, K = wimg.shape
    wimg_c = jnp.transpose(wimg, (1, 0, 2)).reshape(HID, L * K)  # fused image proj
    wp_row = jnp.transpose(params["wp"], (0, 2, 1))              # (L, 1, K)

    prep = dict(params)
    prep.update(
        wih_p=wih_p, whh_p=whh_p, bih_p=bih_p, bhh_p=bhh_p,
        wt_big=wt_big, bt_big=bt_big, wimg_c=wimg_c, wp_row=wp_row,
    )
    return prep


# --------------------------------------------------------------------------------
# Full forward (glue + kernels).
# --------------------------------------------------------------------------------
def stacked_attention_forward(tokens, img, prep):
    B, T = tokens.shape
    _, C, Hs, Ws = img.shape
    A = Hs * Ws
    HID = prep["wt"].shape[1]

    # ---- description path (GRU; row 0 only — the reference's buggy gather only
    #      ever reads batch row 0's hidden trajectory) ----
    lengths = jnp.sum((tokens != 0).astype(jnp.int32), axis=1)          # (B,)
    x0 = prep["embedding"][tokens[0]].astype(jnp.float32)               # (T, E) gather (glue)
    len_col = lengths[:, None].astype(jnp.int32)                        # (B, 1)
    out_desc = run_gru(x0, len_col, prep["wih_p"], prep["whh_p"],
                       prep["bih_p"], prep["bhh_p"], B, HID)            # (B, HID)

    # ---- image + stacked attention path (fc_transform_img fused into the kernel) ----
    img2 = jnp.reshape(img, (B, A, C))                 # reference's raw (B,A,C) view (bitcast)
    img3 = jnp.reshape(img, (B, HID, (A * C) // HID))  # raw view feeding the (HID,A) layout
    u0 = out_desc[:, :, None]                          # (B, HID, 1) column
    # TODO(synk): on v6e/v7x, cast the MXU operands (img views, wt/wimg/wq) to
    # bf16 with f32 accumulation for real problem sizes; kept f32 here to match
    # the f32 reference bit-closely.
    u_k = run_attn(img2, img3, u0, prep["wt"], prep["bt"], prep["wt_big"],
                   prep["bt_big"], prep["wimg_c"], prep["wq"], prep["bq"],
                   prep["wp_row"], prep["bp"])                           # (B, HID)
    return u_k


# --------------------------------------------------------------------------------
# Pure-JAX reference (same math, no Pallas) for a sanity check.
# --------------------------------------------------------------------------------
def reference_forward(tokens, img, params):
    B, T = tokens.shape
    _, C, Hs, Ws = img.shape
    A = Hs * Ws
    HID = params["wt"].shape[1]

    lengths = jnp.sum((tokens != 0).astype(jnp.int32), axis=1)
    emb = params["embedding"][tokens].astype(jnp.float32)
    x_tm = jnp.transpose(emb, (1, 0, 2))
    mask_tm = (jnp.arange(T)[:, None] < lengths[None, :]).astype(jnp.float32)[:, :, None]

    def step(h, xs):
        x_t, m_t = xs
        gi_r = x_t @ params["wih"][0] + params["bih"][0]
        gi_z = x_t @ params["wih"][1] + params["bih"][1]
        gi_n = x_t @ params["wih"][2] + params["bih"][2]
        gh_r = h @ params["whh"][0] + params["bhh"][0]
        gh_z = h @ params["whh"][1] + params["bhh"][1]
        gh_n = h @ params["whh"][2] + params["bhh"][2]
        r = jax.nn.sigmoid(gi_r + gh_r)
        z = jax.nn.sigmoid(gi_z + gh_z)
        n = jnp.tanh(gi_n + r * gh_n)
        h_new = (1.0 - z) * n + z * h
        return h_new, h_new * m_t

    h0 = jnp.zeros((B, HID), dtype=jnp.float32)
    _, out_gru = jax.lax.scan(step, h0, (x_tm, mask_tm))
    out_desc = out_gru[lengths - 1, 0, :]

    img_r = jnp.reshape(img, (B, A, C))
    vt = img_r @ params["wt"] + params["bt"]
    u = out_desc
    for i in range(params["wimg"].shape[0]):
        timg = vt @ params["wimg"][i]
        tu = u @ params["wq"][i] + params["bq"][i]
        h_a = jnp.tanh(timg + tu[:, None, :])
        p = h_a @ params["wp"][i] + params["bp"][i]
        p = jax.nn.softmax(p, axis=1)
        vt_r = jnp.reshape(vt, (B, HID, A))
        v_lam = jnp.matmul(vt_r, p)[:, :, 0]
        u = v_lam + u
    return u


# --------------------------------------------------------------------------------
if __name__ == "__main__":
    # sizes implied by the module: desc (B, T) token ids, img (B, C, H, W)
    B, T = 2, 8
    VOCAB, EMB = 20, 16
    HID = 32                 # hidden_size (GRU hidden == attention feature dim)
    K = 64                   # attention_kernel_size
    L = 2                    # num_att_layers
    C, IMG_H, IMG_W = 4, 16, 16

    key = jax.random.PRNGKey(0)
    ks = jax.random.split(key, 16)
    s = 0.1
    params = {
        "embedding": jax.random.normal(ks[0], (VOCAB, EMB), jnp.float32),
        "wih": jax.random.normal(ks[1], (3, EMB, HID), jnp.float32) * s,   # gate order r, z, n
        "whh": jax.random.normal(ks[2], (3, HID, HID), jnp.float32) * s,
        "bih": jax.random.normal(ks[3], (3, 1, HID), jnp.float32) * s,
        "bhh": jax.random.normal(ks[4], (3, 1, HID), jnp.float32) * s,
        "wt": jax.random.normal(ks[5], (C, HID), jnp.float32) * s,         # fc_transform_img
        "bt": jax.random.normal(ks[6], (1, HID), jnp.float32) * s,
        "wimg": jax.random.normal(ks[7], (L, HID, K), jnp.float32) * s,    # fc_transform_img_i (no bias)
        "wq": jax.random.normal(ks[8], (L, HID, K), jnp.float32) * s,      # fc_transform_query_i
        "bq": jax.random.normal(ks[9], (L, 1, K), jnp.float32) * s,
        "wp": jax.random.normal(ks[10], (L, K, 1), jnp.float32) * s,       # fc_prob_i
        "bp": jax.random.normal(ks[11], (L, 1, 1), jnp.float32) * s,
    }

    # description tokens: non-zero ids, right-padded with 0 (padding id)
    tokens = jax.random.randint(ks[12], (B, T), 1, VOCAB, dtype=jnp.int32)
    tokens = tokens.at[1, 5:].set(0)                     # lengths = [8, 5]
    img = jax.random.normal(ks[13], (B, C, IMG_H, IMG_W), jnp.float32)

    prep = prepare_params(params, num_areas=IMG_H * IMG_W)   # one-time, outside jit

    fwd = jax.jit(stacked_attention_forward)
    out = fwd(tokens, img, prep)
    out = jax.block_until_ready(out)

    ref = reference_forward(tokens, img, params)
    assert out.shape == (B, HID), out.shape
    if not bool(jnp.allclose(out, ref, atol=1e-2, rtol=1e-2)):
        raise SystemExit(
            f"mismatch vs reference, max abs diff = {float(jnp.max(jnp.abs(out - ref)))}"
        )

    print("KERNEL_OK")
</pallas_src>

<mosaic_0001>
module attributes {stable_mosaic.version = 11 : i64} {
  func.func @gru_kernel(%arg0: memref<8x16xf32, #tpu.memory_space<vmem>>, %arg1: memref<2x1xi32, #tpu.memory_space<vmem>>, %arg2: memref<16x384xf32, #tpu.memory_space<vmem>>, %arg3: memref<128x384xf32, #tpu.memory_space<vmem>>, %arg4: memref<1x384xf32, #tpu.memory_space<vmem>>, %arg5: memref<1x384xf32, #tpu.memory_space<vmem>>, %arg6: memref<2x32xf32, #tpu.memory_space<vmem>>) attributes {dimension_semantics = [], scalar_prefetch = 0 : i64, scratch_operands = 0 : i64, tpu.core_type = #tpu.core_type<tc>} {
    %c0 = arith.constant 0 : index
    %c0_0 = arith.constant 0 : index
    %0 = vector.load %arg0[%c0, %c0_0] : memref<8x16xf32, #tpu.memory_space<vmem>>, vector<8x16xf32>
    %c0_1 = arith.constant 0 : index
    %c0_2 = arith.constant 0 : index
    %1 = vector.load %arg2[%c0_1, %c0_2] : memref<16x384xf32, #tpu.memory_space<vmem>>, vector<16x384xf32>
    %cst = arith.constant dense<0.000000e+00> : vector<8x384xf32>
    %2 = tpu.matmul %0, %1, %cst {dimension_numbers = #tpu.dot_dimension_numbers<[1], [0], [0], [1], [0, 0, 1, 1], [], []>} : vector<8x16xf32>, vector<16x384xf32>, vector<8x384xf32> -> vector<8x384xf32>
    %c0_3 = arith.constant 0 : index
    %c0_4 = arith.constant 0 : index
    %3 = vector.load %arg4[%c0_3, %c0_4] : memref<1x384xf32, #tpu.memory_space<vmem>>, vector<1x384xf32>
    %4 = vector.broadcast %3 : vector<1x384xf32> to vector<8x384xf32>
    %5 = arith.addf %2, %4 : vector<8x384xf32>
    %c0_5 = arith.constant 0 : index
    %c0_6 = arith.constant 0 : index
    %6 = vector.load %arg5[%c0_5, %c0_6] : memref<1x384xf32, #tpu.memory_space<vmem>>, vector<1x384xf32>
    %c0_7 = arith.constant 0 : index
    %c0_8 = arith.constant 0 : index
    %7 = vector.load %arg1[%c0_7, %c0_8] : memref<2x1xi32, #tpu.memory_space<vmem>>, vector<2x1xi32>
    %8 = vector.extract_strided_slice %7 {offsets = [0, 0], sizes = [1, 1], strides = [1, 1]} : vector<2x1xi32> to vector<1x1xi32>
    %cst_9 = arith.constant 0.000000e+00 : f32
    %9 = vector.broadcast %cst_9 : f32 to vector<1x128xf32>
    %cst_10 = arith.constant 0.000000e+00 : f32
    %10 = vector.broadcast %cst_10 : f32 to vector<2x128xf32>
    %11 = vector.extract_strided_slice %5 {offsets = [0, 0], sizes = [1, 384], strides = [1, 1]} : vector<8x384xf32> to vector<1x384xf32>
    %c0_11 = arith.constant 0 : index
    %c0_12 = arith.constant 0 : index
    %12 = vector.load %arg3[%c0_11, %c0_12] : memref<128x384xf32, #tpu.memory_space<vmem>>, vector<128x384xf32>
    %cst_13 = arith.constant dense<0.000000e+00> : vector<1x384xf32>
    %13 = tpu.matmul %9, %12, %cst_13 {dimension_numbers = #tpu.dot_dimension_numbers<[1], [0], [0], [1], [0, 0, 1, 1], [], []>} : vector<1x128xf32>, vector<128x384xf32>, vector<1x384xf32> -> vector<1x384xf32>
    %14 = arith.addf %13, %6 : vector<1x384xf32>
    %15 = vector.extract_strided_slice %11 {offsets = [0, 0], sizes = [1, 128], strides = [1, 1]} : vector<1x384xf32> to vector<1x128xf32>
    %16 = vector.extract_strided_slice %14 {offsets = [0, 0], sizes = [1, 128], strides = [1, 1]} : vector<1x384xf32> to vector<1x128xf32>
    %17 = arith.addf %15, %16 : vector<1x128xf32>
    %18 = arith.negf %17 : vector<1x128xf32>
    %19 = math.exp %18 : vector<1x128xf32>
    %cst_14 = arith.constant 1.000000e+00 : f32
    %20 = vector.broadcast %cst_14 : f32 to vector<1x128xf32>
    %21 = arith.addf %20, %19 : vector<1x128xf32>
    %22 = arith.divf %20, %21 : vector<1x128xf32>
    %23 = vector.extract_strided_slice %11 {offsets = [0, 128], sizes = [1, 128], strides = [1, 1]} : vector<1x384xf32> to vector<1x128xf32>
    %24 = vector.extract_strided_slice %14 {offsets = [0, 128], sizes = [1, 128], strides = [1, 1]} : vector<1x384xf32> to vector<1x128xf32>
    %25 = arith.addf %23, %24 : vector<1x128xf32>
    %26 = arith.negf %25 : vector<1x128xf32>
    %27 = math.exp %26 : vector<1x128xf32>
    %cst_15 = arith.constant 1.000000e+00 : f32
    %28 = vector.broadcast %cst_15 : f32 to vector<1x128xf32>
    %29 = arith.addf %28, %27 : vector<1x128xf32>
    %30 = arith.divf %28, %29 : vector<1x128xf32>
    %31 = vector.extract_strided_slice %11 {offsets = [0, 256], sizes = [1, 128], strides = [1, 1]} : vector<1x384xf32> to vector<1x128xf32>
    %32 = vector.extract_strided_slice %14 {offsets = [0, 256], sizes = [1, 128], strides = [1, 1]} : vector<1x384xf32> to vector<1x128xf32>
    %33 = arith.mulf %22, %32 : vector<1x128xf32>
    %34 = arith.addf %31, %33 : vector<1x128xf32>
    %35 = math.tanh %34 : vector<1x128xf32>
    %cst_16 = arith.constant 1.000000e+00 : f32
    %36 = vector.broadcast %cst_16 : f32 to vector<1x128xf32>
    %37 = arith.subf %36, %30 : vector<1x128xf32>
    %38 = arith.mulf %37, %35 : vector<1x128xf32>
    %39 = arith.mulf %30, %9 : vector<1x128xf32>
    %40 = arith.addf %38, %39 : vector<1x128xf32>
    %c1_i32 = arith.constant 1 : i32
    %41 = vector.broadcast %c1_i32 : i32 to vector<2x1xi32>
    %42 = arith.subi %7, %41 : vector<2x1xi32>
    %c0_i32 = arith.constant 0 : i32
    %43 = vector.broadcast %c0_i32 : i32 to vector<2x1xi32>
    %44 = arith.cmpi eq, %42, %43 : vector<2x1xi32>
    %c0_i32_17 = arith.constant 0 : i32
    %45 = vector.broadcast %c0_i32_17 : i32 to vector<1x1xi32>
    %46 = arith.cmpi sgt, %8, %45 : vector<1x1xi32>
    %47 = vector.broadcast %46 : vector<1x1xi1> to vector<2x1xi1>
    %48 = arith.andi %44, %47 : vector<2x1xi1>
    %49 = arith.extui %48 : vector<2x1xi1> to vector<2x1xi32>
    %50 = arith.sitofp %49 : vector<2x1xi32> to vector<2x1xf32>
    %51 = vector.broadcast %50 : vector<2x1xf32> to vector<2x128xf32>
    %52 = vector.broadcast %40 : vector<1x128xf32> to vector<2x128xf32>
    %53 = arith.mulf %51, %52 : vector<2x128xf32>
    %54 = arith.addf %10, %53 : vector<2x128xf32>
    %55 = vector.extract_strided_slice %5 {offsets = [1, 0], sizes = [1, 384], strides = [1, 1]} : vector<8x384xf32> to vector<1x384xf32>
    %c0_18 = arith.constant 0 : index
    %c0_19 = arith.constant 0 : index
    %56 = vector.load %arg3[%c0_18, %c0_19] : memref<128x384xf32, #tpu.memory_space<vmem>>, vector<128x384xf32>
    %cst_20 = arith.constant dense<0.000000e+00> : vector<1x384xf32>
    %57 = tpu.matmul %40, %56, %cst_20 {dimension_numbers = #tpu.dot_dimension_numbers<[1], [0], [0], [1], [0, 0, 1, 1], [], []>} : vector<1x128xf32>, vector<128x384xf32>, vector<1x384xf32> -> vector<1x384xf32>
    %58 = arith.addf %57, %6 : vector<1x384xf32>
    %59 = vector.extract_strided_slice %55 {offsets = [0, 0], sizes = [1, 128], strides = [1, 1]} : vector<1x384xf32> to vector<1x128xf32>
    %60 = vector.extract_strided_slice %58 {offsets = [0, 0], sizes = [1, 128], strides = [1, 1]} : vector<1x384xf32> to vector<1x128xf32>
    %61 = arith.addf %59, %60 : vector<1x128xf32>
    %62 = arith.negf %61 : vector<1x128xf32>
    %63 = math.exp %62 : vector<1x128xf32>
    %cst_21 = arith.constant 1.000000e+00 : f32
    %64 = vector.broadcast %cst_21 : f32 to vector<1x128xf32>
    %65 = arith.addf %64, %63 : vector<1x128xf32>
    %66 = arith.divf %64, %65 : vector<1x128xf32>
    %67 = vector.extract_strided_slice %55 {offsets = [0, 128], sizes = [1, 128], strides = [1, 1]} : vector<1x384xf32> to vector<1x128xf32>
    %68 = vector.extract_strided_slice %58 {offsets = [0, 128], sizes = [1, 128], strides = [1, 1]} : vector<1x384xf32> to vector<1x128xf32>
    %69 = arith.addf %67, %68 : vector<1x128xf32>
    %70 = arith.negf %69 : vector<1x128xf32>
    %71 = math.exp %70 : vector<1x128xf32>
    %cst_22 = arith.constant 1.000000e+00 : f32
    %72 = vector.broadcast %cst_22 : f32 to vector<1x128xf32>
    %73 = arith.addf %72, %71 : vector<1x128xf32>
    %74 = arith.divf %72, %73 : vector<1x128xf32>
    %75 = vector.extract_strided_slice %55 {offsets = [0, 256], sizes = [1, 128], strides = [1, 1]} : vector<1x384xf32> to vector<1x128xf32>
    %76 = vector.extract_strided_slice %58 {offsets = [0, 256], sizes = [1, 128], strides = [1, 1]} : vector<1x384xf32> to vector<1x128xf32>
    %77 = arith.mulf %66, %76 : vector<1x128xf32>
    %78 = arith.addf %75, %77 : vector<1x128xf32>
    %79 = math.tanh %78 : vector<1x128xf32>
    %cst_23 = arith.constant 1.000000e+00 : f32
    %80 = vector.broadcast %cst_23 : f32 to vector<1x128xf32>
    %81 = arith.subf %80, %74 : vector<1x128xf32>
    %82 = arith.mulf %81, %79 : vector<1x128xf32>
    %83 = arith.mulf %74, %40 : vector<1x128xf32>
    %84 = arith.addf %82, %83 : vector<1x128xf32>
    %c1_i32_24 = arith.constant 1 : i32
    %85 = vector.broadcast %c1_i32_24 : i32 to vector<2x1xi32>
    %86 = arith.subi %7, %85 : vector<2x1xi32>
    %c1_i32_25 = arith.constant 1 : i32
    %87 = vector.broadcast %c1_i32_25 : i32 to vector<2x1xi32>
    %88 = arith.cmpi eq, %86, %87 : vector<2x1xi32>
    %c1_i32_26 = arith.constant 1 : i32
    %89 = vector.broadcast %c1_i32_26 : i32 to vector<1x1xi32>
    %90 = arith.cmpi sgt, %8, %89 : vector<1x1xi32>
    %91 = vector.broadcast %90 : vector<1x1xi1> to vector<2x1xi1>
    %92 = arith.andi %88, %91 : vector<2x1xi1>
    %93 = arith.extui %92 : vector<2x1xi1> to vector<2x1xi32>
    %94 = arith.sitofp %93 : vector<2x1xi32> to vector<2x1xf32>
    %95 = vector.broadcast %94 : vector<2x1xf32> to vector<2x128xf32>
    %96 = vector.broadcast %84 : vector<1x128xf32> to vector<2x128xf32>
    %97 = arith.mulf %95, %96 : vector<2x128xf32>
    %98 = arith.addf %54, %97 : vector<2x128xf32>
    %99 = vector.extract_strided_slice %5 {offsets = [2, 0], sizes = [1, 384], strides = [1, 1]} : vector<8x384xf32> to vector<1x384xf32>
    %c0_27 = arith.constant 0 : index
    %c0_28 = arith.constant 0 : index
    %100 = vector.load %arg3[%c0_27, %c0_28] : memref<128x384xf32, #tpu.memory_space<vmem>>, vector<128x384xf32>
    %cst_29 = arith.constant dense<0.000000e+00> : vector<1x384xf32>
    %101 = tpu.matmul %84, %100, %cst_29 {dimension_numbers = #tpu.dot_dimension_numbers<[1], [0], [0], [1], [0, 0, 1, 1], [], []>} : vector<1x128xf32>, vector<128x384xf32>, vector<1x384xf32> -> vector<1x384xf32>
    %102 = arith.addf %101, %6 : vector<1x384xf32>
    %103 = vector.extract_strided_slice %99 {offsets = [0, 0], sizes = [1, 128], strides = [1, 1]} : vector<1x384xf32> to vector<1x128xf32>
    %104 = vector.extract_strided_slice %102 {offsets = [0, 0], sizes = [1, 128], strides = [1, 1]} : vector<1x384xf32> to vector<1x128xf32>
    %105 = arith.addf %103, %104 : vector<1x128xf32>
    %106 = arith.negf %105 : vector<1x128xf32>
    %107 = math.exp %106 : vector<1x128xf32>
    %cst_30 = arith.constant 1.000000e+00 : f32
    %108 = vector.broadcast %cst_30 : f32 to vector<1x128xf32>
    %109 = arith.addf %108, %107 : vector<1x128xf32>
    %110 = arith.divf %108, %109 : vector<1x128xf32>
    %111 = vector.extract_strided_slice %99 {offsets = [0, 128], sizes = [1, 128], strides = [1, 1]} : vector<1x384xf32> to vector<1x128xf32>
    %112 = vector.extract_strided_slice %102 {offsets = [0, 128], sizes = [1, 128], strides = [1, 1]} : vector<1x384xf32> to vector<1x128xf32>
    %113 = arith.addf %111, %112 : vector<1x128xf32>
    %114 = arith.negf %113 : vector<1x128xf32>
    %115 = math.exp %114 : vector<1x128xf32>
    %cst_31 = arith.constant 1.000000e+00 : f32
    %116 = vector.broadcast %cst_31 : f32 to vector<1x128xf32>
    %117 = arith.addf %116, %115 : vector<1x128xf32>
    %118 = arith.divf %116, %117 : vector<1x128xf32>
    %119 = vector.extract_strided_slice %99 {offsets = [0, 256], sizes = [1, 128], strides = [1, 1]} : vector<1x384xf32> to vector<1x128xf32>
    %120 = vector.extract_strided_slice %102 {offsets = [0, 256], sizes = [1, 128], strides = [1, 1]} : vector<1x384xf32> to vector<1x128xf32>
    %121 = arith.mulf %110, %120 : vector<1x128xf32>
    %122 = arith.addf %119, %121 : vector<1x128xf32>
    %123 = math.tanh %122 : vector<1x128xf32>
    %cst_32 = arith.constant 1.000000e+00 : f32
    %124 = vector.broadcast %cst_32 : f32 to vector<1x128xf32>
    %125 = arith.subf %124, %118 : vector<1x128xf32>
    %126 = arith.mulf %125, %123 : vector<1x128xf32>
    %127 = arith.mulf %118, %84 : vector<1x128xf32>
    %128 = arith.addf %126, %127 : vector<1x128xf32>
    %c1_i32_33 = arith.constant 1 : i32
    %129 = vector.broadcast %c1_i32_33 : i32 to vector<2x1xi32>
    %130 = arith.subi %7, %129 : vector<2x1xi32>
    %c2_i32 = arith.constant 2 : i32
    %131 = vector.broadcast %c2_i32 : i32 to vector<2x1xi32>
    %132 = arith.cmpi eq, %130, %131 : vector<2x1xi32>
    %c2_i32_34 = arith.constant 2 : i32
    %133 = vector.broadcast %c2_i32_34 : i32 to vector<1x1xi32>
    %134 = arith.cmpi sgt, %8, %133 : vector<1x1xi32>
    %135 = vector.broadcast %134 : vector<1x1xi1> to vector<2x1xi1>
    %136 = arith.andi %132, %135 : vector<2x1xi1>
    %137 = arith.extui %136 : vector<2x1xi1> to vector<2x1xi32>
    %138 = arith.sitofp %137 : vector<2x1xi32> to vector<2x1xf32>
    %139 = vector.broadcast %138 : vector<2x1xf32> to vector<2x128xf32>
    %140 = vector.broadcast %128 : vector<1x128xf32> to vector<2x128xf32>
    %141 = arith.mulf %139, %140 : vector<2x128xf32>
    %142 = arith.addf %98, %141 : vector<2x128xf32>
    %143 = vector.extract_strided_slice %5 {offsets = [3, 0], sizes = [1, 384], strides = [1, 1]} : vector<8x384xf32> to vector<1x384xf32>
    %c0_35 = arith.constant 0 : index
    %c0_36 = arith.constant 0 : index
    %144 = vector.load %arg3[%c0_35, %c0_36] : memref<128x384xf32, #tpu.memory_space<vmem>>, vector<128x384xf32>
    %cst_37 = arith.constant dense<0.000000e+00> : vector<1x384xf32>
    %145 = tpu.matmul %128, %144, %cst_37 {dimension_numbers = #tpu.dot_dimension_numbers<[1], [0], [0], [1], [0, 0, 1, 1], [], []>} : vector<1x128xf32>, vector<128x384xf32>, vector<1x384xf32> -> vector<1x384xf32>
    %146 = arith.addf %145, %6 : vector<1x384xf32>
    %147 = vector.extract_strided_slice %143 {offsets = [0, 0], sizes = [1, 128], strides = [1, 1]} : vector<1x384xf32> to vector<1x128xf32>
    %148 = vector.extract_strided_slice %146 {offsets = [0, 0], sizes = [1, 128], strides = [1, 1]} : vector<1x384xf32> to vector<1x128xf32>
    %149 = arith.addf %147, %148 : vector<1x128xf32>
    %150 = arith.negf %149 : vector<1x128xf32>
    %151 = math.exp %150 : vector<1x128xf32>
    %cst_38 = arith.constant 1.000000e+00 : f32
    %152 = vector.broadcast %cst_38 : f32 to vector<1x128xf32>
    %153 = arith.addf %152, %151 : vector<1x128xf32>
    %154 = arith.divf %152, %153 : vector<1x128xf32>
    %155 = vector.extract_strided_slice %143 {offsets = [0, 128], sizes = [1, 128], strides = [1, 1]} : vector<1x384xf32> to vector<1x128xf32>
    %156 = vector.extract_strided_slice %146 {offsets = [0, 128], sizes = [1, 128], strides = [1, 1]} : vector<1x384xf32> to vector<1x128xf32>
    %157 = arith.addf %155, %156 : vector<1x128xf32>
    %158 = arith.negf %157 : vector<1x128xf32>
    %159 = math.exp %158 : vector<1x128xf32>
    %cst_39 = arith.constant 1.000000e+00 : f32
    %160 = vector.broadcast %cst_39 : f32 to vector<1x128xf32>
    %161 = arith.addf %160, %159 : vector<1x128xf32>
    %162 = arith.divf %160, %161 : vector<1x128xf32>
    %163 = vector.extract_strided_slice %143 {offsets = [0, 256], sizes = [1, 128], strides = [1, 1]} : vector<1x384xf32> to vector<1x128xf32>
    %164 = vector.extract_strided_slice %146 {offsets = [0, 256], sizes = [1, 128], strides = [1, 1]} : vector<1x384xf32> to vector<1x128xf32>
    %165 = arith.mulf %154, %164 : vector<1x128xf32>
    %166 = arith.addf %163, %165 : vector<1x128xf32>
    %167 = math.tanh %166 : vector<1x128xf32>
    %cst_40 = arith.constant 1.000000e+00 : f32
    %168 = vector.broadcast %cst_40 : f32 to vector<1x128xf32>
    %169 = arith.subf %168, %162 : vector<1x128xf32>
    %170 = arith.mulf %169, %167 : vector<1x128xf32>
    %171 = arith.mulf %162, %128 : vector<1x128xf32>
    %172 = arith.addf %170, %171 : vector<1x128xf32>
    %c1_i32_41 = arith.constant 1 : i32
    %173 = vector.broadcast %c1_i32_41 : i32 to vector<2x1xi32>
    %174 = arith.subi %7, %173 : vector<2x1xi32>
    %c3_i32 = arith.constant 3 : i32
    %175 = vector.broadcast %c3_i32 : i32 to vector<2x1xi32>
    %176 = arith.cmpi eq, %174, %175 : vector<2x1xi32>
    %c3_i32_42 = arith.constant 3 : i32
    %177 = vector.broadcast %c3_i32_42 : i32 to vector<1x1xi32>
    %178 = arith.cmpi sgt, %8, %177 : vector<1x1xi32>
    %179 = vector.broadcast %178 : vector<1x1xi1> to vector<2x1xi1>
    %180 = arith.andi %176, %179 : vector<2x1xi1>
    %181 = arith.extui %180 : vector<2x1xi1> to vector<2x1xi32>
    %182 = arith.sitofp %181 : vector<2x1xi32> to vector<2x1xf32>
    %183 = vector.broadcast %182 : vector<2x1xf32> to vector<2x128xf32>
    %184 = vector.broadcast %172 : vector<1x128xf32> to vector<2x128xf32>
    %185 = arith.mulf %183, %184 : vector<2x128xf32>
    %186 = arith.addf %142, %185 : vector<2x128xf32>
    %187 = vector.extract_strided_slice %5 {offsets = [4, 0], sizes = [1, 384], strides = [1, 1]} : vector<8x384xf32> to vector<1x384xf32>
    %c0_43 = arith.constant 0 : index
    %c0_44 = arith.constant 0 : index
    %188 = vector.load %arg3[%c0_43, %c0_44] : memref<128x384xf32, #tpu.memory_space<vmem>>, vector<128x384xf32>
    %cst_45 = arith.constant dense<0.000000e+00> : vector<1x384xf32>
    %189 = tpu.matmul %172, %188, %cst_45 {dimension_numbers = #tpu.dot_dimension_numbers<[1], [0], [0], [1], [0, 0, 1, 1], [], []>} : vector<1x128xf32>, vector<128x384xf32>, vector<1x384xf32> -> vector<1x384xf32>
    %190 = arith.addf %189, %6 : vector<1x384xf32>
    %191 = vector.extract_strided_slice %187 {offsets = [0, 0], sizes = [1, 128], strides = [1, 1]} : vector<1x384xf32> to vector<1x128xf32>
    %192 = vector.extract_strided_slice %190 {offsets = [0, 0], sizes = [1, 128], strides = [1, 1]} : vector<1x384xf32> to vector<1x128xf32>
    %193 = arith.addf %191, %192 : vector<1x128xf32>
    %194 = arith.negf %193 : vector<1x128xf32>
    %195 = math.exp %194 : vector<1x128xf32>
    %cst_46 = arith.constant 1.000000e+00 : f32
    %196 = vector.broadcast %cst_46 : f32 to vector<1x128xf32>
    %197 = arith.addf %196, %195 : vector<1x128xf32>
    %198 = arith.divf %196, %197 : vector<1x128xf32>
    %199 = vector.extract_strided_slice %187 {offsets = [0, 128], sizes = [1, 128], strides = [1, 1]} : vector<1x384xf32> to vector<1x128xf32>
    %200 = vector.extract_strided_slice %190 {offsets = [0, 128], sizes = [1, 128], strides = [1, 1]} : vector<1x384xf32> to vector<1x128xf32>
    %201 = arith.addf %199, %200 : vector<1x128xf32>
    %202 = arith.negf %201 : vector<1x128xf32>
    %203 = math.exp %202 : vector<1x128xf32>
    %cst_47 = arith.constant 1.000000e+00 : f32
    %204 = vector.broadcast %cst_47 : f32 to vector<1x128xf32>
    %205 = arith.addf %204, %203 : vector<1x128xf32>
    %206 = arith.divf %204, %205 : vector<1x128xf32>
    %207 = vector.extract_strided_slice %187 {offsets = [0, 256], sizes = [1, 128], strides = [1, 1]} : vector<1x384xf32> to vector<1x128xf32>
    %208 = vector.extract_strided_slice %190 {offsets = [0, 256], sizes = [1, 128], strides = [1, 1]} : vector<1x384xf32> to vector<1x128xf32>
    %209 = arith.mulf %198, %208 : vector<1x128xf32>
    %210 = arith.addf %207, %209 : vector<1x128xf32>
    %211 = math.tanh %210 : vector<1x128xf32>
    %cst_48 = arith.constant 1.000000e+00 : f32
    %212 = vector.broadcast %cst_48 : f32 to vector<1x128xf32>
    %213 = arith.subf %212, %206 : vector<1x128xf32>
    %214 = arith.mulf %213, %211 : vector<1x128xf32>
    %215 = arith.mulf %206, %172 : vector<1x128xf32>
    %216 = arith.addf %214, %215 : vector<1x128xf32>
    %c1_i32_49 = arith.constant 1 : i32
    %217 = vector.broadcast %c1_i32_49 : i32 to vector<2x1xi32>
    %218 = arith.subi %7, %217 : vector<2x1xi32>
    %c4_i32 = arith.constant 4 : i32
    %219 = vector.broadcast %c4_i32 : i32 to vector<2x1xi32>
    %220 = arith.cmpi eq, %218, %219 : vector<2x1xi32>
    %c4_i32_50 = arith.constant 4 : i32
    %221 = vector.broadcast %c4_i32_50 : i32 to vector<1x1xi32>
    %222 = arith.cmpi sgt, %8, %221 : vector<1x1xi32>
    %223 = vector.broadcast %222 : vector<1x1xi1> to vector<2x1xi1>
    %224 = arith.andi %220, %223 : vector<2x1xi1>
    %225 = arith.extui %224 : vector<2x1xi1> to vector<2x1xi32>
    %226 = arith.sitofp %225 : vector<2x1xi32> to vector<2x1xf32>
    %227 = vector.broadcast %226 : vector<2x1xf32> to vector<2x128xf32>
    %228 = vector.broadcast %216 : vector<1x128xf32> to vector<2x128xf32>
    %229 = arith.mulf %227, %228 : vector<2x128xf32>
    %230 = arith.addf %186, %229 : vector<2x128xf32>
    %231 = vector.extract_strided_slice %5 {offsets = [5, 0], sizes = [1, 384], strides = [1, 1]} : vector<8x384xf32> to vector<1x384xf32>
    %c0_51 = arith.constant 0 : index
    %c0_52 = arith.constant 0 : index
    %232 = vector.load %arg3[%c0_51, %c0_52] : memref<128x384xf32, #tpu.memory_space<vmem>>, vector<128x384xf32>
    %cst_53 = arith.constant dense<0.000000e+00> : vector<1x384xf32>
    %233 = tpu.matmul %216, %232, %cst_53 {dimension_numbers = #tpu.dot_dimension_numbers<[1], [0], [0], [1], [0, 0, 1, 1], [], []>} : vector<1x128xf32>, vector<128x384xf32>, vector<1x384xf32> -> vector<1x384xf32>
    %234 = arith.addf %233, %6 : vector<1x384xf32>
    %235 = vector.extract_strided_slice %231 {offsets = [0, 0], sizes = [1, 128], strides = [1, 1]} : vector<1x384xf32> to vector<1x128xf32>
    %236 = vector.extract_strided_slice %234 {offsets = [0, 0], sizes = [1, 128], strides = [1, 1]} : vector<1x384xf32> to vector<1x128xf32>
    %237 = arith.addf %235, %236 : vector<1x128xf32>
    %238 = arith.negf %237 : vector<1x128xf32>
    %239 = math.exp %238 : vector<1x128xf32>
    %cst_54 = arith.constant 1.000000e+00 : f32
    %240 = vector.broadcast %cst_54 : f32 to vector<1x128xf32>
    %241 = arith.addf %240, %239 : vector<1x128xf32>
    %242 = arith.divf %240, %241 : vector<1x128xf32>
    %243 = vector.extract_strided_slice %231 {offsets = [0, 128], sizes = [1, 128], strides = [1, 1]} : vector<1x384xf32> to vector<1x128xf32>
    %244 = vector.extract_strided_slice %234 {offsets = [0, 128], sizes = [1, 128], strides = [1, 1]} : vector<1x384xf32> to vector<1x128xf32>
    %245 = arith.addf %243, %244 : vector<1x128xf32>
    %246 = arith.negf %245 : vector<1x128xf32>
    %247 = math.exp %246 : vector<1x128xf32>
    %cst_55 = arith.constant 1.000000e+00 : f32
    %248 = vector.broadcast %cst_55 : f32 to vector<1x128xf32>
    %249 = arith.addf %248, %247 : vector<1x128xf32>
    %250 = arith.divf %248, %249 : vector<1x128xf32>
    %251 = vector.extract_strided_slice %231 {offsets = [0, 256], sizes = [1, 128], strides = [1, 1]} : vector<1x384xf32> to vector<1x128xf32>
    %252 = vector.extract_strided_slice %234 {offsets = [0, 256], sizes = [1, 128], strides = [1, 1]} : vector<1x384xf32> to vector<1x128xf32>
    %253 = arith.mulf %242, %252 : vector<1x128xf32>
    %254 = arith.addf %251, %253 : vector<1x128xf32>
    %255 = math.tanh %254 : vector<1x128xf32>
    %cst_56 = arith.constant 1.000000e+00 : f32
    %256 = vector.broadcast %cst_56 : f32 to vector<1x128xf32>
    %257 = arith.subf %256, %250 : vector<1x128xf32>
    %258 = arith.mulf %257, %255 : vector<1x128xf32>
    %259 = arith.mulf %250, %216 : vector<1x128xf32>
    %260 = arith.addf %258, %259 : vector<1x128xf32>
    %c1_i32_57 = arith.constant 1 : i32
    %261 = vector.broadcast %c1_i32_57 : i32 to vector<2x1xi32>
    %262 = arith.subi %7, %261 : vector<2x1xi32>
    %c5_i32 = arith.constant 5 : i32
    %263 = vector.broadcast %c5_i32 : i32 to vector<2x1xi32>
    %264 = arith.cmpi eq, %262, %263 : vector<2x1xi32>
    %c5_i32_58 = arith.constant 5 : i32
    %265 = vector.broadcast %c5_i32_58 : i32 to vector<1x1xi32>
    %266 = arith.cmpi sgt, %8, %265 : vector<1x1xi32>
    %267 = vector.broadcast %266 : vector<1x1xi1> to vector<2x1xi1>
    %268 = arith.andi %264, %267 : vector<2x1xi1>
    %269 = arith.extui %268 : vector<2x1xi1> to vector<2x1xi32>
    %270 = arith.sitofp %269 : vector<2x1xi32> to vector<2x1xf32>
    %271 = vector.broadcast %270 : vector<2x1xf32> to vector<2x128xf32>
    %272 = vector.broadcast %260 : vector<1x128xf32> to vector<2x128xf32>
    %273 = arith.mulf %271, %272 : vector<2x128xf32>
    %274 = arith.addf %230, %273 : vector<2x128xf32>
    %275 = vector.extract_strided_slice %5 {offsets = [6, 0], sizes = [1, 384], strides = [1, 1]} : vector<8x384xf32> to vector<1x384xf32>
    %c0_59 = arith.constant 0 : index
    %c0_60 = arith.constant 0 : index
    %276 = vector.load %arg3[%c0_59, %c0_60] : memref<128x384xf32, #tpu.memory_space<vmem>>, vector<128x384xf32>
    %cst_61 = arith.constant dense<0.000000e+00> : vector<1x384xf32>
    %277 = tpu.matmul %260, %276, %cst_61 {dimension_numbers = #tpu.dot_dimension_numbers<[1], [0], [0], [1], [0, 0, 1, 1], [], []>} : vector<1x128xf32>, vector<128x384xf32>, vector<1x384xf32> -> vector<1x384xf32>
    %278 = arith.addf %277, %6 : vector<1x384xf32>
    %279 = vector.extract_strided_slice %275 {offsets = [0, 0], sizes = [1, 128], strides = [1, 1]} : vector<1x384xf32> to vector<1x128xf32>
    %280 = vector.extract_strided_slice %278 {offsets = [0, 0], sizes = [1, 128], strides = [1, 1]} : vector<1x384xf32> to vector<1x128xf32>
    %281 = arith.addf %279, %280 : vector<1x128xf32>
    %282 = arith.negf %281 : vector<1x128xf32>
    %283 = math.exp %282 : vector<1x128xf32>
    %cst_62 = arith.constant 1.000000e+00 : f32
    %284 = vector.broadcast %cst_62 : f32 to vector<1x128xf32>
    %285 = arith.addf %284, %283 : vector<1x128xf32>
    %286 = arith.divf %284, %285 : vector<1x128xf32>
    %287 = vector.extract_strided_slice %275 {offsets = [0, 128], sizes = [1, 128], strides = [1, 1]} : vector<1x384xf32> to vector<1x128xf32>
    %288 = vector.extract_strided_slice %278 {offsets = [0, 128], sizes = [1, 128], strides = [1, 1]} : vector<1x384xf32> to vector<1x128xf32>
    %289 = arith.addf %287, %288 : vector<1x128xf32>
    %290 = arith.negf %289 : vector<1x128xf32>
    %291 = math.exp %290 : vector<1x128xf32>
    %cst_63 = arith.constant 1.000000e+00 : f32
    %292 = vector.broadcast %cst_63 : f32 to vector<1x128xf32>
    %293 = arith.addf %292, %291 : vector<1x128xf32>
    %294 = arith.divf %292, %293 : vector<1x128xf32>
    %295 = vector.extract_strided_slice %275 {offsets = [0, 256], sizes = [1, 128], strides = [1, 1]} : vector<1x384xf32> to vector<1x128xf32>
    %296 = vector.extract_strided_slice %278 {offsets = [0, 256], sizes = [1, 128], strides = [1, 1]} : vector<1x384xf32> to vector<1x128xf32>
    %297 = arith.mulf %286, %296 : vector<1x128xf32>
    %298 = arith.addf %295, %297 : vector<1x128xf32>
    %299 = math.tanh %298 : vector<1x128xf32>
    %cst_64 = arith.constant 1.000000e+00 : f32
    %300 = vector.broadcast %cst_64 : f32 to vector<1x128xf32>
    %301 = arith.subf %300, %294 : vector<1x128xf32>
    %302 = arith.mulf %301, %299 : vector<1x128xf32>
    %303 = arith.mulf %294, %260 : vector<1x128xf32>
    %304 = arith.addf %302, %303 : vector<1x128xf32>
    %c1_i32_65 = arith.constant 1 : i32
    %305 = vector.broadcast %c1_i32_65 : i32 to vector<2x1xi32>
    %306 = arith.subi %7, %305 : vector<2x1xi32>
    %c6_i32 = arith.constant 6 : i32
    %307 = vector.broadcast %c6_i32 : i32 to vector<2x1xi32>
    %308 = arith.cmpi eq, %306, %307 : vector<2x1xi32>
    %c6_i32_66 = arith.constant 6 : i32
    %309 = vector.broadcast %c6_i32_66 : i32 to vector<1x1xi32>
    %310 = arith.cmpi sgt, %8, %309 : vector<1x1xi32>
    %311 = vector.broadcast %310 : vector<1x1xi1> to vector<2x1xi1>
    %312 = arith.andi %308, %311 : vector<2x1xi1>
    %313 = arith.extui %312 : vector<2x1xi1> to vector<2x1xi32>
    %314 = arith.sitofp %313 : vector<2x1xi32> to vector<2x1xf32>
    %315 = vector.broadcast %314 : vector<2x1xf32> to vector<2x128xf32>
    %316 = vector.broadcast %304 : vector<1x128xf32> to vector<2x128xf32>
    %317 = arith.mulf %315, %316 : vector<2x128xf32>
    %318 = arith.addf %274, %317 : vector<2x128xf32>
    %319 = vector.extract_strided_slice %5 {offsets = [7, 0], sizes = [1, 384], strides = [1, 1]} : vector<8x384xf32> to vector<1x384xf32>
    %c0_67 = arith.constant 0 : index
    %c0_68 = arith.constant 0 : index
    %320 = vector.load %arg3[%c0_67, %c0_68] : memref<128x384xf32, #tpu.memory_space<vmem>>, vector<128x384xf32>
    %cst_69 = arith.constant dense<0.000000e+00> : vector<1x384xf32>
    %321 = tpu.matmul %304, %320, %cst_69 {dimension_numbers = #tpu.dot_dimension_numbers<[1], [0], [0], [1], [0, 0, 1, 1], [], []>} : vector<1x128xf32>, vector<128x384xf32>, vector<1x384xf32> -> vector<1x384xf32>
    %322 = arith.addf %321, %6 : vector<1x384xf32>
    %323 = vector.extract_strided_slice %319 {offsets = [0, 0], sizes = [1, 128], strides = [1, 1]} : vector<1x384xf32> to vector<1x128xf32>
    %324 = vector.extract_strided_slice %322 {offsets = [0, 0], sizes = [1, 128], strides = [1, 1]} : vector<1x384xf32> to vector<1x128xf32>
    %325 = arith.addf %323, %324 : vector<1x128xf32>
    %326 = arith.negf %325 : vector<1x128xf32>
    %327 = math.exp %326 : vector<1x128xf32>
    %cst_70 = arith.constant 1.000000e+00 : f32
    %328 = vector.broadcast %cst_70 : f32 to vector<1x128xf32>
    %329 = arith.addf %328, %327 : vector<1x128xf32>
    %330 = arith.divf %328, %329 : vector<1x128xf32>
    %331 = vector.extract_strided_slice %319 {offsets = [0, 128], sizes = [1, 128], strides = [1, 1]} : vector<1x384xf32> to vector<1x128xf32>
    %332 = vector.extract_strided_slice %322 {offsets = [0, 128], sizes = [1, 128], strides = [1, 1]} : vector<1x384xf32> to vector<1x128xf32>
    %333 = arith.addf %331, %332 : vector<1x128xf32>
    %334 = arith.negf %333 : vector<1x128xf32>
    %335 = math.exp %334 : vector<1x128xf32>
    %cst_71 = arith.constant 1.000000e+00 : f32
    %336 = vector.broadcast %cst_71 : f32 to vector<1x128xf32>
    %337 = arith.addf %336, %335 : vector<1x128xf32>
    %338 = arith.divf %336, %337 : vector<1x128xf32>
    %339 = vector.extract_strided_slice %319 {offsets = [0, 256], sizes = [1, 128], strides = [1, 1]} : vector<1x384xf32> to vector<1x128xf32>
    %340 = vector.extract_strided_slice %322 {offsets = [0, 256], sizes = [1, 128], strides = [1, 1]} : vector<1x384xf32> to vector<1x128xf32>
    %341 = arith.mulf %330, %340 : vector<1x128xf32>
    %342 = arith.addf %339, %341 : vector<1x128xf32>
    %343 = math.tanh %342 : vector<1x128xf32>
    %cst_72 = arith.constant 1.000000e+00 : f32
    %344 = vector.broadcast %cst_72 : f32 to vector<1x128xf32>
    %345 = arith.subf %344, %338 : vector<1x128xf32>
    %346 = arith.mulf %345, %343 : vector<1x128xf32>
    %347 = arith.mulf %338, %304 : vector<1x128xf32>
    %348 = arith.addf %346, %347 : vector<1x128xf32>
    %c1_i32_73 = arith.constant 1 : i32
    %349 = vector.broadcast %c1_i32_73 : i32 to vector<2x1xi32>
    %350 = arith.subi %7, %349 : vector<2x1xi32>
    %c7_i32 = arith.constant 7 : i32
    %351 = vector.broadcast %c7_i32 : i32 to vector<2x1xi32>
    %352 = arith.cmpi eq, %350, %351 : vector<2x1xi32>
    %c7_i32_74 = arith.constant 7 : i32
    %353 = vector.broadcast %c7_i32_74 : i32 to vector<1x1xi32>
    %354 = arith.cmpi sgt, %8, %353 : vector<1x1xi32>
    %355 = vector.broadcast %354 : vector<1x1xi1> to vector<2x1xi1>
    %356 = arith.andi %352, %355 : vector<2x1xi1>
    %357 = arith.extui %356 : vector<2x1xi1> to vector<2x1xi32>
    %358 = arith.sitofp %357 : vector<2x1xi32> to vector<2x1xf32>
    %359 = vector.broadcast %358 : vector<2x1xf32> to vector<2x128xf32>
    %360 = vector.broadcast %348 : vector<1x128xf32> to vector<2x128xf32>
    %361 = arith.mulf %359, %360 : vector<2x128xf32>
    %362 = arith.addf %318, %361 : vector<2x128xf32>
    %363 = vector.extract_strided_slice %362 {offsets = [0, 0], sizes = [2, 32], strides = [1, 1]} : vector<2x128xf32> to vector<2x32xf32>
    %c0_75 = arith.constant 0 : index
    %c0_76 = arith.constant 0 : index
    %364 = vector.load %arg6[%c0_75, %c0_76] : memref<2x32xf32, #tpu.memory_space<vmem>>, vector<2x32xf32>
    tpu.vector_store %arg6[%c0_75, %c0_76], %363 {strides = array<i32>} : memref<2x32xf32, #tpu.memory_space<vmem>>, vector<2x32xf32>,
    return
  }
}

module attributes {stable_mosaic.version = 11 : i64} {
  func.func @attn_kernel(%arg0: i32, %arg1: memref<1x256x4xf32, #tpu.memory_space<vmem>>, %arg2: memref<1x32x32xf32, #tpu.memory_space<vmem>>, %arg3: memref<1x32x1xf32, #tpu.memory_space<vmem>>, %arg4: memref<4x32xf32, #tpu.memory_space<vmem>>, %arg5: memref<1x32xf32, #tpu.memory_space<vmem>>, %arg6: memref<32x256xf32, #tpu.memory_space<vmem>>, %arg7: memref<1x256xf32, #tpu.memory_space<vmem>>, %arg8: memref<32x128xf32, #tpu.memory_space<vmem>>, %arg9: memref<2x32x64xf32, #tpu.memory_space<vmem>>, %arg10: memref<2x1x64xf32, #tpu.memory_space<vmem>>, %arg11: memref<2x1x64xf32, #tpu.memory_space<vmem>>, %arg12: memref<2x1x1xf32, #tpu.memory_space<vmem>>, %arg13: memref<1x32x1xf32, #tpu.memory_space<vmem>>, %arg14: memref<32x256xf32, #tpu.memory_space<vmem>>, %arg15: memref<256x128xf32, #tpu.memory_space<vmem>>) attributes {dimension_semantics = [#tpu.dimension_semantics<parallel>], iteration_bounds = array<i64: 2>, scalar_prefetch = 0 : i64, scratch_operands = 2 : i64, tpu.core_type = #tpu.core_type<tc>, window_params = [{transform_indices = @transform_0, window_bounds = array<i64: 1, 256, 4>}, {transform_indices = @transform_1, window_bounds = array<i64: 1, 32, 32>}, {transform_indices = @transform_2, window_bounds = array<i64: 1, 32, 1>}, {pipeline_mode = #tpu.pipeline_mode<synchronous>, transform_indices = @transform_3, window_bounds = array<i64: 4, 32>}, {pipeline_mode = #tpu.pipeline_mode<synchronous>, transform_indices = @transform_4, window_bounds = array<i64: 1, 32>}, {pipeline_mode = #tpu.pipeline_mode<synchronous>, transform_indices = @transform_5, window_bounds = array<i64: 32, 256>}, {pipeline_mode = #tpu.pipeline_mode<synchronous>, transform_indices = @transform_6, window_bounds = array<i64: 1, 256>}, {pipeline_mode = #tpu.pipeline_mode<synchronous>, transform_indices = @transform_7, window_bounds = array<i64: 32, 128>}, {pipeline_mode = #tpu.pipeline_mode<synchronous>, transform_indices = @transform_8, window_bounds = array<i64: 2, 32, 64>}, {pipeline_mode = #tpu.pipeline_mode<synchronous>, transform_indices = @transform_9, window_bounds = array<i64: 2, 1, 64>}, {pipeline_mode = #tpu.pipeline_mode<synchronous>, transform_indices = @transform_10, window_bounds = array<i64: 2, 1, 64>}, {pipeline_mode = #tpu.pipeline_mode<synchronous>, transform_indices = @transform_11, window_bounds = array<i64: 2, 1, 1>}, {transform_indices = @transform_12, window_bounds = array<i64: 1, 32, 1>}]} {
    %c0 = arith.constant 0 : index
    %c0_0 = arith.constant 0 : index
    %c0_1 = arith.constant 0 : index
    %0 = vector.load %arg1[%c0, %c0_0, %c0_1] : memref<1x256x4xf32, #tpu.memory_space<vmem>>, vector<1x256x4xf32>
    %1 = vector.shape_cast %0 : vector<1x256x4xf32> to vector<256x4xf32>
    %c0_2 = arith.constant 0 : index
    %c0_3 = arith.constant 0 : index
    %2 = vector.load %arg4[%c0_2, %c0_3] : memref<4x32xf32, #tpu.memory_space<vmem>>, vector<4x32xf32>
    %cst = arith.constant dense<0.000000e+00> : vector<256x32xf32>
    %3 = tpu.matmul %1, %2, %cst {dimension_numbers = #tpu.dot_dimension_numbers<[1], [0], [0], [1], [0, 0, 1, 1], [], []>} : vector<256x4xf32>, vector<4x32xf32>, vector<256x32xf32> -> vector<256x32xf32>
    %c0_4 = arith.constant 0 : index
    %c0_5 = arith.constant 0 : index
    %4 = vector.load %arg5[%c0_4, %c0_5] : memref<1x32xf32, #tpu.memory_space<vmem>>, vector<1x32xf32>
    %5 = vector.broadcast %4 : vector<1x32xf32> to vector<256x32xf32>
    %6 = arith.addf %3, %5 : vector<256x32xf32>
    %c0_6 = arith.constant 0 : index
    %c0_7 = arith.constant 0 : index
    %c0_8 = arith.constant 0 : index
    %7 = vector.load %arg2[%c0_6, %c0_7, %c0_8] : memref<1x32x32xf32, #tpu.memory_space<vmem>>, vector<1x32x32xf32>
    %8 = vector.shape_cast %7 : vector<1x32x32xf32> to vector<32x32xf32>
    %c0_9 = arith.constant 0 : index
    %c0_10 = arith.constant 0 : index
    %9 = vector.load %arg6[%c0_9, %c0_10] : memref<32x256xf32, #tpu.memory_space<vmem>>, vector<32x256xf32>
    %cst_11 = arith.constant dense<0.000000e+00> : vector<32x256xf32>
    %10 = tpu.matmul %8, %9, %cst_11 {dimension_numbers = #tpu.dot_dimension_numbers<[1], [0], [0], [1], [0, 0, 1, 1], [], []>} : vector<32x32xf32>, vector<32x256xf32>, vector<32x256xf32> -> vector<32x256xf32>
    %c0_12 = arith.constant 0 : index
    %c0_13 = arith.constant 0 : index
    %11 = vector.load %arg7[%c0_12, %c0_13] : memref<1x256xf32, #tpu.memory_space<vmem>>, vector<1x256xf32>
    %12 = vector.broadcast %11 : vector<1x256xf32> to vector<32x256xf32>
    %13 = arith.addf %10, %12 : vector<32x256xf32>
    %c0_14 = arith.constant 0 : index
    %c0_15 = arith.constant 0 : index
    %14 = vector.load %arg14[%c0_14, %c0_15] : memref<32x256xf32, #tpu.memory_space<vmem>>, vector<32x256xf32>
    tpu.vector_store %arg14[%c0_14, %c0_15], %13 {strides = array<i32>} : memref<32x256xf32, #tpu.memory_space<vmem>>, vector<32x256xf32>,
    %c0_16 = arith.constant 0 : index
    %c0_17 = arith.constant 0 : index
    %15 = vector.load %arg8[%c0_16, %c0_17] : memref<32x128xf32, #tpu.memory_space<vmem>>, vector<32x128xf32>
    %cst_18 = arith.constant dense<0.000000e+00> : vector<256x128xf32>
    %16 = tpu.matmul %6, %15, %cst_18 {dimension_numbers = #tpu.dot_dimension_numbers<[1], [0], [0], [1], [0, 0, 1, 1], [], []>} : vector<256x32xf32>, vector<32x128xf32>, vector<256x128xf32> -> vector<256x128xf32>
    %c0_19 = arith.constant 0 : index
    %c0_20 = arith.constant 0 : index
    %17 = vector.load %arg15[%c0_19, %c0_20] : memref<256x128xf32, #tpu.memory_space<vmem>>, vector<256x128xf32>
    tpu.vector_store %arg15[%c0_19, %c0_20], %16 {strides = array<i32>} : memref<256x128xf32, #tpu.memory_space<vmem>>, vector<256x128xf32>,
    %c0_21 = arith.constant 0 : index
    %c0_22 = arith.constant 0 : index
    %c0_23 = arith.constant 0 : index
    %18 = vector.load %arg3[%c0_21, %c0_22, %c0_23] : memref<1x32x1xf32, #tpu.memory_space<vmem>>, vector<1x32x1xf32>
    %19 = vector.shape_cast %18 : vector<1x32x1xf32> to vector<32x1xf32>
    %c0_24 = arith.constant 0 : index
    %c0_25 = arith.constant 0 : index
    %20 = vector.load %arg15[%c0_24, %c0_25] : memref<256x128xf32, #tpu.memory_space<vmem>>, vector<256x64xf32>
    %c0_26 = arith.constant 0 : index
    %c0_27 = arith.constant 0 : index
    %c0_28 = arith.constant 0 : index
    %21 = vector.load %arg9[%c0_26, %c0_27, %c0_28] : memref<2x32x64xf32, #tpu.memory_space<vmem>>, vector<1x32x64xf32>
    %22 = vector.shape_cast %21 : vector<1x32x64xf32> to vector<32x64xf32>
    %23 = vector.broadcast %19 : vector<32x1xf32> to vector<32x64xf32>
    %24 = arith.mulf %23, %22 : vector<32x64xf32>
    %cst_29 = arith.constant dense<0.000000e+00> : vector<64xf32>
    %25 = vector.multi_reduction <add>, %24, %cst_29 [0] : vector<32x64xf32> to vector<64xf32>
    %26 = vector.shape_cast %25 : vector<64xf32> to vector<1x64xf32>
    %c0_30 = arith.constant 0 : index
    %c0_31 = arith.constant 0 : index
    %c0_32 = arith.constant 0 : index
    %27 = vector.load %arg10[%c0_30, %c0_31, %c0_32] : memref<2x1x64xf32, #tpu.memory_space<vmem>>, vector<1x1x64xf32>
    %28 = vector.shape_cast %27 : vector<1x1x64xf32> to vector<1x64xf32>
    %29 = arith.addf %26, %28 : vector<1x64xf32>
    %30 = vector.broadcast %29 : vector<1x64xf32> to vector<256x64xf32>
    %31 = arith.addf %20, %30 : vector<256x64xf32>
    %32 = math.tanh %31 : vector<256x64xf32>
    %c0_33 = arith.constant 0 : index
    %c0_34 = arith.constant 0 : index
    %c0_35 = arith.constant 0 : index
    %33 = vector.load %arg11[%c0_33, %c0_34, %c0_35] : memref<2x1x64xf32, #tpu.memory_space<vmem>>, vector<1x1x64xf32>
    %34 = vector.shape_cast %33 : vector<1x1x64xf32> to vector<1x64xf32>
    %35 = vector.broadcast %34 : vector<1x64xf32> to vector<256x64xf32>
    %36 = arith.mulf %32, %35 : vector<256x64xf32>
    %cst_36 = arith.constant dense<0.000000e+00> : vector<256xf32>
    %37 = vector.multi_reduction <add>, %36, %cst_36 [1] : vector<256x64xf32> to vector<256xf32>
    %38 = vector.shape_cast %37 : vector<256xf32> to vector<256x1xf32>
    %c0_37 = arith.constant 0 : index
    %c0_38 = arith.constant 0 : index
    %c0_39 = arith.constant 0 : index
    %39 = vector.load %arg12[%c0_37, %c0_38, %c0_39] : memref<2x1x1xf32, #tpu.memory_space<vmem>>, vector<1x1x1xf32>
    %40 = vector.shape_cast %39 : vector<1x1x1xf32> to vector<1x1xf32>
    %41 = vector.broadcast %40 : vector<1x1xf32> to vector<256x1xf32>
    %42 = arith.addf %38, %41 : vector<256x1xf32>
    %cst_40 = arith.constant dense<0xFF800000> : vector<1xf32>
    %43 = vector.multi_reduction <maximumf>, %42, %cst_40 [0] : vector<256x1xf32> to vector<1xf32>
    %44 = vector.shape_cast %43 : vector<1xf32> to vector<1x1xf32>
    %45 = vector.broadcast %44 : vector<1x1xf32> to vector<256x1xf32>
    %46 = arith.subf %42, %45 : vector<256x1xf32>
    %47 = math.exp %46 : vector<256x1xf32>
    %cst_41 = arith.constant dense<0.000000e+00> : vector<1xf32>
    %48 = vector.multi_reduction <add>, %47, %cst_41 [0] : vector<256x1xf32> to vector<1xf32>
    %49 = vector.shape_cast %48 : vector<1xf32> to vector<1x1xf32>
    %50 = vector.broadcast %49 : vector<1x1xf32> to vector<256x1xf32>
    %51 = arith.divf %47, %50 : vector<256x1xf32>
    %c0_42 = arith.constant 0 : index
    %c0_43 = arith.constant 0 : index
    %52 = vector.load %arg14[%c0_42, %c0_43] : memref<32x256xf32, #tpu.memory_space<vmem>>, vector<32x256xf32>
    %cst_44 = arith.constant dense<0.000000e+00> : vector<32x1xf32>
    %53 = tpu.matmul %52, %51, %cst_44 {dimension_numbers = #tpu.dot_dimension_numbers<[1], [0], [0], [1], [0, 0, 1, 1], [], []>} : vector<32x256xf32>, vector<256x1xf32>, vector<32x1xf32> -> vector<32x1xf32>
    %54 = arith.addf %19, %53 : vector<32x1xf32>
    %c0_45 = arith.constant 0 : index
    %c64 = arith.constant 64 : index
    %55 = vector.load %arg15[%c0_45, %c64] : memref<256x128xf32, #tpu.memory_space<vmem>>, vector<256x64xf32>
    %c1 = arith.constant 1 : index
    %c0_46 = arith.constant 0 : index
    %c0_47 = arith.constant 0 : index
    %56 = vector.load %arg9[%c1, %c0_46, %c0_47] : memref<2x32x64xf32, #tpu.memory_space<vmem>>, vector<1x32x64xf32>
    %57 = vector.shape_cast %56 : vector<1x32x64xf32> to vector<32x64xf32>
    %58 = vector.broadcast %54 : vector<32x1xf32> to vector<32x64xf32>
    %59 = arith.mulf %58, %57 : vector<32x64xf32>
    %cst_48 = arith.constant dense<0.000000e+00> : vector<64xf32>
    %60 = vector.multi_reduction <add>, %59, %cst_48 [0] : vector<32x64xf32> to vector<64xf32>
    %61 = vector.shape_cast %60 : vector<64xf32> to vector<1x64xf32>
    %c1_49 = arith.constant 1 : index
    %c0_50 = arith.constant 0 : index
    %c0_51 = arith.constant 0 : index
    %62 = vector.load %arg10[%c1_49, %c0_50, %c0_51] : memref<2x1x64xf32, #tpu.memory_space<vmem>>, vector<1x1x64xf32>
    %63 = vector.shape_cast %62 : vector<1x1x64xf32> to vector<1x64xf32>
    %64 = arith.addf %61, %63 : vector<1x64xf32>
    %65 = vector.broadcast %64 : vector<1x64xf32> to vector<256x64xf32>
    %66 = arith.addf %55, %65 : vector<256x64xf32>
    %67 = math.tanh %66 : vector<256x64xf32>
    %c1_52 = arith.constant 1 : index
    %c0_53 = arith.constant 0 : index
    %c0_54 = arith.constant 0 : index
    %68 = vector.load %arg11[%c1_52, %c0_53, %c0_54] : memref<2x1x64xf32, #tpu.memory_space<vmem>>, vector<1x1x64xf32>
    %69 = vector.shape_cast %68 : vector<1x1x64xf32> to vector<1x64xf32>
    %70 = vector.broadcast %69 : vector<1x64xf32> to vector<256x64xf32>
    %71 = arith.mulf %67, %70 : vector<256x64xf32>
    %cst_55 = arith.constant dense<0.000000e+00> : vector<256xf32>
    %72 = vector.multi_reduction <add>, %71, %cst_55 [1] : vector<256x64xf32> to vector<256xf32>
    %73 = vector.shape_cast %72 : vector<256xf32> to vector<256x1xf32>
    %c1_56 = arith.constant 1 : index
    %c0_57 = arith.constant 0 : index
    %c0_58 = arith.constant 0 : index
    %74 = vector.load %arg12[%c1_56, %c0_57, %c0_58] : memref<2x1x1xf32, #tpu.memory_space<vmem>>, vector<1x1x1xf32>
    %75 = vector.shape_cast %74 : vector<1x1x1xf32> to vector<1x1xf32>
    %76 = vector.broadcast %75 : vector<1x1xf32> to vector<256x1xf32>
    %77 = arith.addf %73, %76 : vector<256x1xf32>
    %cst_59 = arith.constant dense<0xFF800000> : vector<1xf32>
    %78 = vector.multi_reduction <maximumf>, %77, %cst_59 [0] : vector<256x1xf32> to vector<1xf32>
    %79 = vector.shape_cast %78 : vector<1xf32> to vector<1x1xf32>
    %80 = vector.broadcast %79 : vector<1x1xf32> to vector<256x1xf32>
    %81 = arith.subf %77, %80 : vector<256x1xf32>
    %82 = math.exp %81 : vector<256x1xf32>
    %cst_60 = arith.constant dense<0.000000e+00> : vector<1xf32>
    %83 = vector.multi_reduction <add>, %82, %cst_60 [0] : vector<256x1xf32> to vector<1xf32>
    %84 = vector.shape_cast %83 : vector<1xf32> to vector<1x1xf32>
    %85 = vector.broadcast %84 : vector<1x1xf32> to vector<256x1xf32>
    %86 = arith.divf %82, %85 : vector<256x1xf32>
    %c0_61 = arith.constant 0 : index
    %c0_62 = arith.constant 0 : index
    %87 = vector.load %arg14[%c0_61, %c0_62] : memref<32x256xf32, #tpu.memory_space<vmem>>, vector<32x256xf32>
    %cst_63 = arith.constant dense<0.000000e+00> : vector<32x1xf32>
    %88 = tpu.matmul %87, %86, %cst_63 {dimension_numbers = #tpu.dot_dimension_numbers<[1], [0], [0], [1], [0, 0, 1, 1], [], []>} : vector<32x256xf32>, vector<256x1xf32>, vector<32x1xf32> -> vector<32x1xf32>
    %89 = arith.addf %54, %88 : vector<32x1xf32>
    %c0_64 = arith.constant 0 : index
    %c0_65 = arith.constant 0 : index
    %c0_66 = arith.constant 0 : index
    %90 = vector.load %arg13[%c0_64, %c0_65, %c0_66] : memref<1x32x1xf32, #tpu.memory_space<vmem>>, vector<1x32x1xf32>
    %91 = vector.shape_cast %90 : vector<1x32x1xf32> to vector<32x1xf32>
    %92 = vector.shape_cast %89 : vector<32x1xf32> to vector<1x32x1xf32>
    tpu.vector_store %arg13[%c0_64, %c0_65, %c0_66], %92 {strides = array<i32>} : memref<1x32x1xf32, #tpu.memory_space<vmem>>, vector<1x32x1xf32>,
    return
  }
  func.func @transform_0(%arg0: i32) -> (i32, i32, i32) {
    %c0_i32 = arith.constant 0 : i32
    %c0_i32_0 = arith.constant 0 : i32
    %c0_i32_1 = arith.constant 0 : i32
    return %arg0, %c0_i32, %c0_i32_0 : i32, i32, i32
  }
  func.func @transform_1(%arg0: i32) -> (i32, i32, i32) {
    %c0_i32 = arith.constant 0 : i32
    %c0_i32_0 = arith.constant 0 : i32
    %c0_i32_1 = arith.constant 0 : i32
    return %arg0, %c0_i32, %c0_i32_0 : i32, i32, i32
  }
  func.func @transform_2(%arg0: i32) -> (i32, i32, i32) {
    %c0_i32 = arith.constant 0 : i32
    %c0_i32_0 = arith.constant 0 : i32
    %c0_i32_1 = arith.constant 0 : i32
    return %arg0, %c0_i32, %c0_i32_0 : i32, i32, i32
  }
  func.func @transform_3(%arg0: i32) -> (i32, i32) {
    %c0_i32 = arith.constant 0 : i32
    %c0_i32_0 = arith.constant 0 : i32
    %c0_i32_1 = arith.constant 0 : i32
    return %c0_i32, %c0_i32_0 : i32, i32
  }
  func.func @transform_4(%arg0: i32) -> (i32, i32) {
    %c0_i32 = arith.constant 0 : i32
    %c0_i32_0 = arith.constant 0 : i32
    %c0_i32_1 = arith.constant 0 : i32
    return %c0_i32, %c0_i32_0 : i32, i32
  }
  func.func @transform_5(%arg0: i32) -> (i32, i32) {
    %c0_i32 = arith.constant 0 : i32
    %c0_i32_0 = arith.constant 0 : i32
    %c0_i32_1 = arith.constant 0 : i32
    return %c0_i32, %c0_i32_0 : i32, i32
  }
  func.func @transform_6(%arg0: i32) -> (i32, i32) {
    %c0_i32 = arith.constant 0 : i32
    %c0_i32_0 = arith.constant 0 : i32
    %c0_i32_1 = arith.constant 0 : i32
    return %c0_i32, %c0_i32_0 : i32, i32
  }
  func.func @transform_7(%arg0: i32) -> (i32, i32) {
    %c0_i32 = arith.constant 0 : i32
    %c0_i32_0 = arith.constant 0 : i32
    %c0_i32_1 = arith.constant 0 : i32
    return %c0_i32, %c0_i32_0 : i32, i32
  }
  func.func @transform_8(%arg0: i32) -> (i32, i32, i32) {
    %c0_i32 = arith.constant 0 : i32
    %c0_i32_0 = arith.constant 0 : i32
    %c0_i32_1 = arith.constant 0 : i32
    %c0_i32_2 = arith.constant 0 : i32
    return %c0_i32, %c0_i32_0, %c0_i32_1 : i32, i32, i32
  }
  func.func @transform_9(%arg0: i32) -> (i32, i32, i32) {
    %c0_i32 = arith.constant 0 : i32
    %c0_i32_0 = arith.constant 0 : i32
    %c0_i32_1 = arith.constant 0 : i32
    %c0_i32_2 = arith.constant 0 : i32
    return %c0_i32, %c0_i32_0, %c0_i32_1 : i32, i32, i32
  }
  func.func @transform_10(%arg0: i32) -> (i32, i32, i32) {
    %c0_i32 = arith.constant 0 : i32
    %c0_i32_0 = arith.constant 0 : i32
    %c0_i32_1 = arith.constant 0 : i32
    %c0_i32_2 = arith.constant 0 : i32
    return %c0_i32, %c0_i32_0, %c0_i32_1 : i32, i32, i32
  }
  func.func @transform_11(%arg0: i32) -> (i32, i32, i32) {
    %c0_i32 = arith.constant 0 : i32
    %c0_i32_0 = arith.constant 0 : i32
    %c0_i32_1 = arith.constant 0 : i32
    %c0_i32_2 = arith.constant 0 : i32
    return %c0_i32, %c0_i32_0, %c0_i32_1 : i32, i32, i32
  }
  func.func @transform_12(%arg0: i32) -> (i32, i32, i32) {
    %c0_i32 = arith.constant 0 : i32
    %c0_i32_0 = arith.constant 0 : i32
    %c0_i32_1 = arith.constant 0 : i32
    return %arg0, %c0_i32, %c0_i32_0 : i32, i32, i32
  }
}

</mosaic_0001>

<llo_original>
// kernel: stacked_attention_forward.2
$region0: #{stacked_attention_forward.2}
  #allocation0 [shape = 'u32[]', space=smem, size = 0x4, offset = 0x4, fixed_abs, tag = 'smem constant byte address 0x4 - core index']
  #allocation1 [shape = 'u32[72,128]{1,0:T(1,128)}', space=vmem, size = 0x9000, scoped, tag = 'internal scratch']
  %s0 = inlined_call_operand.vmem [shape: f32[8,16], index: 0, kind: input, shape index: {}]
  %s1 = inlined_call_operand.vmem [shape: s32[2,1], index: 1, kind: input, shape index: {}]
  %s2 = inlined_call_operand.hbm [shape: f32[16,384], index: 2, kind: input, shape index: {}]
  %s3 = inlined_call_operand.hbm [shape: f32[128,384], index: 3, kind: input, shape index: {}]
  %s4 = inlined_call_operand.vmem [shape: f32[1,384], index: 4, kind: input, shape index: {}]
  %s5 = inlined_call_operand.vmem [shape: f32[1,384], index: 5, kind: input, shape index: {}]
  %s6 = inlined_call_operand.vmem [shape: f32[2,32], index: 6, kind: output, shape index: {}]
  %s7 = sld [smem:[#allocation0]]
  $region42: #{stacked_attention_forward.2} parent=0
    _
  %s9 = ssub.s32 1, %s7
  %s10 = scalar_select 0, %s9, %s7
  $region1: #{stacked_attention_forward.2} parent=0
    #allocation2 [shape = 'u8[24576]{0}', space=vmem, size = 0x6000, scoped, tag = 'input window, operand 2, single buffered']
    #allocation3 [shape = 's32[1]{0}', space=sflag, size = 0x4, scoped, tag = 'scoped memory for stacked_attention_forward.2']
    #allocation4 [shape = 'u8[196608]{0}', space=vmem, size = 0x30000, scoped, tag = 'input window, operand 3, single buffered']
    #allocation5 [shape = 's32[1]{0}', space=sflag, size = 0x4, scoped, tag = 'scoped memory for stacked_attention_forward.2']
    %11 = vsyncpa [#allocation3], 0
    %12 = vsyncpa [#allocation5], 0
    // Predicated region
    $region2: #{stacked_attention_forward.2} parent=1 // pred_check
      _
    $region3: #{stacked_attention_forward.2} parent=1 // pred_check_branch
      %14 = sbr.rel (0) target = $region5
    $region4: #{stacked_attention_forward.2} parent=1 // pred_region
      _
    $region5: #{stacked_attention_forward.2} parent=1 // pred_fallthru
      _
    // Predicated region
    $region6: #{stacked_attention_forward.2} parent=1 // pred_check
      _
    $region7: #{stacked_attention_forward.2} parent=1 // pred_check_branch
      %16 = sbr.rel (0) target = $region9
    $region8: #{stacked_attention_forward.2} parent=1 // pred_region
      _
    $region9: #{stacked_attention_forward.2} parent=1 // pred_fallthru
      _
    // Predicated region
    $region10: #{stacked_attention_forward.2} parent=1 // pred_check
      _
    $region11: #{stacked_attention_forward.2} parent=1 // pred_check_branch
      %18 = sbr.rel (0) target = $region13
    $region12: #{stacked_attention_forward.2} parent=1 // pred_region
      %20 = vsyncadd [#allocation3], 0
      %s21 = sshll.u32 %s2, 4
      %s22 = int_to_ptr.hbm [resolvable:$true] %s21
      %s23 = sshll.u32 [#allocation2], 4
      %s24 = int_to_ptr.vmem [resolvable:$true] %s23
      %29 = dma.hbm_to_vmem [thread:$0]  %s22, 768, %s24, [#allocation3], 384, 384, 24
    $region13: #{stacked_attention_forward.2} parent=1 // pred_fallthru
      _
    // Predicated region
    $region14: #{stacked_attention_forward.2} parent=1 // pred_check
      _
    $region15: #{stacked_attention_forward.2} parent=1 // pred_check_branch
      %31 = sbr.rel (0) target = $region17
    $region16: #{stacked_attention_forward.2} parent=1 // pred_region
      %33 = vsyncadd [#allocation5], 0
      %s34 = sshll.u32 %s3, 4
      %s35 = int_to_ptr.hbm [resolvable:$true] %s34
      %s36 = sshll.u32 [#allocation4], 4
      %s37 = int_to_ptr.vmem [resolvable:$true] %s36
      %42 = dma.hbm_to_vmem [thread:$0]  %s35, 6144, %s37, [#allocation5], 384, 384, 24
    $region17: #{stacked_attention_forward.2} parent=1 // pred_fallthru
      _
    // Predicated region
    $region18: #{stacked_attention_forward.2} parent=1 // pred_check
      _
    $region19: #{stacked_attention_forward.2} parent=1 // pred_check_branch
      %44 = sbr.rel (0) target = $region21
    $region20: #{stacked_attention_forward.2} parent=1 // pred_region
      _
    $region21: #{stacked_attention_forward.2} parent=1 // pred_fallthru
      _
    // Predicated region
    $region22: #{stacked_attention_forward.2} parent=1 // pred_check
      _
    $region23: #{stacked_attention_forward.2} parent=1 // pred_check_branch
      %46 = sbr.rel (0) target = $region25
    $region24: #{stacked_attention_forward.2} parent=1 // pred_region
      _
    $region25: #{stacked_attention_forward.2} parent=1 // pred_fallthru
      _
    // Predicated region
    $region26: #{stacked_attention_forward.2} parent=1 // pred_check
      _
    $region27: #{stacked_attention_forward.2} parent=1 // pred_check_branch
      %48 = sbr.rel (0) target = $region29
    $region28: #{stacked_attention_forward.2} parent=1 // pred_region
      %50 = dma.done [#allocation3], 768
    $region29: #{stacked_attention_forward.2} parent=1 // pred_fallthru
      _
    // Predicated region
    $region30: #{stacked_attention_forward.2} parent=1 // pred_check
      _
    $region31: #{stacked_attention_forward.2} parent=1 // pred_check_branch
      %52 = sbr.rel (0) target = $region33
    $region32: #{stacked_attention_forward.2} parent=1 // pred_region
      %54 = dma.done [#allocation5], 6144
    $region33: #{stacked_attention_forward.2} parent=1 // pred_fallthru
      _
    %v55 = vld [vmem:[%s0] sm:$0xff]
    %v56 = vld [vmem:[#allocation2] sm:$0xff]
    %v57 = vld [vmem:[#allocation2 + $0x8] sm:$0xff]
    %v58 = vld [vmem:[#allocation2 + $0x10] sm:$0xff]
    %v59 = vld [vmem:[#allocation2 + $0x18] sm:$0xff]
    %v60 = vld [vmem:[#allocation2 + $0x20] sm:$0xff]
    %v61 = vld [vmem:[#allocation2 + $0x28] sm:$0xff]
    %v62 = vld [vmem:[%s4] sm:$0x7]
    %v64 = vperm.slane %v62, 0
    %v65 = vperm.slane %v62, 1
    %v66 = vperm.slane %v62, 2
    %vm70 = vcmask 130048
    %v72 = vsel %vm70, %v55, 0
    %74 = vmatpush.msra.mxu0 0.0
    %75 = vmatpush.msra.mxu0 0.0
    %76 = vmatpush.msra.mxu0 0.0
    %77 = vmatpush.msra.mxu0 0.0
    %78 = vmatpush.msra.mxu0 0.0
    %79 = vmatpush.msra.mxu0 0.0
    %80 = vmatpush.msra.mxu0 0.0
    %81 = vmatpush.msra.mxu0 0.0
    %82 = vmatpush.msra.mxu0 0.0
    %83 = vmatpush.msra.mxu0 0.0
    %84 = vmatpush.msra.mxu0 0.0
    %85 = vmatpush.msra.mxu0 0.0
    %86 = vmatpush.msra.mxu0 0.0
    %87 = vmatpush.msra.mxu0 0.0
    %88 = vmatpush.msra.mxu0 %v59
    %89 = vmatpush.msra.mxu0 %v56
    %90 = vmatmul.f32.gmra.mxu0 %v72
    %v91 = vpop.f32.mrf.mxu0
    %v92 = vadd.f32 %v64, %v91
    %93 = vdwg.mxu0
    %94 = vmatpush.msra.mxu0 0.0
    %95 = vmatpush.msra.mxu0 0.0
    %96 = vmatpush.msra.mxu0 0.0
    %97 = vmatpush.msra.mxu0 0.0
    %98 = vmatpush.msra.mxu0 0.0
    %99 = vmatpush.msra.mxu0 0.0
    %100 = vmatpush.msra.mxu0 0.0
    %101 = vmatpush.msra.mxu0 0.0
    %102 = vmatpush.msra.mxu0 0.0
    %103 = vmatpush.msra.mxu0 0.0
    %104 = vmatpush.msra.mxu0 0.0
    %105 = vmatpush.msra.mxu0 0.0
    %106 = vmatpush.msra.mxu0 0.0
    %107 = vmatpush.msra.mxu0 0.0
    %108 = vmatpush.msra.mxu0 %v60
    %109 = vmatpush.msra.mxu0 %v57
    %110 = vmatmul.f32.gmra.mxu0 %v72
    %v111 = vpop.f32.mrf.mxu0
    %v112 = vadd.f32 %v65, %v111
    %113 = vdwg.mxu0
    %114 = vmatpush.msra.mxu0 0.0
    %115 = vmatpush.msra.mxu0 0.0
    %116 = vmatpush.msra.mxu0 0.0
    %117 = vmatpush.msra.mxu0 0.0
    %118 = vmatpush.msra.mxu0 0.0
    %119 = vmatpush.msra.mxu0 0.0
    %120 = vmatpush.msra.mxu0 0.0
    %121 = vmatpush.msra.mxu0 0.0
    %122 = vmatpush.msra.mxu0 0.0
    %123 = vmatpush.msra.mxu0 0.0
    %124 = vmatpush.msra.mxu0 0.0
    %125 = vmatpush.msra.mxu0 0.0
    %126 = vmatpush.msra.mxu0 0.0
    %127 = vmatpush.msra.mxu0 0.0
    %128 = vmatpush.msra.mxu0 %v61
    %129 = vmatpush.msra.mxu0 %v58
    %130 = vmatmul.f32.gmra.mxu0 %v72
    %v131 = vpop.f32.mrf.mxu0
    %v132 = vadd.f32 %v66, %v131
    %133 = vdwg.mxu0
    %v134 = vld [vmem:[%s5] sm:$0x7]
    %v135 = vld [vmem:[%s1] sm:$0x3]
    %v136 = vld [vmem:[#allocation4] sm:$0xff]
    %v137 = vld [vmem:[#allocation4 + $0x8] sm:$0xff]
    %v138 = vld [vmem:[#allocation4 + $0x10] sm:$0xff]
    %v139 = vld [vmem:[#allocation4 + $0x18] sm:$0xff]
    %v140 = vld [vmem:[#allocation4 + $0x20] sm:$0xff]
    %v141 = vld [vmem:[#allocation4 + $0x28] sm:$0xff]
    %v142 = vld [vmem:[#allocation4 + $0x30] sm:$0xff]
    %v143 = vld [vmem:[#allocation4 + $0x38] sm:$0xff]
    %v144 = vld [vmem:[#allocation4 + $0x40] sm:$0xff]
    %v145 = vld [vmem:[#allocation4 + $0x48] sm:$0xff]
    %v146 = vld [vmem:[#allocation4 + $0x50] sm:$0xff]
    %v147 = vld [vmem:[#allocation4 + $0x58] sm:$0xff]
    %v148 = vld [vmem:[#allocation4 + $0x60] sm:$0xff]
    %v149 = vld [vmem:[#allocation4 + $0x68] sm:$0xff]
    %v150 = vld [vmem:[#allocation4 + $0x70] sm:$0xff]
    %v151 = vld [vmem:[#allocation4 + $0x78] sm:$0xff]
    %v152 = vld [vmem:[#allocation4 + $0x80] sm:$0xff]
    %v153 = vld [vmem:[#allocation4 + $0x88] sm:$0xff]
    %v154 = vld [vmem:[#allocation4 + $0x90] sm:$0xff]
    %v155 = vld [vmem:[#allocation4 + $0x98] sm:$0xff]
    %v156 = vld [vmem:[#allocation4 + $0xa0] sm:$0xff]
    %v157 = vld [vmem:[#allocation4 + $0xa8] sm:$0xff]
    %v158 = vld [vmem:[#allocation4 + $0xb0] sm:$0xff]
    %v159 = vld [vmem:[#allocation4 + $0xb8] sm:$0xff]
    %v160 = vld [vmem:[#allocation4 + $0xc0] sm:$0xff]
    %v161 = vld [vmem:[#allocation4 + $0xc8] sm:$0xff]
    %v162 = vld [vmem:[#allocation4 + $0xd0] sm:$0xff]
    %v163 = vld [vmem:[#allocation4 + $0xd8] sm:$0xff]
    %v164 = vld [vmem:[#allocation4 + $0xe0] sm:$0xff]
    %v165 = vld [vmem:[#allocation4 + $0xe8] sm:$0xff]
    %v166 = vld [vmem:[#allocation4 + $0xf0] sm:$0xff]
    %v167 = vld [vmem:[#allocation4 + $0xf8] sm:$0xff]
    %v168 = vld [vmem:[#allocation4 + $0x100] sm:$0xff]
    %v169 = vld [vmem:[#allocation4 + $0x108] sm:$0xff]
    %v170 = vld [vmem:[#allocation4 + $0x110] sm:$0xff]
    %v171 = vld [vmem:[#allocation4 + $0x118] sm:$0xff]
    %v172 = vld [vmem:[#allocation4 + $0x120] sm:$0xff]
    %v173 = vld [vmem:[#allocation4 + $0x128] sm:$0xff]
    %v174 = vld [vmem:[#allocation4 + $0x130] sm:$0xff]
    %v175 = vld [vmem:[#allocation4 + $0x138] sm:$0xff]
    %v176 = vld [vmem:[#allocation4 + $0x140] sm:$0xff]
    %v177 = vld [vmem:[#allocation4 + $0x148] sm:$0xff]
    %v178 = vld [vmem:[#allocation4 + $0x150] sm:$0xff]
    %v179 = vld [vmem:[#allocation4 + $0x158] sm:$0xff]
    %v180 = vld [vmem:[#allocation4 + $0x160] sm:$0xff]
    %v181 = vld [vmem:[#allocation4 + $0x168] sm:$0xff]
    %v182 = vld [vmem:[#allocation4 + $0x170] sm:$0xff]
    %v183 = vld [vmem:[#allocation4 + $0x178] sm:$0xff]
    %v185 = vperm.slane %v134, 0
    %v186 = vperm.slane %v134, 1
    %v187 = vperm.slane %v134, 2
    %191 = vmatpush.msra.mxu0 %v181
    %192 = vmatpush.msra.mxu0 %v178
    %193 = vmatpush.msra.mxu0 %v175
    %194 = vmatpush.msra.mxu0 %v172
    %195 = vmatpush.msra.mxu0 %v169
    %196 = vmatpush.msra.mxu0 %v166
    %197 = vmatpush.msra.mxu0 %v163
    %198 = vmatpush.msra.mxu0 %v160
    %199 = vmatpush.msra.mxu0 %v157
    %200 = vmatpush.msra.mxu0 %v154
    %201 = vmatpush.msra.mxu0 %v151
    %202 = vmatpush.msra.mxu0 %v148
    %203 = vmatpush.msra.mxu0 %v145
    %204 = vmatpush.msra.mxu0 %v142
    %205 = vmatpush.msra.mxu0 %v139
    %206 = vmatpush.msra.mxu0 %v136
    %207 = vmatmul.f32.gmra.mxu0 0.0
    %v208 = vpop.f32.mrf.mxu0
    %v209 = vadd.f32 %v185, %v208
    %210 = vdwg.mxu0
    %211 = vmatpush.msra.mxu0 %v182
    %212 = vmatpush.msra.mxu0 %v179
    %213 = vmatpush.msra.mxu0 %v176
    %214 = vmatpush.msra.mxu0 %v173
    %215 = vmatpush.msra.mxu0 %v170
    %216 = vmatpush.msra.mxu0 %v167
    %217 = vmatpush.msra.mxu0 %v164
    %218 = vmatpush.msra.mxu0 %v161
    %219 = vmatpush.msra.mxu0 %v158
    %220 = vmatpush.msra.mxu0 %v155
    %221 = vmatpush.msra.mxu0 %v152
    %222 = vmatpush.msra.mxu0 %v149
    %223 = vmatpush.msra.mxu0 %v146
    %224 = vmatpush.msra.mxu0 %v143
    %225 = vmatpush.msra.mxu0 %v140
    %226 = vmatpush.msra.mxu0 %v137
    %227 = vmatmul.f32.gmra.mxu0 0.0
    %v228 = vpop.f32.mrf.mxu0
    %v229 = vadd.f32 %v186, %v228
    %230 = vdwg.mxu0
    %231 = vmatpush.msra.mxu0 %v183
    %232 = vmatpush.msra.mxu0 %v180
    %233 = vmatpush.msra.mxu0 %v177
    %234 = vmatpush.msra.mxu0 %v174
    %235 = vmatpush.msra.mxu0 %v171
    %236 = vmatpush.msra.mxu0 %v168
    %237 = vmatpush.msra.mxu0 %v165
    %238 = vmatpush.msra.mxu0 %v162
    %239 = vmatpush.msra.mxu0 %v159
    %240 = vmatpush.msra.mxu0 %v156
    %241 = vmatpush.msra.mxu0 %v153
    %242 = vmatpush.msra.mxu0 %v150
    %243 = vmatpush.msra.mxu0 %v147
    %244 = vmatpush.msra.mxu0 %v144
    %245 = vmatpush.msra.mxu0 %v141
    %246 = vmatpush.msra.mxu0 %v138
    %247 = vmatmul.f32.gmra.mxu0 0.0
    %v248 = vpop.f32.mrf.mxu0
    %v249 = vadd.f32 %v187, %v248
    %250 = vdwg.mxu0
    %v251 = vadd.f32 %v92, %v209
    %v252 = vxor.u32 %v251, 2147483648
    %v253 = vmul.f32 %v252, 1.442695
    %v254 = vpow.pop %v253
    %v255 = vadd.f32 %v254, 1.0
    %v256 = vrcp.pop %v255
    %v257 = vmul.f32 %v255, %v256
    %v258 = vsub.f32 1.0, %v257
    %v259 = vmul.f32 %v256, %v258
    %v260 = vadd.f32 %v256, %v259
    %vm261 = vweird.f32 %v255
    %vm262 = vweird.f32 %v256
    %vm263 = vmor %vm261, %vm262
    %v264 = vsel %vm263, %v256, %v260
    %v265 = vand.u32 2147483647, %v255
    %vm266 = vcmp.eq.f32.partialorder %v265, 8.507059e+37
    %v267 = vand.u32 %v255, 2147483648
    %v268 = vor.u32 1.1754944e-38, %v267
    %v269 = vsel %vm266, %v268, %v264
    %v270 = vmul.f32 1.0, %v269
    %v271 = vadd.f32 %v112, %v229
    %v272 = vxor.u32 %v271, 2147483648
    %v273 = vmul.f32 %v272, 1.442695
    %v274 = vpow.pop %v273
    %v275 = vadd.f32 %v274, 1.0
    %v276 = vrcp.pop %v275
    %v277 = vmul.f32 %v275, %v276
    %v278 = vsub.f32 1.0, %v277
    %v279 = vmul.f32 %v276, %v278
    %v280 = vadd.f32 %v276, %v279
    %vm281 = vweird.f32 %v275
    %vm282 = vweird.f32 %v276
    %vm283 = vmor %vm281, %vm282
    %v284 = vsel %vm283, %v276, %v280
    %v285 = vand.u32 2147483647, %v275
    %vm286 = vcmp.eq.f32.partialorder %v285, 8.507059e+37
    %v287 = vand.u32 %v275, 2147483648
    %v288 = vor.u32 1.1754944e-38, %v287
    %v289 = vsel %vm286, %v288, %v284
    %v290 = vmul.f32 1.0, %v289
    %v291 = vmul.f32 %v270, %v249
    %v292 = vadd.f32 %v132, %v291
    %v293 = vtanh.pop %v292
    %v294 = vsub.f32 1.0, %v290
    %v295 = vmul.f32 %v294, %v293
    %v296 = vmul.f32 %v290, 0.0
    %v297 = vadd.f32 %v295, %v296
    %v298 = vsub.s32 %v135, 1
    %vm299 = vcmp.eq.s32.totalorder %v298, 0
    %vm300 = vcmp.gt.s32.totalorder %v135, 0
    %v301 = vsel %vm300, 1, 0
    %v302 = vperm.slane %v301, 0
    %vm303 = vcmp.eq.s32.totalorder %v302, 1
    %vm304 = vmand %vm299, %vm303
    %v305 = vsel %vm304, 1, 0
    %v306 = vcvt.s32.f32 %v305
    %308 = vset.pattern.permute.xlu0 0
    %309 = vperm.xlu0 %308, %v306
    %v310 = vpop.permute.xlu0 %309
    %v312 = vperm.slane %v297, 0
    %v313 = vmul.f32 %v310, %v312
    %v314 = vadd.f32 %v313, 0.0
    %315 = vmatpush.msra.mxu0 %v181
    %316 = vmatpush.msra.mxu0 %v178
    %317 = vmatpush.msra.mxu0 %v175
    %318 = vmatpush.msra.mxu0 %v172
    %319 = vmatpush.msra.mxu0 %v169
    %320 = vmatpush.msra.mxu0 %v166
    %321 = vmatpush.msra.mxu0 %v163
    %322 = vmatpush.msra.mxu0 %v160
    %323 = vmatpush.msra.mxu0 %v157
    %324 = vmatpush.msra.mxu0 %v154
    %325 = vmatpush.msra.mxu0 %v151
    %326 = vmatpush.msra.mxu0 %v148
    %327 = vmatpush.msra.mxu0 %v145
    %328 = vmatpush.msra.mxu0 %v142
    %329 = vmatpush.msra.mxu0 %v139
    %330 = vmatpush.msra.mxu0 %v136
    %331 = vmatmul.f32.gmra.mxu0 %v297
    %v332 = vpop.f32.mrf.mxu0
    %v333 = vadd.f32 %v185, %v332
    %334 = vdwg.mxu0
    %335 = vmatpush.msra.mxu0 %v182
    %336 = vmatpush.msra.mxu0 %v179
    %337 = vmatpush.msra.mxu0 %v176
    %338 = vmatpush.msra.mxu0 %v173
    %339 = vmatpush.msra.mxu0 %v170
    %340 = vmatpush.msra.mxu0 %v167
    %341 = vmatpush.msra.mxu0 %v164
    %342 = vmatpush.msra.mxu0 %v161
    %343 = vmatpush.msra.mxu0 %v158
    %344 = vmatpush.msra.mxu0 %v155
    %345 = vmatpush.msra.mxu0 %v152
    %346 = vmatpush.msra.mxu0 %v149
    %347 = vmatpush.msra.mxu0 %v146
    %348 = vmatpush.msra.mxu0 %v143
    %349 = vmatpush.msra.mxu0 %v140
    %350 = vmatpush.msra.mxu0 %v137
    %351 = vmatmul.f32.gmra.mxu0 %v297
    %v352 = vpop.f32.mrf.mxu0
    %v353 = vadd.f32 %v186, %v352
    %354 = vdwg.mxu0
    %355 = vmatpush.msra.mxu0 %v183
    %356 = vmatpush.msra.mxu0 %v180
    %357 = vmatpush.msra.mxu0 %v177
    %358 = vmatpush.msra.mxu0 %v174
    %359 = vmatpush.msra.mxu0 %v171
    %360 = vmatpush.msra.mxu0 %v168
    %361 = vmatpush.msra.mxu0 %v165
    %362 = vmatpush.msra.mxu0 %v162
    %363 = vmatpush.msra.mxu0 %v159
    %364 = vmatpush.msra.mxu0 %v156
    %365 = vmatpush.msra.mxu0 %v153
    %366 = vmatpush.msra.mxu0 %v150
    %367 = vmatpush.msra.mxu0 %v147
    %368 = vmatpush.msra.mxu0 %v144
    %369 = vmatpush.msra.mxu0 %v141
    %370 = vmatpush.msra.mxu0 %v138
    %371 = vmatmul.f32.gmra.mxu0 %v297
    %v372 = vpop.f32.mrf.mxu0
    %v373 = vadd.f32 %v187, %v372
    %374 = vdwg.mxu0
    %v376 = vrot.slane %v333, 7
    %v378 = vadd.f32 %v92, %v376
    %v379 = vxor.u32 %v378, 2147483648
    %v380 = vmul.f32 %v379, 1.442695
    %v381 = vpow.pop %v380
    %v382 = vadd.f32 %v381, 1.0
    %v383 = vrcp.pop %v382
    %v384 = vmul.f32 %v382, %v383
    %v385 = vsub.f32 1.0, %v384
    %v386 = vmul.f32 %v383, %v385
    %v387 = vadd.f32 %v383, %v386
    %vm388 = vweird.f32 %v382
    %vm389 = vweird.f32 %v383
    %vm390 = vmor %vm388, %vm389
    %v391 = vsel %vm390, %v383, %v387
    %v392 = vand.u32 2147483647, %v382
    %vm393 = vcmp.eq.f32.partialorder %v392, 8.507059e+37
    %v394 = vand.u32 %v382, 2147483648
    %v395 = vor.u32 1.1754944e-38, %v394
    %v396 = vsel %vm393, %v395, %v391
    %v397 = vmul.f32 1.0, %v396
    %v399 = vrot.slane %v353, 7
    %v401 = vadd.f32 %v112, %v399
    %v402 = vxor.u32 %v401, 2147483648
    %v403 = vmul.f32 %v402, 1.442695
    %v404 = vpow.pop %v403
    %v405 = vadd.f32 %v404, 1.0
    %v406 = vrcp.pop %v405
    %v407 = vmul.f32 %v405, %v406
    %v408 = vsub.f32 1.0, %v407
    %v409 = vmul.f32 %v406, %v408
    %v410 = vadd.f32 %v406, %v409
    %vm411 = vweird.f32 %v405
    %vm412 = vweird.f32 %v406
    %vm413 = vmor %vm411, %vm412
    %v414 = vsel %vm413, %v406, %v410
    %v415 = vand.u32 2147483647, %v405
    %vm416 = vcmp.eq.f32.partialorder %v415, 8.507059e+37
    %v417 = vand.u32 %v405, 2147483648
    %v418 = vor.u32 1.1754944e-38, %v417
    %v419 = vsel %vm416, %v418, %v414
    %v420 = vmul.f32 1.0, %v419
    %v422 = vrot.slane %v373, 7
    %v424 = vmul.f32 %v397, %v422
    %v425 = vadd.f32 %v132, %v424
    %v426 = vtanh.pop %v425
    %v427 = vsub.f32 1.0, %v420
    %v428 = vmul.f32 %v427, %v426
    %v430 = vrot.slane %v297, 7
    %v432 = vmul.f32 %v420, %v430
    %v433 = vadd.f32 %v428, %v432
    %vm434 = vcmp.eq.s32.totalorder %v298, 1
    %vm435 = vcmp.gt.s32.totalorder %v135, 1
    %v436 = vsel %vm435, 1, 0
    %v437 = vperm.slane %v436, 0
    %vm438 = vcmp.eq.s32.totalorder %v437, 1
    %vm439 = vmand %vm434, %vm438
    %v440 = vsel %vm439, 1, 0
    %v441 = vcvt.s32.f32 %v440
    %443 = vset.pattern.permute.xlu0 0
    %444 = vperm.xlu0 %443, %v441
    %v445 = vpop.permute.xlu0 %444
    %v447 = vperm.slane %v433, 1
    %v448 = vmul.f32 %v445, %v447
    %v449 = vadd.f32 %v314, %v448
    %v451 = vrot.slane %v433, 1
    %453 = vmatpush.msra.mxu0 %v181
    %454 = vmatpush.msra.mxu0 %v178
    %455 = vmatpush.msra.mxu0 %v175
    %456 = vmatpush.msra.mxu0 %v172
    %457 = vmatpush.msra.mxu0 %v169
    %458 = vmatpush.msra.mxu0 %v166
    %459 = vmatpush.msra.mxu0 %v163
    %460 = vmatpush.msra.mxu0 %v160
    %461 = vmatpush.msra.mxu0 %v157
    %462 = vmatpush.msra.mxu0 %v154
    %463 = vmatpush.msra.mxu0 %v151
    %464 = vmatpush.msra.mxu0 %v148
    %465 = vmatpush.msra.mxu0 %v145
    %466 = vmatpush.msra.mxu0 %v142
    %467 = vmatpush.msra.mxu0 %v139
    %468 = vmatpush.msra.mxu0 %v136
    %469 = vmatmul.f32.gmra.mxu0 %v451
    %v470 = vpop.f32.mrf.mxu0
    %v471 = vadd.f32 %v185, %v470
    %472 = vdwg.mxu0
    %473 = vmatpush.msra.mxu0 %v182
    %474 = vmatpush.msra.mxu0 %v179
    %475 = vmatpush.msra.mxu0 %v176
    %476 = vmatpush.msra.mxu0 %v173
    %477 = vmatpush.msra.mxu0 %v170
    %478 = vmatpush.msra.mxu0 %v167
    %479 = vmatpush.msra.mxu0 %v164
    %480 = vmatpush.msra.mxu0 %v161
    %481 = vmatpush.msra.mxu0 %v158
    %482 = vmatpush.msra.mxu0 %v155
    %483 = vmatpush.msra.mxu0 %v152
    %484 = vmatpush.msra.mxu0 %v149
    %485 = vmatpush.msra.mxu0 %v146
    %486 = vmatpush.msra.mxu0 %v143
    %487 = vmatpush.msra.mxu0 %v140
    %488 = vmatpush.msra.mxu0 %v137
    %489 = vmatmul.f32.gmra.mxu0 %v451
    %v490 = vpop.f32.mrf.mxu0
    %v491 = vadd.f32 %v186, %v490
    %492 = vdwg.mxu0
    %493 = vmatpush.msra.mxu0 %v183
    %494 = vmatpush.msra.mxu0 %v180
    %495 = vmatpush.msra.mxu0 %v177
    %496 = vmatpush.msra.mxu0 %v174
    %497 = vmatpush.msra.mxu0 %v171
    %498 = vmatpush.msra.mxu0 %v168
    %499 = vmatpush.msra.mxu0 %v165
    %500 = vmatpush.msra.mxu0 %v162
    %501 = vmatpush.msra.mxu0 %v159
    %502 = vmatpush.msra.mxu0 %v156
    %503 = vmatpush.msra.mxu0 %v153
    %504 = vmatpush.msra.mxu0 %v150
    %505 = vmatpush.msra.mxu0 %v147
    %506 = vmatpush.msra.mxu0 %v144
    %507 = vmatpush.msra.mxu0 %v141
    %508 = vmatpush.msra.mxu0 %v138
    %509 = vmatmul.f32.gmra.mxu0 %v451
    %v510 = vpop.f32.mrf.mxu0
    %v511 = vadd.f32 %v187, %v510
    %512 = vdwg.mxu0
    %v514 = vrot.slane %v471, 6
    %v516 = vadd.f32 %v92, %v514
    %v517 = vxor.u32 %v516, 2147483648
    %v518 = vmul.f32 %v517, 1.442695
    %v519 = vpow.pop %v518
    %v520 = vadd.f32 %v519, 1.0
    %v521 = vrcp.pop %v520
    %v522 = vmul.f32 %v520, %v521
    %v523 = vsub.f32 1.0, %v522
    %v524 = vmul.f32 %v521, %v523
    %v525 = vadd.f32 %v521, %v524
    %vm526 = vweird.f32 %v520
    %vm527 = vweird.f32 %v521
    %vm528 = vmor %vm526, %vm527
    %v529 = vsel %vm528, %v521, %v525
    %v530 = vand.u32 2147483647, %v520
    %vm531 = vcmp.eq.f32.partialorder %v530, 8.507059e+37
    %v532 = vand.u32 %v520, 2147483648
    %v533 = vor.u32 1.1754944e-38, %v532
    %v534 = vsel %vm531, %v533, %v529
    %v535 = vmul.f32 1.0, %v534
    %v537 = vrot.slane %v491, 6
    %v539 = vadd.f32 %v112, %v537
    %v540 = vxor.u32 %v539, 2147483648
    %v541 = vmul.f32 %v540, 1.442695
    %v542 = vpow.pop %v541
    %v543 = vadd.f32 %v542, 1.0
    %v544 = vrcp.pop %v543
    %v545 = vmul.f32 %v543, %v544
    %v546 = vsub.f32 1.0, %v545
    %v547 = vmul.f32 %v544, %v546
    %v548 = vadd.f32 %v544, %v547
    %vm549 = vweird.f32 %v543
    %vm550 = vweird.f32 %v544
    %vm551 = vmor %vm549, %vm550
    %v552 = vsel %vm551, %v544, %v548
    %v553 = vand.u32 2147483647, %v543
    %vm554 = vcmp.eq.f32.partialorder %v553, 8.507059e+37
    %v555 = vand.u32 %v543, 2147483648
    %v556 = vor.u32 1.1754944e-38, %v555
    %v557 = vsel %vm554, %v556, %v552
    %v558 = vmul.f32 1.0, %v557
    %v560 = vrot.slane %v511, 6
    %v562 = vmul.f32 %v535, %v560
    %v563 = vadd.f32 %v132, %v562
    %v564 = vtanh.pop %v563
    %v565 = vsub.f32 1.0, %v558
    %v566 = vmul.f32 %v565, %v564
    %v567 = vrot.slane %v433, 7
    %v569 = vmul.f32 %v558, %v567
    %v570 = vadd.f32 %v566, %v569
    %vm571 = vcmp.eq.s32.totalorder %v298, 2
    %vm572 = vcmp.gt.s32.totalorder %v135, 2
    %v573 = vsel %vm572, 1, 0
    %v574 = vperm.slane %v573, 0
    %vm575 = vcmp.eq.s32.totalorder %v574, 1
    %vm576 = vmand %vm571, %vm575
    %v577 = vsel %vm576, 1, 0
    %v578 = vcvt.s32.f32 %v577
    %580 = vset.pattern.permute.xlu0 0
    %581 = vperm.xlu0 %580, %v578
    %v582 = vpop.permute.xlu0 %581
    %v584 = vperm.slane %v570, 2
    %v585 = vmul.f32 %v582, %v584
    %v586 = vadd.f32 %v449, %v585
    %v588 = vrot.slane %v570, 2
    %590 = vmatpush.msra.mxu0 %v181
    %591 = vmatpush.msra.mxu0 %v178
    %592 = vmatpush.msra.mxu0 %v175
    %593 = vmatpush.msra.mxu0 %v172
    %594 = vmatpush.msra.mxu0 %v169
    %595 = vmatpush.msra.mxu0 %v166
    %596 = vmatpush.msra.mxu0 %v163
    %597 = vmatpush.msra.mxu0 %v160
    %598 = vmatpush.msra.mxu0 %v157
    %599 = vmatpush.msra.mxu0 %v154
    %600 = vmatpush.msra.mxu0 %v151
    %601 = vmatpush.msra.mxu0 %v148
    %602 = vmatpush.msra.mxu0 %v145
    %603 = vmatpush.msra.mxu0 %v142
    %604 = vmatpush.msra.mxu0 %v139
    %605 = vmatpush.msra.mxu0 %v136
    %606 = vmatmul.f32.gmra.mxu0 %v588
    %v607 = vpop.f32.mrf.mxu0
    %v608 = vadd.f32 %v185, %v607
    %609 = vdwg.mxu0
    %610 = vmatpush.msra.mxu0 %v182
    %611 = vmatpush.msra.mxu0 %v179
    %612 = vmatpush.msra.mxu0 %v176
    %613 = vmatpush.msra.mxu0 %v173
    %614 = vmatpush.msra.mxu0 %v170
    %615 = vmatpush.msra.mxu0 %v167
    %616 = vmatpush.msra.mxu0 %v164
    %617 = vmatpush.msra.mxu0 %v161
    %618 = vmatpush.msra.mxu0 %v158
    %619 = vmatpush.msra.mxu0 %v155
    %620 = vmatpush.msra.mxu0 %v152
    %621 = vmatpush.msra.mxu0 %v149
    %622 = vmatpush.msra.mxu0 %v146
    %623 = vmatpush.msra.mxu0 %v143
    %624 = vmatpush.msra.mxu0 %v140
    %625 = vmatpush.msra.mxu0 %v137
    %626 = vmatmul.f32.gmra.mxu0 %v588
    %v627 = vpop.f32.mrf.mxu0
    %v628 = vadd.f32 %v186, %v627
    %629 = vdwg.mxu0
    %630 = vmatpush.msra.mxu0 %v183
    %631 = vmatpush.msra.mxu0 %v180
    %632 = vmatpush.msra.mxu0 %v177
    %633 = vmatpush.msra.mxu0 %v174
    %634 = vmatpush.msra.mxu0 %v171
    %635 = vmatpush.msra.mxu0 %v168
    %636 = vmatpush.msra.mxu0 %v165
    %637 = vmatpush.msra.mxu0 %v162
    %638 = vmatpush.msra.mxu0 %v159
    %639 = vmatpush.msra.mxu0 %v156
    %640 = vmatpush.msra.mxu0 %v153
    %641 = vmatpush.msra.mxu0 %v150
    %642 = vmatpush.msra.mxu0 %v147
    %643 = vmatpush.msra.mxu0 %v144
    %644 = vmatpush.msra.mxu0 %v141
    %645 = vmatpush.msra.mxu0 %v138
    %646 = vmatmul.f32.gmra.mxu0 %v588
    %v647 = vpop.f32.mrf.mxu0
    %v648 = vadd.f32 %v187, %v647
    %649 = vdwg.mxu0
    %v651 = vrot.slane %v608, 5
    %v653 = vadd.f32 %v92, %v651
    %v654 = vxor.u32 %v653, 2147483648
    %v655 = vmul.f32 %v654, 1.442695
    %v656 = vpow.pop %v655
    %v657 = vadd.f32 %v656, 1.0
    %v658 = vrcp.pop %v657
    %v659 = vmul.f32 %v657, %v658
    %v660 = vsub.f32 1.0, %v659
    %v661 = vmul.f32 %v658, %v660
    %v662 = vadd.f32 %v658, %v661
    %vm663 = vweird.f32 %v657
    %vm664 = vweird.f32 %v658
    %vm665 = vmor %vm663, %vm664
    %v666 = vsel %vm665, %v658, %v662
    %v667 = vand.u32 2147483647, %v657
    %vm668 = vcmp.eq.f32.partialorder %v667, 8.507059e+37
    %v669 = vand.u32 %v657, 2147483648
    %v670 = vor.u32 1.1754944e-38, %v669
    %v671 = vsel %vm668, %v670, %v666
    %v672 = vmul.f32 1.0, %v671
    %v674 = vrot.slane %v628, 5
    %v676 = vadd.f32 %v112, %v674
    %v677 = vxor.u32 %v676, 2147483648
    %v678 = vmul.f32 %v677, 1.442695
    %v679 = vpow.pop %v678
    %v680 = vadd.f32 %v679, 1.0
    %v681 = vrcp.pop %v680
    %v682 = vmul.f32 %v680, %v681
    %v683 = vsub.f32 1.0, %v682
    %v684 = vmul.f32 %v681, %v683
    %v685 = vadd.f32 %v681, %v684
    %vm686 = vweird.f32 %v680
    %vm687 = vweird.f32 %v681
    %vm688 = vmor %vm686, %vm687
    %v689 = vsel %vm688, %v681, %v685
    %v690 = vand.u32 2147483647, %v680
    %vm691 = vcmp.eq.f32.partialorder %v690, 8.507059e+37
    %v692 = vand.u32 %v680, 2147483648
    %v693 = vor.u32 1.1754944e-38, %v692
    %v694 = vsel %vm691, %v693, %v689
    %v695 = vmul.f32 1.0, %v694
    %v697 = vrot.slane %v648, 5
    %v699 = vmul.f32 %v672, %v697
    %v700 = vadd.f32 %v132, %v699
    %v701 = vtanh.pop %v700
    %v702 = vsub.f32 1.0, %v695
    %v703 = vmul.f32 %v702, %v701
    %v704 = vrot.slane %v570, 7
    %v706 = vmul.f32 %v695, %v704
    %v707 = vadd.f32 %v703, %v706
    %vm708 = vcmp.eq.s32.totalorder %v298, 3
    %vm709 = vcmp.gt.s32.totalorder %v135, 3
    %v710 = vsel %vm709, 1, 0
    %v711 = vperm.slane %v710, 0
    %vm712 = vcmp.eq.s32.totalorder %v711, 1
    %vm713 = vmand %vm708, %vm712
    %v714 = vsel %vm713, 1, 0
    %v715 = vcvt.s32.f32 %v714
    %717 = vset.pattern.permute.xlu0 0
    %718 = vperm.xlu0 %717, %v715
    %v719 = vpop.permute.xlu0 %718
    %v721 = vperm.slane %v707, 3
    %v722 = vmul.f32 %v719, %v721
    %v723 = vadd.f32 %v586, %v722
    %v725 = vrot.slane %v707, 3
    %727 = vmatpush.msra.mxu0 %v181
    %728 = vmatpush.msra.mxu0 %v178
    %729 = vmatpush.msra.mxu0 %v175
    %730 = vmatpush.msra.mxu0 %v172
    %731 = vmatpush.msra.mxu0 %v169
    %732 = vmatpush.msra.mxu0 %v166
    %733 = vmatpush.msra.mxu0 %v163
    %734 = vmatpush.msra.mxu0 %v160
    %735 = vmatpush.msra.mxu0 %v157
    %736 = vmatpush.msra.mxu0 %v154
    %737 = vmatpush.msra.mxu0 %v151
    %738 = vmatpush.msra.mxu0 %v148
    %739 = vmatpush.msra.mxu0 %v145
    %740 = vmatpush.msra.mxu0 %v142
    %741 = vmatpush.msra.mxu0 %v139
    %742 = vmatpush.msra.mxu0 %v136
    %743 = vmatmul.f32.gmra.mxu0 %v725
    %v744 = vpop.f32.mrf.mxu0
    %v745 = vadd.f32 %v185, %v744
    %746 = vdwg.mxu0
    %747 = vmatpush.msra.mxu0 %v182
    %748 = vmatpush.msra.mxu0 %v179
    %749 = vmatpush.msra.mxu0 %v176
    %750 = vmatpush.msra.mxu0 %v173
    %751 = vmatpush.msra.mxu0 %v170
    %752 = vmatpush.msra.mxu0 %v167
    %753 = vmatpush.msra.mxu0 %v164
    %754 = vmatpush.msra.mxu0 %v161
    %755 = vmatpush.msra.mxu0 %v158
    %756 = vmatpush.msra.mxu0 %v155
    %757 = vmatpush.msra.mxu0 %v152
    %758 = vmatpush.msra.mxu0 %v149
    %759 = vmatpush.msra.mxu0 %v146
    %760 = vmatpush.msra.mxu0 %v143
    %761 = vmatpush.msra.mxu0 %v140
    %762 = vmatpush.msra.mxu0 %v137
    %763 = vmatmul.f32.gmra.mxu0 %v725
    %v764 = vpop.f32.mrf.mxu0
    %v765 = vadd.f32 %v186, %v764
    %766 = vdwg.mxu0
    %767 = vmatpush.msra.mxu0 %v183
    %768 = vmatpush.msra.mxu0 %v180
    %769 = vmatpush.msra.mxu0 %v177
    %770 = vmatpush.msra.mxu0 %v174
    %771 = vmatpush.msra.mxu0 %v171
    %772 = vmatpush.msra.mxu0 %v168
    %773 = vmatpush.msra.mxu0 %v165
    %774 = vmatpush.msra.mxu0 %v162
    %775 = vmatpush.msra.mxu0 %v159
    %776 = vmatpush.msra.mxu0 %v156
    %777 = vmatpush.msra.mxu0 %v153
    %778 = vmatpush.msra.mxu0 %v150
    %779 = vmatpush.msra.mxu0 %v147
    %780 = vmatpush.msra.mxu0 %v144
    %781 = vmatpush.msra.mxu0 %v141
    %782 = vmatpush.msra.mxu0 %v138
    %783 = vmatmul.f32.gmra.mxu0 %v725
    %v784 = vpop.f32.mrf.mxu0
    %v785 = vadd.f32 %v187, %v784
    %786 = vdwg.mxu0
    %v788 = vrot.slane %v745, 4
    %v790 = vadd.f32 %v92, %v788
    %v791 = vxor.u32 %v790, 2147483648
    %v792 = vmul.f32 %v791, 1.442695
    %v793 = vpow.pop %v792
    %v794 = vadd.f32 %v793, 1.0
    %v795 = vrcp.pop %v794
    %v796 = vmul.f32 %v794, %v795
    %v797 = vsub.f32 1.0, %v796
    %v798 = vmul.f32 %v795, %v797
    %v799 = vadd.f32 %v795, %v798
    %vm800 = vweird.f32 %v794
    %vm801 = vweird.f32 %v795
    %vm802 = vmor %vm800, %vm801
    %v803 = vsel %vm802, %v795, %v799
    %v804 = vand.u32 2147483647, %v794
    %vm805 = vcmp.eq.f32.partialorder %v804, 8.507059e+37
    %v806 = vand.u32 %v794, 2147483648
    %v807 = vor.u32 1.1754944e-38, %v806
    %v808 = vsel %vm805, %v807, %v803
    %v809 = vmul.f32 1.0, %v808
    %v811 = vrot.slane %v765, 4
    %v813 = vadd.f32 %v112, %v811
    %v814 = vxor.u32 %v813, 2147483648
    %v815 = vmul.f32 %v814, 1.442695
    %v816 = vpow.pop %v815
    %v817 = vadd.f32 %v816, 1.0
    %v818 = vrcp.pop %v817
    %v819 = vmul.f32 %v817, %v818
    %v820 = vsub.f32 1.0, %v819
    %v821 = vmul.f32 %v818, %v820
    %v822 = vadd.f32 %v818, %v821
    %vm823 = vweird.f32 %v817
    %vm824 = vweird.f32 %v818
    %vm825 = vmor %vm823, %vm824
    %v826 = vsel %vm825, %v818, %v822
    %v827 = vand.u32 2147483647, %v817
    %vm828 = vcmp.eq.f32.partialorder %v827, 8.507059e+37
    %v829 = vand.u32 %v817, 2147483648
    %v830 = vor.u32 1.1754944e-38, %v829
    %v831 = vsel %vm828, %v830, %v826
    %v832 = vmul.f32 1.0, %v831
    %v834 = vrot.slane %v785, 4
    %v836 = vmul.f32 %v809, %v834
    %v837 = vadd.f32 %v132, %v836
    %v838 = vtanh.pop %v837
    %v839 = vsub.f32 1.0, %v832
    %v840 = vmul.f32 %v839, %v838
    %v841 = vrot.slane %v707, 7
    %v843 = vmul.f32 %v832, %v841
    %v844 = vadd.f32 %v840, %v843
    %vm845 = vcmp.eq.s32.totalorder %v298, 4
    %vm846 = vcmp.gt.s32.totalorder %v135, 4
    %v847 = vsel %vm846, 1, 0
    %v848 = vperm.slane %v847, 0
    %vm849 = vcmp.eq.s32.totalorder %v848, 1
    %vm850 = vmand %vm845, %vm849
    %v851 = vsel %vm850, 1, 0
    %v852 = vcvt.s32.f32 %v851
    %854 = vset.pattern.permute.xlu0 0
    %855 = vperm.xlu0 %854, %v852
    %v856 = vpop.permute.xlu0 %855
    %v858 = vperm.slane %v844, 4
    %v859 = vmul.f32 %v856, %v858
    %v860 = vadd.f32 %v723, %v859
    %v862 = vrot.slane %v844, 4
    %864 = vmatpush.msra.mxu0 %v181
    %865 = vmatpush.msra.mxu0 %v178
    %866 = vmatpush.msra.mxu0 %v175
    %867 = vmatpush.msra.mxu0 %v172
    %868 = vmatpush.msra.mxu0 %v169
    %869 = vmatpush.msra.mxu0 %v166
    %870 = vmatpush.msra.mxu0 %v163
    %871 = vmatpush.msra.mxu0 %v160
    %872 = vmatpush.msra.mxu0 %v157
    %873 = vmatpush.msra.mxu0 %v154
    %874 = vmatpush.msra.mxu0 %v151
    %875 = vmatpush.msra.mxu0 %v148
    %876 = vmatpush.msra.mxu0 %v145
    %877 = vmatpush.msra.mxu0 %v142
    %878 = vmatpush.msra.mxu0 %v139
    %879 = vmatpush.msra.mxu0 %v136
    %880 = vmatmul.f32.gmra.mxu0 %v862
    %v881 = vpop.f32.mrf.mxu0
    %v882 = vadd.f32 %v185, %v881
    %883 = vdwg.mxu0
    %884 = vmatpush.msra.mxu0 %v182
    %885 = vmatpush.msra.mxu0 %v179
    %886 = vmatpush.msra.mxu0 %v176
    %887 = vmatpush.msra.mxu0 %v173
    %888 = vmatpush.msra.mxu0 %v170
    %889 = vmatpush.msra.mxu0 %v167
    %890 = vmatpush.msra.mxu0 %v164
    %891 = vmatpush.msra.mxu0 %v161
    %892 = vmatpush.msra.mxu0 %v158
    %893 = vmatpush.msra.mxu0 %v155
    %894 = vmatpush.msra.mxu0 %v152
    %895 = vmatpush.msra.mxu0 %v149
    %896 = vmatpush.msra.mxu0 %v146
    %897 = vmatpush.msra.mxu0 %v143
    %898 = vmatpush.msra.mxu0 %v140
    %899 = vmatpush.msra.mxu0 %v137
    %900 = vmatmul.f32.gmra.mxu0 %v862
    %v901 = vpop.f32.mrf.mxu0
    %v902 = vadd.f32 %v186, %v901
    %903 = vdwg.mxu0
    %904 = vmatpush.msra.mxu0 %v183
    %905 = vmatpush.msra.mxu0 %v180
    %906 = vmatpush.msra.mxu0 %v177
    %907 = vmatpush.msra.mxu0 %v174
    %908 = vmatpush.msra.mxu0 %v171
    %909 = vmatpush.msra.mxu0 %v168
    %910 = vmatpush.msra.mxu0 %v165
    %911 = vmatpush.msra.mxu0 %v162
    %912 = vmatpush.msra.mxu0 %v159
    %913 = vmatpush.msra.mxu0 %v156
    %914 = vmatpush.msra.mxu0 %v153
    %915 = vmatpush.msra.mxu0 %v150
    %916 = vmatpush.msra.mxu0 %v147
    %917 = vmatpush.msra.mxu0 %v144
    %918 = vmatpush.msra.mxu0 %v141
    %919 = vmatpush.msra.mxu0 %v138
    %920 = vmatmul.f32.gmra.mxu0 %v862
    %v921 = vpop.f32.mrf.mxu0
    %v922 = vadd.f32 %v187, %v921
    %923 = vdwg.mxu0
    %v925 = vrot.slane %v882, 3
    %v927 = vadd.f32 %v92, %v925
    %v928 = vxor.u32 %v927, 2147483648
    %v929 = vmul.f32 %v928, 1.442695
    %v930 = vpow.pop %v929
    %v931 = vadd.f32 %v930, 1.0
    %v932 = vrcp.pop %v931
    %v933 = vmul.f32 %v931, %v932
    %v934 = vsub.f32 1.0, %v933
    %v935 = vmul.f32 %v932, %v934
    %v936 = vadd.f32 %v932, %v935
    %vm937 = vweird.f32 %v931
    %vm938 = vweird.f32 %v932
    %vm939 = vmor %vm937, %vm938
    %v940 = vsel %vm939, %v932, %v936
    %v941 = vand.u32 2147483647, %v931
    %vm942 = vcmp.eq.f32.partialorder %v941, 8.507059e+37
    %v943 = vand.u32 %v931, 2147483648
    %v944 = vor.u32 1.1754944e-38, %v943
    %v945 = vsel %vm942, %v944, %v940
    %v946 = vmul.f32 1.0, %v945
    %v948 = vrot.slane %v902, 3
    %v950 = vadd.f32 %v112, %v948
    %v951 = vxor.u32 %v950, 2147483648
    %v952 = vmul.f32 %v951, 1.442695
    %v953 = vpow.pop %v952
    %v954 = vadd.f32 %v953, 1.0
    %v955 = vrcp.pop %v954
    %v956 = vmul.f32 %v954, %v955
    %v957 = vsub.f32 1.0, %v956
    %v958 = vmul.f32 %v955, %v957
    %v959 = vadd.f32 %v955, %v958
    %vm960 = vweird.f32 %v954
    %vm961 = vweird.f32 %v955
    %vm962 = vmor %vm960, %vm961
    %v963 = vsel %vm962, %v955, %v959
    %v964 = vand.u32 2147483647, %v954
    %vm965 = vcmp.eq.f32.partialorder %v964, 8.507059e+37
    %v966 = vand.u32 %v954, 2147483648
    %v967 = vor.u32 1.1754944e-38, %v966
    %v968 = vsel %vm965, %v967, %v963
    %v969 = vmul.f32 1.0, %v968
    %v971 = vrot.slane %v922, 3
    %v973 = vmul.f32 %v946, %v971
    %v974 = vadd.f32 %v132, %v973
    %v975 = vtanh.pop %v974
    %v976 = vsub.f32 1.0, %v969
    %v977 = vmul.f32 %v976, %v975
    %v978 = vrot.slane %v844, 7
    %v980 = vmul.f32 %v969, %v978
    %v981 = vadd.f32 %v977, %v980
    %vm982 = vcmp.eq.s32.totalorder %v298, 5
    %vm983 = vcmp.gt.s32.totalorder %v135, 5
    %v984 = vsel %vm983, 1, 0
    %v985 = vperm.slane %v984, 0
    %vm986 = vcmp.eq.s32.totalorder %v985, 1
    %vm987 = vmand %vm982, %vm986
    %v988 = vsel %vm987, 1, 0
    %v989 = vcvt.s32.f32 %v988
    %991 = vset.pattern.permute.xlu0 0
    %992 = vperm.xlu0 %991, %v989
    %v993 = vpop.permute.xlu0 %992
    %v995 = vperm.slane %v981, 5
    %v996 = vmul.f32 %v993, %v995
    %v997 = vadd.f32 %v860, %v996
    %v999 = vrot.slane %v981, 5
    %1001 = vmatpush.msra.mxu0 %v181
    %1002 = vmatpush.msra.mxu0 %v178
    %1003 = vmatpush.msra.mxu0 %v175
    %1004 = vmatpush.msra.mxu0 %v172
    %1005 = vmatpush.msra.mxu0 %v169
    %1006 = vmatpush.msra.mxu0 %v166
    %1007 = vmatpush.msra.mxu0 %v163
    %1008 = vmatpush.msra.mxu0 %v160
    %1009 = vmatpush.msra.mxu0 %v157
    %1010 = vmatpush.msra.mxu0 %v154
    %1011 = vmatpush.msra.mxu0 %v151
    %1012 = vmatpush.msra.mxu0 %v148
    %1013 = vmatpush.msra.mxu0 %v145
    %1014 = vmatpush.msra.mxu0 %v142
    %1015 = vmatpush.msra.mxu0 %v139
    %1016 = vmatpush.msra.mxu0 %v136
    %1017 = vmatmul.f32.gmra.mxu0 %v999
    %v1018 = vpop.f32.mrf.mxu0
    %v1019 = vadd.f32 %v185, %v1018
    %1020 = vdwg.mxu0
    %1021 = vmatpush.msra.mxu0 %v182
    %1022 = vmatpush.msra.mxu0 %v179
    %1023 = vmatpush.msra.mxu0 %v176
    %1024 = vmatpush.msra.mxu0 %v173
    %1025 = vmatpush.msra.mxu0 %v170
    %1026 = vmatpush.msra.mxu0 %v167
    %1027 = vmatpush.msra.mxu0 %v164
    %1028 = vmatpush.msra.mxu0 %v161
    %1029 = vmatpush.msra.mxu0 %v158
    %1030 = vmatpush.msra.mxu0 %v155
    %1031 = vmatpush.msra.mxu0 %v152
    %1032 = vmatpush.msra.mxu0 %v149
    %1033 = vmatpush.msra.mxu0 %v146
    %1034 = vmatpush.msra.mxu0 %v143
    %1035 = vmatpush.msra.mxu0 %v140
    %1036 = vmatpush.msra.mxu0 %v137
    %1037 = vmatmul.f32.gmra.mxu0 %v999
    %v1038 = vpop.f32.mrf.mxu0
    %v1039 = vadd.f32 %v186, %v1038
    %1040 = vdwg.mxu0
    %1041 = vmatpush.msra.mxu0 %v183
    %1042 = vmatpush.msra.mxu0 %v180
    %1043 = vmatpush.msra.mxu0 %v177
    %1044 = vmatpush.msra.mxu0 %v174
    %1045 = vmatpush.msra.mxu0 %v171
    %1046 = vmatpush.msra.mxu0 %v168
    %1047 = vmatpush.msra.mxu0 %v165
    %1048 = vmatpush.msra.mxu0 %v162
    %1049 = vmatpush.msra.mxu0 %v159
    %1050 = vmatpush.msra.mxu0 %v156
    %1051 = vmatpush.msra.mxu0 %v153
    %1052 = vmatpush.msra.mxu0 %v150
    %1053 = vmatpush.msra.mxu0 %v147
    %1054 = vmatpush.msra.mxu0 %v144
    %1055 = vmatpush.msra.mxu0 %v141
    %1056 = vmatpush.msra.mxu0 %v138
    %1057 = vmatmul.f32.gmra.mxu0 %v999
    %v1058 = vpop.f32.mrf.mxu0
    %v1059 = vadd.f32 %v187, %v1058
    %1060 = vdwg.mxu0
    %v1062 = vrot.slane %v1019, 2
    %v1064 = vadd.f32 %v92, %v1062
    %v1065 = vxor.u32 %v1064, 2147483648
    %v1066 = vmul.f32 %v1065, 1.442695
    %v1067 = vpow.pop %v1066
    %v1068 = vadd.f32 %v1067, 1.0
    %v1069 = vrcp.pop %v1068
    %v1070 = vmul.f32 %v1068, %v1069
    %v1071 = vsub.f32 1.0, %v1070
    %v1072 = vmul.f32 %v1069, %v1071
    %v1073 = vadd.f32 %v1069, %v1072
    %vm1074 = vweird.f32 %v1068
    %vm1075 = vweird.f32 %v1069
    %vm1076 = vmor %vm1074, %vm1075
    %v1077 = vsel %vm1076, %v1069, %v1073
    %v1078 = vand.u32 2147483647, %v1068
    %vm1079 = vcmp.eq.f32.partialorder %v1078, 8.507059e+37
    %v1080 = vand.u32 %v1068, 2147483648
    %v1081 = vor.u32 1.1754944e-38, %v1080
    %v1082 = vsel %vm1079, %v1081, %v1077
    %v1083 = vmul.f32 1.0, %v1082
    %v1085 = vrot.slane %v1039, 2
    %v1087 = vadd.f32 %v112, %v1085
    %v1088 = vxor.u32 %v1087, 2147483648
    %v1089 = vmul.f32 %v1088, 1.442695
    %v1090 = vpow.pop %v1089
    %v1091 = vadd.f32 %v1090, 1.0
    %v1092 = vrcp.pop %v1091
    %v1093 = vmul.f32 %v1091, %v1092
    %v1094 = vsub.f32 1.0, %v1093
    %v1095 = vmul.f32 %v1092, %v1094
    %v1096 = vadd.f32 %v1092, %v1095
    %vm1097 = vweird.f32 %v1091
    %vm1098 = vweird.f32 %v1092
    %vm1099 = vmor %vm1097, %vm1098
    %v1100 = vsel %vm1099, %v1092, %v1096
    %v1101 = vand.u32 2147483647, %v1091
    %vm1102 = vcmp.eq.f32.partialorder %v1101, 8.507059e+37
    %v1103 = vand.u32 %v1091, 2147483648
    %v1104 = vor.u32 1.1754944e-38, %v1103
    %v1105 = vsel %vm1102, %v1104, %v1100
    %v1106 = vmul.f32 1.0, %v1105
    %v1108 = vrot.slane %v1059, 2
    %v1110 = vmul.f32 %v1083, %v1108
    %v1111 = vadd.f32 %v132, %v1110
    %v1112 = vtanh.pop %v1111
    %v1113 = vsub.f32 1.0, %v1106
    %v1114 = vmul.f32 %v1113, %v1112
    %v1115 = vrot.slane %v981, 7
    %v1117 = vmul.f32 %v1106, %v1115
    %v1118 = vadd.f32 %v1114, %v1117
    %vm1119 = vcmp.eq.s32.totalorder %v298, 6
    %vm1120 = vcmp.gt.s32.totalorder %v135, 6
    %v1121 = vsel %vm1120, 1, 0
    %v1122 = vperm.slane %v1121, 0
    %vm1123 = vcmp.eq.s32.totalorder %v1122, 1
    %vm1124 = vmand %vm1119, %vm1123
    %v1125 = vsel %vm1124, 1, 0
    %v1126 = vcvt.s32.f32 %v1125
    %1128 = vset.pattern.permute.xlu0 0
    %1129 = vperm.xlu0 %1128, %v1126
    %v1130 = vpop.permute.xlu0 %1129
    %v1132 = vperm.slane %v1118, 6
    %v1133 = vmul.f32 %v1130, %v1132
    %v1134 = vadd.f32 %v997, %v1133
    %v1136 = vrot.slane %v1118, 6
    %1138 = vmatpush.msra.mxu0 %v181
    %1139 = vmatpush.msra.mxu0 %v178
    %1140 = vmatpush.msra.mxu0 %v175
    %1141 = vmatpush.msra.mxu0 %v172
    %1142 = vmatpush.msra.mxu0 %v169
    %1143 = vmatpush.msra.mxu0 %v166
    %1144 = vmatpush.msra.mxu0 %v163
    %1145 = vmatpush.msra.mxu0 %v160
    %1146 = vmatpush.msra.mxu0 %v157
    %1147 = vmatpush.msra.mxu0 %v154
    %1148 = vmatpush.msra.mxu0 %v151
    %1149 = vmatpush.msra.mxu0 %v148
    %1150 = vmatpush.msra.mxu0 %v145
    %1151 = vmatpush.msra.mxu0 %v142
    %1152 = vmatpush.msra.mxu0 %v139
    %1153 = vmatpush.msra.mxu0 %v136
    %1154 = vmatmul.f32.gmra.mxu0 %v1136
    %v1155 = vpop.f32.mrf.mxu0
    %v1156 = vadd.f32 %v185, %v1155
    %1157 = vdwg.mxu0
    %1158 = vmatpush.msra.mxu0 %v182
    %1159 = vmatpush.msra.mxu0 %v179
    %1160 = vmatpush.msra.mxu0 %v176
    %1161 = vmatpush.msra.mxu0 %v173
    %1162 = vmatpush.msra.mxu0 %v170
    %1163 = vmatpush.msra.mxu0 %v167
    %1164 = vmatpush.msra.mxu0 %v164
    %1165 = vmatpush.msra.mxu0 %v161
    %1166 = vmatpush.msra.mxu0 %v158
    %1167 = vmatpush.msra.mxu0 %v155
    %1168 = vmatpush.msra.mxu0 %v152
    %1169 = vmatpush.msra.mxu0 %v149
    %1170 = vmatpush.msra.mxu0 %v146
    %1171 = vmatpush.msra.mxu0 %v143
    %1172 = vmatpush.msra.mxu0 %v140
    %1173 = vmatpush.msra.mxu0 %v137
    %1174 = vmatmul.f32.gmra.mxu0 %v1136
    %v1175 = vpop.f32.mrf.mxu0
    %v1176 = vadd.f32 %v186, %v1175
    %1177 = vdwg.mxu0
    %1178 = vmatpush.msra.mxu0 %v183
    %1179 = vmatpush.msra.mxu0 %v180
    %1180 = vmatpush.msra.mxu0 %v177
    %1181 = vmatpush.msra.mxu0 %v174
    %1182 = vmatpush.msra.mxu0 %v171
    %1183 = vmatpush.msra.mxu0 %v168
    %1184 = vmatpush.msra.mxu0 %v165
    %1185 = vmatpush.msra.mxu0 %v162
    %1186 = vmatpush.msra.mxu0 %v159
    %1187 = vmatpush.msra.mxu0 %v156
    %1188 = vmatpush.msra.mxu0 %v153
    %1189 = vmatpush.msra.mxu0 %v150
    %1190 = vmatpush.msra.mxu0 %v147
    %1191 = vmatpush.msra.mxu0 %v144
    %1192 = vmatpush.msra.mxu0 %v141
    %1193 = vmatpush.msra.mxu0 %v138
    %1194 = vmatmul.f32.gmra.mxu0 %v1136
    %v1195 = vpop.f32.mrf.mxu0
    %v1196 = vadd.f32 %v187, %v1195
    %1197 = vdwg.mxu0
    %v1199 = vrot.slane %v1156, 1
    %v1201 = vadd.f32 %v92, %v1199
    %v1202 = vxor.u32 %v1201, 2147483648
    %v1203 = vmul.f32 %v1202, 1.442695
    %v1204 = vpow.pop %v1203
    %v1205 = vadd.f32 %v1204, 1.0
    %v1206 = vrcp.pop %v1205
    %v1207 = vmul.f32 %v1205, %v1206
    %v1208 = vsub.f32 1.0, %v1207
    %v1209 = vmul.f32 %v1206, %v1208
    %v1210 = vadd.f32 %v1206, %v1209
    %vm1211 = vweird.f32 %v1205
    %vm1212 = vweird.f32 %v1206
    %vm1213 = vmor %vm1211, %vm1212
    %v1214 = vsel %vm1213, %v1206, %v1210
    %v1215 = vand.u32 2147483647, %v1205
    %vm1216 = vcmp.eq.f32.partialorder %v1215, 8.507059e+37
    %v1217 = vand.u32 %v1205, 2147483648
    %v1218 = vor.u32 1.1754944e-38, %v1217
    %v1219 = vsel %vm1216, %v1218, %v1214
    %v1220 = vmul.f32 1.0, %v1219
    %v1222 = vrot.slane %v1176, 1
    %v1224 = vadd.f32 %v112, %v1222
    %v1225 = vxor.u32 %v1224, 2147483648
    %v1226 = vmul.f32 %v1225, 1.442695
    %v1227 = vpow.pop %v1226
    %v1228 = vadd.f32 %v1227, 1.0
    %v1229 = vrcp.pop %v1228
    %v1230 = vmul.f32 %v1228, %v1229
    %v1231 = vsub.f32 1.0, %v1230
    %v1232 = vmul.f32 %v1229, %v1231
    %v1233 = vadd.f32 %v1229, %v1232
    %vm1234 = vweird.f32 %v1228
    %vm1235 = vweird.f32 %v1229
    %vm1236 = vmor %vm1234, %vm1235
    %v1237 = vsel %vm1236, %v1229, %v1233
    %v1238 = vand.u32 2147483647, %v1228
    %vm1239 = vcmp.eq.f32.partialorder %v1238, 8.507059e+37
    %v1240 = vand.u32 %v1228, 2147483648
    %v1241 = vor.u32 1.1754944e-38, %v1240
    %v1242 = vsel %vm1239, %v1241, %v1237
    %v1243 = vmul.f32 1.0, %v1242
    %v1245 = vrot.slane %v1196, 1
    %v1247 = vmul.f32 %v1220, %v1245
    %v1248 = vadd.f32 %v132, %v1247
    %v1249 = vtanh.pop %v1248
    %v1250 = vsub.f32 1.0, %v1243
    %v1251 = vmul.f32 %v1250, %v1249
    %v1252 = vrot.slane %v1118, 7
    %v1254 = vmul.f32 %v1243, %v1252
    %v1255 = vadd.f32 %v1251, %v1254
    %vm1256 = vcmp.eq.s32.totalorder %v298, 7
    %vm1257 = vcmp.gt.s32.totalorder %v135, 7
    %v1258 = vsel %vm1257, 1, 0
    %v1259 = vperm.slane %v1258, 0
    %vm1260 = vcmp.eq.s32.totalorder %v1259, 1
    %vm1261 = vmand %vm1256, %vm1260
    %v1262 = vsel %vm1261, 1, 0
    %v1263 = vcvt.s32.f32 %v1262
    %1265 = vset.pattern.permute.xlu0 0
    %1266 = vperm.xlu0 %1265, %v1263
    %v1267 = vpop.permute.xlu0 %1266
    %v1269 = vperm.slane %v1255, 7
    %v1270 = vmul.f32 %v1267, %v1269
    %v1271 = vadd.f32 %v1134, %v1270
    %vm1272 = vcmask 254976
    %1273 = vst.msk [vmem:[%s6] sm:$0x3] %vm1272, %v1271
    // Predicated region
    $region34: #{stacked_attention_forward.2} parent=1 // pred_check
      _
    $region35: #{stacked_attention_forward.2} parent=1 // pred_check_branch
      %1275 = sbr.rel (0) target = $region37
    $region36: #{stacked_attention_forward.2} parent=1 // pred_region
      _
    $region37: #{stacked_attention_forward.2} parent=1 // pred_fallthru
      _
    // Predicated region
    $region38: #{stacked_attention_forward.2} parent=1 // pred_check
      _
    $region39: #{stacked_attention_forward.2} parent=1 // pred_check_branch
      %1277 = sbr.rel (0) target = $region41
    $region40: #{stacked_attention_forward.2} parent=1 // pred_region
      _
    $region41: #{stacked_attention_forward.2} parent=1 // pred_fallthru
      _
    %1278 = vsyncpa [#allocation3], 1
    %1279 = vsyncpa [#allocation5], 1

// kernel: stacked_attention_forward.3
$region0: #{stacked_attention_forward.3}
  #allocation0 [shape = 'u32[]', space=smem, size = 0x4, offset = 0x4, fixed_abs, tag = 'smem constant byte address 0x4 - core index']
  #allocation1 [shape = 'u32[72,128]{1,0:T(1,128)}', space=vmem, size = 0x9000, scoped, tag = 'internal scratch']
  #allocation2 [shape = 'f32[32,256]{1,0:T(8,128)}', space=vmem, size = 0x8000, scoped, tag = 'scratch operand']
  #allocation3 [shape = 'f32[256,128]{1,0:T(8,128)}', space=vmem, size = 0x20000, scoped, tag = 'scratch operand']
  %s0 = inlined_call_operand.vmem [shape: f32[2,256,4], index: 0, kind: input, shape index: {}]
  %s1 = inlined_call_operand.vmem [shape: f32[2,32,32], index: 1, kind: input, shape index: {}]
  %s2 = inlined_call_operand.vmem [shape: f32[2,32,1], index: 2, kind: input, shape index: {}]
  %s3 = inlined_call_operand.vmem [shape: f32[4,32], index: 3, kind: input, shape index: {}]
  %s4 = inlined_call_operand.vmem [shape: f32[1,32], index: 4, kind: input, shape index: {}]
  %s5 = inlined_call_operand.vmem [shape: f32[32,256], index: 5, kind: input, shape index: {}]
  %s6 = inlined_call_operand.vmem [shape: f32[1,256], index: 6, kind: input, shape index: {}]
  %s7 = inlined_call_operand.vmem [shape: f32[32,128], index: 7, kind: input, shape index: {}]
  %s8 = inlined_call_operand.vmem [shape: f32[2,32,64], index: 8, kind: input, shape index: {}]
  %s9 = inlined_call_operand.vmem [shape: f32[2,1,64], index: 9, kind: input, shape index: {}]
  %s10 = inlined_call_operand.vmem [shape: f32[2,1,64], index: 10, kind: input, shape index: {}]
  %s11 = inlined_call_operand.vmem [shape: f32[2,1,1], index: 11, kind: input, shape index: {}]
  %s12 = inlined_call_operand.vmem [shape: f32[2,32,1], index: 12, kind: output, shape index: {}]
  %s13 = sld [smem:[#allocation0]]
  $region81: #{stacked_attention_forward.3} parent=0
    _
  %s15 = ssub.s32 1, %s13
  %s16 = scalar_select 0, %s15, %s13
  loop: start=0, step=1, limit=4
  $region2: #{stacked_attention_forward.3} parent=0 // loop_pre_header
    _
  $region3: #{stacked_attention_forward.3} parent=0 // loop_header
    %s18 = sphi 0, %s22
    %p19 = scmp.ge.s32.totalorder %s18, 4
    %s28 = sphi 0, %s30
    %s31 = sphi 0, %s28
    %s32 = sphi 0, %s31
    %s48 = sphi 0, %s32
    %s54 = sphi 0, %s56
    %s57 = sphi 0, %s54
    %s58 = sphi 0, %s57
    %s74 = sphi 0, %s58
    %s80 = sphi 0, %s82
    %s83 = sphi 0, %s80
    %s84 = sphi 0, %s83
    %s100 = sphi 0, %s84
    %s104 = sphi 0, %s104
    %s106 = sphi 0, %s104
    %s107 = sphi 0, %s106
    %s121 = sphi 0, %s107
    %s125 = sphi 0, %s125
    %s127 = sphi 0, %s125
    %s128 = sphi 0, %s127
    %s142 = sphi 0, %s128
    %s146 = sphi 0, %s146
    %s148 = sphi 0, %s146
    %s149 = sphi 0, %s148
    %s163 = sphi 0, %s149
    %s167 = sphi 0, %s167
    %s169 = sphi 0, %s167
    %s170 = sphi 0, %s169
    %s184 = sphi 0, %s170
    %s188 = sphi 0, %s188
    %s190 = sphi 0, %s188
    %s191 = sphi 0, %s190
    %s205 = sphi 0, %s191
    %s209 = sphi 0, %s209
    %s211 = sphi 0, %s209
    %s212 = sphi 0, %s211
    %s226 = sphi 0, %s212
    %s230 = sphi 0, %s230
    %s232 = sphi 0, %s230
    %s233 = sphi 0, %s232
    %s247 = sphi 0, %s233
    %s251 = sphi 0, %s251
    %s253 = sphi 0, %s251
    %s254 = sphi 0, %s253
    %s268 = sphi 0, %s254
    %s272 = sphi 0, %s272
    %s274 = sphi 0, %s272
    %s275 = sphi 0, %s274
    %s289 = sphi 0, %s275
    %s295 = sphi 0, %s297
    %s298 = sphi 0, %s295
    %s299 = sphi 0, %s298
    %s315 = sphi 0, %s299
  $region4: #{stacked_attention_forward.3} parent=0 // loop_header_branch
    %21 = sbr.rel (%p19) target = $region8
  $region5: #{stacked_attention_forward.3} parent=0 // loop_body
    %s23 = ssub.s32 %s18, 1
    %s24 = ssub.s32 %s18, 2
    %s25 = sadd.s32 %s18, 1
    %s26 = ssub.s32 %s18, %s25
    %p27 = scmp.eq.s32.totalorder %s26, 0
    %s29 = sadd.s32 %s28, 1
    %s30 = scalar_select %p27, %s28, %s29
    %p33 = pneg %p27
    %p34 = scmp.eq.s32.totalorder %s18, 1
    %p35 = por %p33, %p34
    %p36 = scmp.ne.s32.totalorder %s28, %s31
    %p37 = scmp.eq.s32.totalorder %s18, 0
    %p38 = por %p36, %p37
    %p39 = scmp.ne.s32.totalorder %s28, %s31
    %p40 = scmp.eq.s32.totalorder %s23, 1
    %p41 = por %p39, %p40
    %p42 = scmp.ne.s32.totalorder %s31, %s32
    %p43 = scmp.eq.s32.totalorder %s23, 0
    %p44 = por %p42, %p43
    %p45 = scmp.ne.s32.totalorder %s31, %s32
    %p46 = scmp.eq.s32.totalorder %s24, 1
    %p47 = por %p45, %p46
    %p49 = scmp.ne.s32.totalorder %s32, %s48
    %p50 = scmp.eq.s32.totalorder %s24, 0
    %p51 = por %p49, %p50
    %s52 = ssub.s32 %s18, %s25
    %p53 = scmp.eq.s32.totalorder %s52, 0
    %s55 = sadd.s32 %s54, 1
    %s56 = scalar_select %p53, %s54, %s55
    %p59 = pneg %p53
    %p60 = scmp.eq.s32.totalorder %s18, 1
    %p61 = por %p59, %p60
    %p62 = scmp.ne.s32.totalorder %s54, %s57
    %p63 = scmp.eq.s32.totalorder %s18, 0
    %p64 = por %p62, %p63
    %p65 = scmp.ne.s32.totalorder %s54, %s57
    %p66 = scmp.eq.s32.totalorder %s23, 1
    %p67 = por %p65, %p66
    %p68 = scmp.ne.s32.totalorder %s57, %s58
    %p69 = scmp.eq.s32.totalorder %s23, 0
    %p70 = por %p68, %p69
    %p71 = scmp.ne.s32.totalorder %s57, %s58
    %p72 = scmp.eq.s32.totalorder %s24, 1
    %p73 = por %p71, %p72
    %p75 = scmp.ne.s32.totalorder %s58, %s74
    %p76 = scmp.eq.s32.totalorder %s24, 0
    %p77 = por %p75, %p76
    %s78 = ssub.s32 %s18, %s25
    %p79 = scmp.eq.s32.totalorder %s78, 0
    %s81 = sadd.s32 %s80, 1
    %s82 = scalar_select %p79, %s80, %s81
    %p85 = pneg %p79
    %p86 = scmp.eq.s32.totalorder %s18, 1
    %p87 = por %p85, %p86
    %p88 = scmp.ne.s32.totalorder %s80, %s83
    %p89 = scmp.eq.s32.totalorder %s18, 0
    %p90 = por %p88, %p89
    %p91 = scmp.ne.s32.totalorder %s80, %s83
    %p92 = scmp.eq.s32.totalorder %s23, 1
    %p93 = por %p91, %p92
    %p94 = scmp.ne.s32.totalorder %s83, %s84
    %p95 = scmp.eq.s32.totalorder %s23, 0
    %p96 = por %p94, %p95
    %p97 = scmp.ne.s32.totalorder %s83, %s84
    %p98 = scmp.eq.s32.totalorder %s24, 1
    %p99 = por %p97, %p98
    %p101 = scmp.ne.s32.totalorder %s84, %s100
    %p102 = scmp.eq.s32.totalorder %s24, 0
    %p103 = por %p101, %p102
    %s105 = sadd.s32 %s104, 1
    %p108 = scmp.eq.s32.totalorder %s18, 1
    %p109 = scmp.ne.s32.totalorder %s104, %s106
    %p110 = scmp.eq.s32.totalorder %s18, 0
    %p111 = por %p109, %p110
    %p112 = scmp.ne.s32.totalorder %s104, %s106
    %p113 = scmp.eq.s32.totalorder %s23, 1
    %p114 = por %p112, %p113
    %p115 = scmp.ne.s32.totalorder %s106, %s107
    %p116 = scmp.eq.s32.totalorder %s23, 0
    %p117 = por %p115, %p116
    %p118 = scmp.ne.s32.totalorder %s106, %s107
    %p119 = scmp.eq.s32.totalorder %s24, 1
    %p120 = por %p118, %p119
    %p122 = scmp.ne.s32.totalorder %s107, %s121
    %p123 = scmp.eq.s32.totalorder %s24, 0
    %p124 = por %p122, %p123
    %s126 = sadd.s32 %s125, 1
    %p129 = scmp.eq.s32.totalorder %s18, 1
    %p130 = scmp.ne.s32.totalorder %s125, %s127
    %p131 = scmp.eq.s32.totalorder %s18, 0
    %p132 = por %p130, %p131
    %p133 = scmp.ne.s32.totalorder %s125, %s127
    %p134 = scmp.eq.s32.totalorder %s23, 1
    %p135 = por %p133, %p134
    %p136 = scmp.ne.s32.totalorder %s127, %s128
    %p137 = scmp.eq.s32.totalorder %s23, 0
    %p138 = por %p136, %p137
    %p139 = scmp.ne.s32.totalorder %s127, %s128
    %p140 = scmp.eq.s32.totalorder %s24, 1
    %p141 = por %p139, %p140
    %p143 = scmp.ne.s32.totalorder %s128, %s142
    %p144 = scmp.eq.s32.totalorder %s24, 0
    %p145 = por %p143, %p144
    %s147 = sadd.s32 %s146, 1
    %p150 = scmp.eq.s32.totalorder %s18, 1
    %p151 = scmp.ne.s32.totalorder %s146, %s148
    %p152 = scmp.eq.s32.totalorder %s18, 0
    %p153 = por %p151, %p152
    %p154 = scmp.ne.s32.totalorder %s146, %s148
    %p155 = scmp.eq.s32.totalorder %s23, 1
    %p156 = por %p154, %p155
    %p157 = scmp.ne.s32.totalorder %s148, %s149
    %p158 = scmp.eq.s32.totalorder %s23, 0
    %p159 = por %p157, %p158
    %p160 = scmp.ne.s32.totalorder %s148, %s149
    %p161 = scmp.eq.s32.totalorder %s24, 1
    %p162 = por %p160, %p161
    %p164 = scmp.ne.s32.totalorder %s149, %s163
    %p165 = scmp.eq.s32.totalorder %s24, 0
    %p166 = por %p164, %p165
    %s168 = sadd.s32 %s167, 1
    %p171 = scmp.eq.s32.totalorder %s18, 1
    %p172 = scmp.ne.s32.totalorder %s167, %s169
    %p173 = scmp.eq.s32.totalorder %s18, 0
    %p174 = por %p172, %p173
    %p175 = scmp.ne.s32.totalorder %s167, %s169
    %p176 = scmp.eq.s32.totalorder %s23, 1
    %p177 = por %p175, %p176
    %p178 = scmp.ne.s32.totalorder %s169, %s170
    %p179 = scmp.eq.s32.totalorder %s23, 0
    %p180 = por %p178, %p179
    %p181 = scmp.ne.s32.totalorder %s169, %s170
    %p182 = scmp.eq.s32.totalorder %s24, 1
    %p183 = por %p181, %p182
    %p185 = scmp.ne.s32.totalorder %s170, %s184
    %p186 = scmp.eq.s32.totalorder %s24, 0
    %p187 = por %p185, %p186
    %s189 = sadd.s32 %s188, 1
    %p192 = scmp.eq.s32.totalorder %s18, 1
    %p193 = scmp.ne.s32.totalorder %s188, %s190
    %p194 = scmp.eq.s32.totalorder %s18, 0
    %p195 = por %p193, %p194
    %p196 = scmp.ne.s32.totalorder %s188, %s190
    %p197 = scmp.eq.s32.totalorder %s23, 1
    %p198 = por %p196, %p197
    %p199 = scmp.ne.s32.totalorder %s190, %s191
    %p200 = scmp.eq.s32.totalorder %s23, 0
    %p201 = por %p199, %p200
    %p202 = scmp.ne.s32.totalorder %s190, %s191
    %p203 = scmp.eq.s32.totalorder %s24, 1
    %p204 = por %p202, %p203
    %p206 = scmp.ne.s32.totalorder %s191, %s205
    %p207 = scmp.eq.s32.totalorder %s24, 0
    %p208 = por %p206, %p207
    %s210 = sadd.s32 %s209, 1
    %p213 = scmp.eq.s32.totalorder %s18, 1
    %p214 = scmp.ne.s32.totalorder %s209, %s211
    %p215 = scmp.eq.s32.totalorder %s18, 0
    %p216 = por %p214, %p215
    %p217 = scmp.ne.s32.totalorder %s209, %s211
    %p218 = scmp.eq.s32.totalorder %s23, 1
    %p219 = por %p217, %p218
    %p220 = scmp.ne.s32.totalorder %s211, %s212
    %p221 = scmp.eq.s32.totalorder %s23, 0
    %p222 = por %p220, %p221
    %p223 = scmp.ne.s32.totalorder %s211, %s212
    %p224 = scmp.eq.s32.totalorder %s24, 1
    %p225 = por %p223, %p224
    %p227 = scmp.ne.s32.totalorder %s212, %s226
    %p228 = scmp.eq.s32.totalorder %s24, 0
    %p229 = por %p227, %p228
    %s231 = sadd.s32 %s230, 1
    %p234 = scmp.eq.s32.totalorder %s18, 1
    %p235 = scmp.ne.s32.totalorder %s230, %s232
    %p236 = scmp.eq.s32.totalorder %s18, 0
    %p237 = por %p235, %p236
    %p238 = scmp.ne.s32.totalorder %s230, %s232
    %p239 = scmp.eq.s32.totalorder %s23, 1
    %p240 = por %p238, %p239
    %p241 = scmp.ne.s32.totalorder %s232, %s233
    %p242 = scmp.eq.s32.totalorder %s23, 0
    %p243 = por %p241, %p242
    %p244 = scmp.ne.s32.totalorder %s232, %s233
    %p245 = scmp.eq.s32.totalorder %s24, 1
    %p246 = por %p244, %p245
    %p248 = scmp.ne.s32.totalorder %s233, %s247
    %p249 = scmp.eq.s32.totalorder %s24, 0
    %p250 = por %p248, %p249
    %s252 = sadd.s32 %s251, 1
    %p255 = scmp.eq.s32.totalorder %s18, 1
    %p256 = scmp.ne.s32.totalorder %s251, %s253
    %p257 = scmp.eq.s32.totalorder %s18, 0
    %p258 = por %p256, %p257
    %p259 = scmp.ne.s32.totalorder %s251, %s253
    %p260 = scmp.eq.s32.totalorder %s23, 1
    %p261 = por %p259, %p260
    %p262 = scmp.ne.s32.totalorder %s253, %s254
    %p263 = scmp.eq.s32.totalorder %s23, 0
    %p264 = por %p262, %p263
    %p265 = scmp.ne.s32.totalorder %s253, %s254
    %p266 = scmp.eq.s32.totalorder %s24, 1
    %p267 = por %p265, %p266
    %p269 = scmp.ne.s32.totalorder %s254, %s268
    %p270 = scmp.eq.s32.totalorder %s24, 0
    %p271 = por %p269, %p270
    %s273 = sadd.s32 %s272, 1
    %p276 = scmp.eq.s32.totalorder %s18, 1
    %p277 = scmp.ne.s32.totalorder %s272, %s274
    %p278 = scmp.eq.s32.totalorder %s18, 0
    %p279 = por %p277, %p278
    %p280 = scmp.ne.s32.totalorder %s272, %s274
    %p281 = scmp.eq.s32.totalorder %s23, 1
    %p282 = por %p280, %p281
    %p283 = scmp.ne.s32.totalorder %s274, %s275
    %p284 = scmp.eq.s32.totalorder %s23, 0
    %p285 = por %p283, %p284
    %p286 = scmp.ne.s32.totalorder %s274, %s275
    %p287 = scmp.eq.s32.totalorder %s24, 1
    %p288 = por %p286, %p287
    %p290 = scmp.ne.s32.totalorder %s275, %s289
    %p291 = scmp.eq.s32.totalorder %s24, 0
    %p292 = por %p290, %p291
    %s293 = ssub.s32 %s18, %s25
    %p294 = scmp.eq.s32.totalorder %s293, 0
    %s296 = sadd.s32 %s295, 1
    %s297 = scalar_select %p294, %s295, %s296
    %p300 = pneg %p294
    %p301 = scmp.eq.s32.totalorder %s18, 1
    %p302 = por %p300, %p301
    %p303 = scmp.ne.s32.totalorder %s295, %s298
    %p304 = scmp.eq.s32.totalorder %s18, 0
    %p305 = por %p303, %p304
    %p306 = scmp.ne.s32.totalorder %s295, %s298
    %p307 = scmp.eq.s32.totalorder %s23, 1
    %p308 = por %p306, %p307
    %p309 = scmp.ne.s32.totalorder %s298, %s299
    %p310 = scmp.eq.s32.totalorder %s23, 0
    %p311 = por %p309, %p310
    %p312 = scmp.ne.s32.totalorder %s298, %s299
    %p313 = scmp.eq.s32.totalorder %s24, 1
    %p314 = por %p312, %p313
    %p316 = scmp.ne.s32.totalorder %s299, %s315
    %p317 = scmp.eq.s32.totalorder %s24, 0
    %p318 = por %p316, %p317
    %p319 = scmp.le.s32.totalorder 1, %s18
    %p320 = scmp.lt.s32.totalorder %s18, 3
    %p321 = pnand %p319, %p320
    %p322 = pneg %p321
    // Predicated region
    $region9: #{stacked_attention_forward.3} parent=5 // pred_check
      _
    $region10: #{stacked_attention_forward.3} parent=5 // pred_check_branch
      %324 = sbr.rel (%p321) target = $region12
    $region11: #{stacked_attention_forward.3} parent=5 // pred_region
      %s325 = ssub.s32 %s18, 1
      // Predicated region
      $region13: #{stacked_attention_forward.3} parent=11 // pred_check
        %p326 = pneg %p117
      $region14: #{stacked_attention_forward.3} parent=11 // pred_check_branch
        %328 = sbr.rel (%p326) target = $region16
      $region15: #{stacked_attention_forward.3} parent=11 // pred_region
        _
      $region16: #{stacked_attention_forward.3} parent=11 // pred_fallthru
        _
      // Predicated region
      $region17: #{stacked_attention_forward.3} parent=11 // pred_check
        %p329 = pneg %p138
      $region18: #{stacked_attention_forward.3} parent=11 // pred_check_branch
        %331 = sbr.rel (%p329) target = $region20
      $region19: #{stacked_attention_forward.3} parent=11 // pred_region
        _
      $region20: #{stacked_attention_forward.3} parent=11 // pred_fallthru
        _
      // Predicated region
      $region21: #{stacked_attention_forward.3} parent=11 // pred_check
        %p332 = pneg %p159
      $region22: #{stacked_attention_forward.3} parent=11 // pred_check_branch
        %334 = sbr.rel (%p332) target = $region24
      $region23: #{stacked_attention_forward.3} parent=11 // pred_region
        _
      $region24: #{stacked_attention_forward.3} parent=11 // pred_fallthru
        _
      // Predicated region
      $region25: #{stacked_attention_forward.3} parent=11 // pred_check
        %p335 = pneg %p180
      $region26: #{stacked_attention_forward.3} parent=11 // pred_check_branch
        %337 = sbr.rel (%p335) target = $region28
      $region27: #{stacked_attention_forward.3} parent=11 // pred_region
        _
      $region28: #{stacked_attention_forward.3} parent=11 // pred_fallthru
        _
      // Predicated region
      $region29: #{stacked_attention_forward.3} parent=11 // pred_check
        %p338 = pneg %p201
      $region30: #{stacked_attention_forward.3} parent=11 // pred_check_branch
        %340 = sbr.rel (%p338) target = $region32
      $region31: #{stacked_attention_forward.3} parent=11 // pred_region
        _
      $region32: #{stacked_attention_forward.3} parent=11 // pred_fallthru
        _
      // Predicated region
      $region33: #{stacked_attention_forward.3} parent=11 // pred_check
        %p341 = pneg %p222
      $region34: #{stacked_attention_forward.3} parent=11 // pred_check_branch
        %343 = sbr.rel (%p341) target = $region36
      $region35: #{stacked_attention_forward.3} parent=11 // pred_region
        _
      $region36: #{stacked_attention_forward.3} parent=11 // pred_fallthru
        _
      // Predicated region
      $region37: #{stacked_attention_forward.3} parent=11 // pred_check
        %p344 = pneg %p243
      $region38: #{stacked_attention_forward.3} parent=11 // pred_check_branch
        %346 = sbr.rel (%p344) target = $region40
      $region39: #{stacked_attention_forward.3} parent=11 // pred_region
        _
      $region40: #{stacked_attention_forward.3} parent=11 // pred_fallthru
        _
      // Predicated region
      $region41: #{stacked_attention_forward.3} parent=11 // pred_check
        %p347 = pneg %p264
      $region42: #{stacked_attention_forward.3} parent=11 // pred_check_branch
        %349 = sbr.rel (%p347) target = $region44
      $region43: #{stacked_attention_forward.3} parent=11 // pred_region
        _
      $region44: #{stacked_attention_forward.3} parent=11 // pred_fallthru
        _
      // Predicated region
      $region45: #{stacked_attention_forward.3} parent=11 // pred_check
        %p350 = pneg %p285
      $region46: #{stacked_attention_forward.3} parent=11 // pred_check_branch
        %352 = sbr.rel (%p350) target = $region48
      $region47: #{stacked_attention_forward.3} parent=11 // pred_region
        _
      $region48: #{stacked_attention_forward.3} parent=11 // pred_fallthru
        _
    $region12: #{stacked_attention_forward.3} parent=5 // pred_fallthru
      _
    %p353 = scmp.lt.s32.totalorder %s18, 2
    // Predicated region
    $region49: #{stacked_attention_forward.3} parent=5 // pred_check
      %p354 = pneg %p353
    $region50: #{stacked_attention_forward.3} parent=5 // pred_check_branch
      %356 = sbr.rel (%p354) target = $region52
    $region51: #{stacked_attention_forward.3} parent=5 // pred_region
      // Predicated region
      $region53: #{stacked_attention_forward.3} parent=51 // pred_check
        %p357 = pneg %p38
      $region54: #{stacked_attention_forward.3} parent=51 // pred_check_branch
        %359 = sbr.rel (%p357) target = $region56
      $region55: #{stacked_attention_forward.3} parent=51 // pred_region
        %p360 = scmp.lt.s32.totalorder %s18, 1
        %s361 = scalar_select %p360, %s18, 1
        %s362 = smul.addr %s361, 32
        %s363 = smul.addr %s362, 8
        %s364 = scalar_lea.vmem %s0, %s363
      $region56: #{stacked_attention_forward.3} parent=51 // pred_fallthru
        _
      // Predicated region
      $region57: #{stacked_attention_forward.3} parent=51 // pred_check
        %p365 = pneg %p64
      $region58: #{stacked_attention_forward.3} parent=51 // pred_check_branch
        %367 = sbr.rel (%p365) target = $region60
      $region59: #{stacked_attention_forward.3} parent=51 // pred_region
        %p368 = scmp.lt.s32.totalorder %s18, 1
        %s369 = scalar_select %p368, %s18, 1
        %s370 = smul.addr %s369, 4
        %s371 = smul.addr %s370, 8
        %s372 = scalar_lea.vmem %s1, %s371
      $region60: #{stacked_attention_forward.3} parent=51 // pred_fallthru
        _
      // Predicated region
      $region61: #{stacked_attention_forward.3} parent=51 // pred_check
        %p373 = pneg %p90
      $region62: #{stacked_attention_forward.3} parent=51 // pred_check_branch
        %375 = sbr.rel (%p373) target = $region64
      $region63: #{stacked_attention_forward.3} parent=51 // pred_region
        %p376 = scmp.lt.s32.totalorder %s18, 1
        %s377 = scalar_select %p376, %s18, 1
        %s378 = smul.addr %s377, 4
        %s379 = smul.addr %s378, 8
        %s380 = scalar_lea.vmem %s2, %s379
      $region64: #{stacked_attention_forward.3} parent=51 // pred_fallthru
        _
    $region52: #{stacked_attention_forward.3} parent=5 // pred_fallthru
      _
    %p381 = scmp.le.s32.totalorder 1, %s18
    %p382 = scmp.lt.s32.totalorder %s18, 3
    %p383 = pnand %p381, %p382
    %p384 = pneg %p383
    // Predicated region
    $region65: #{stacked_attention_forward.3} parent=5 // pred_check
      _
    $region66: #{stacked_attention_forward.3} parent=5 // pred_check_branch
      %386 = sbr.rel (%p383) target = $region68
    $region67: #{stacked_attention_forward.3} parent=5 // pred_region
      %s387 = ssub.s32 %s18, 1
      %p388 = scmp.lt.s32.totalorder %s23, 1
      %s389 = scalar_select %p388, %s23, 1
      %s390 = smul.addr %s389, 32
      %s391 = smul.addr %s390, 8
      %s392 = scalar_lea.vmem %s0, %s391
      %p393 = pneg %p44
      %p394 = pneg %p41
      %p395 = scmp.lt.s32.totalorder %s23, 1
      %s396 = scalar_select %p395, %s23, 1
      %s397 = smul.addr %s396, 4
      %s398 = smul.addr %s397, 8
      %s399 = scalar_lea.vmem %s1, %s398
      %p400 = pneg %p70
      %p401 = pneg %p67
      %p402 = scmp.lt.s32.totalorder %s23, 1
      %s403 = scalar_select %p402, %s23, 1
      %s404 = smul.addr %s403, 4
      %s405 = smul.addr %s404, 8
      %s406 = scalar_lea.vmem %s2, %s405
      %p407 = pneg %p96
      %p408 = pneg %p93
      %p409 = pneg %p117
      %p410 = pneg %p114
      %p411 = pneg %p138
      %p412 = pneg %p135
      %p413 = pneg %p159
      %p414 = pneg %p156
      %p415 = pneg %p180
      %p416 = pneg %p177
      %p417 = pneg %p201
      %p418 = pneg %p198
      %p419 = pneg %p222
      %p420 = pneg %p219
      %p421 = pneg %p243
      %p422 = pneg %p240
      %p423 = pneg %p264
      %p424 = pneg %p261
      %p425 = pneg %p285
      %p426 = pneg %p282
      %p427 = pneg %p311
      %p428 = pneg %p308
      %p429 = scmp.lt.s32.totalorder %s23, 1
      %s430 = scalar_select %p429, %s23, 1
      %s431 = smul.addr %s430, 4
      %s432 = smul.addr %s431, 8
      %s433 = scalar_lea.vmem %s12, %s432
      %p434 = scmp.lt.s32.totalorder %s23, 1
      %s435 = scalar_select %p434, %s23, 1
      %s436 = smul.addr %s435, 32
      %s437 = smul.addr %s436, 8
      %s438 = scalar_lea.vmem %s0, %s437
      %p439 = scmp.lt.s32.totalorder %s23, 1
      %s440 = scalar_select %p439, %s23, 1
      %s441 = smul.addr %s440, 4
      %s442 = smul.addr %s441, 8
      %s443 = scalar_lea.vmem %s1, %s442
      %p444 = scmp.lt.s32.totalorder %s23, 1
      %s445 = scalar_select %p444, %s23, 1
      %s446 = smul.addr %s445, 4
      %s447 = smul.addr %s446, 8
      %s448 = scalar_lea.vmem %s2, %s447
      %p449 = scmp.lt.s32.totalorder %s23, 1
      %s450 = scalar_select %p449, %s23, 1
      %s451 = smul.addr %s450, 4
      %s452 = smul.addr %s451, 8
      %s453 = scalar_lea.vmem %s12, %s452
      %v454 = vld [vmem:[%s438] sm:$0xff]
      %v455 = vld [vmem:[%s438 + $0x8] sm:$0xff]
      %v456 = vld [vmem:[%s438 + $0x10] sm:$0xff]
      %v457 = vld [vmem:[%s438 + $0x18] sm:$0xff]
      %v458 = vld [vmem:[%s438 + $0x20] sm:$0xff]
      %v459 = vld [vmem:[%s438 + $0x28] sm:$0xff]
      %v460 = vld [vmem:[%s438 + $0x30] sm:$0xff]
      %v461 = vld [vmem:[%s438 + $0x38] sm:$0xff]
      %v462 = vld [vmem:[%s438 + $0x40] sm:$0xff]
      %v463 = vld [vmem:[%s438 + $0x48] sm:$0xff]
      %v464 = vld [vmem:[%s438 + $0x50] sm:$0xff]
      %v465 = vld [vmem:[%s438 + $0x58] sm:$0xff]
      %v466 = vld [vmem:[%s438 + $0x60] sm:$0xff]
      %v467 = vld [vmem:[%s438 + $0x68] sm:$0xff]
      %v468 = vld [vmem:[%s438 + $0x70] sm:$0xff]
      %v469 = vld [vmem:[%s438 + $0x78] sm:$0xff]
      %v470 = vld [vmem:[%s438 + $0x80] sm:$0xff]
      %v471 = vld [vmem:[%s438 + $0x88] sm:$0xff]
      %v472 = vld [vmem:[%s438 + $0x90] sm:$0xff]
      %v473 = vld [vmem:[%s438 + $0x98] sm:$0xff]
      %v474 = vld [vmem:[%s438 + $0xa0] sm:$0xff]
      %v475 = vld [vmem:[%s438 + $0xa8] sm:$0xff]
      %v476 = vld [vmem:[%s438 + $0xb0] sm:$0xff]
      %v477 = vld [vmem:[%s438 + $0xb8] sm:$0xff]
      %v478 = vld [vmem:[%s438 + $0xc0] sm:$0xff]
      %v479 = vld [vmem:[%s438 + $0xc8] sm:$0xff]
      %v480 = vld [vmem:[%s438 + $0xd0] sm:$0xff]
      %v481 = vld [vmem:[%s438 + $0xd8] sm:$0xff]
      %v482 = vld [vmem:[%s438 + $0xe0] sm:$0xff]
      %v483 = vld [vmem:[%s438 + $0xe8] sm:$0xff]
      %v484 = vld [vmem:[%s438 + $0xf0] sm:$0xff]
      %v485 = vld [vmem:[%s438 + $0xf8] sm:$0xff]
      %v486 = vld [vmem:[%s3] sm:$0xf]
      %v487 = vld [vmem:[%s4] sm:$0x1]
      %v489 = vperm.slane %v487, 0
      %vm491 = vcmask 31744
      %v493 = vsel %vm491, %v454, 0
      %v496 = vsel %vm491, %v455, 0
      %v499 = vsel %vm491, %v456, 0
      %v502 = vsel %vm491, %v457, 0
      %v505 = vsel %vm491, %v458, 0
      %v508 = vsel %vm491, %v459, 0
      %v511 = vsel %vm491, %v460, 0
      %v514 = vsel %vm491, %v461, 0
      %v517 = vsel %vm491, %v462, 0
      %v520 = vsel %vm491, %v463, 0
      %v523 = vsel %vm491, %v464, 0
      %v526 = vsel %vm491, %v465, 0
      %v529 = vsel %vm491, %v466, 0
      %v532 = vsel %vm491, %v467, 0
      %v535 = vsel %vm491, %v468, 0
      %v538 = vsel %vm491, %v469, 0
      %v541 = vsel %vm491, %v470, 0
      %v544 = vsel %vm491, %v471, 0
      %v547 = vsel %vm491, %v472, 0
      %v550 = vsel %vm491, %v473, 0
      %v553 = vsel %vm491, %v474, 0
      %v556 = vsel %vm491, %v475, 0
      %v559 = vsel %vm491, %v476, 0
      %v562 = vsel %vm491, %v477, 0
      %v565 = vsel %vm491, %v478, 0
      %v568 = vsel %vm491, %v479, 0
      %v571 = vsel %vm491, %v480, 0
      %v574 = vsel %vm491, %v481, 0
      %v577 = vsel %vm491, %v482, 0
      %v580 = vsel %vm491, %v483, 0
      %v583 = vsel %vm491, %v484, 0
      %v586 = vsel %vm491, %v485, 0
      %vm588 = vcmask 1043456
      %v590 = vsel %vm588, %v486, 0
      %592 = vmatpush.msra.mxu0 0.0
      %593 = vmatpush.msra.mxu0 0.0
      %594 = vmatpush.msra.mxu0 0.0
      %595 = vmatpush.msra.mxu0 0.0
      %596 = vmatpush.msra.mxu0 0.0
      %597 = vmatpush.msra.mxu0 0.0
      %598 = vmatpush.msra.mxu0 0.0
      %599 = vmatpush.msra.mxu0 0.0
      %600 = vmatpush.msra.mxu0 0.0
      %601 = vmatpush.msra.mxu0 0.0
      %602 = vmatpush.msra.mxu0 0.0
      %603 = vmatpush.msra.mxu0 0.0
      %604 = vmatpush.msra.mxu0 0.0
      %605 = vmatpush.msra.mxu0 0.0
      %606 = vmatpush.msra.mxu0 0.0
      %607 = vmatpush.msra.mxu0 %v590
      %608 = vmatmul.f32.gmra.mxu0 %v493
      %v609 = vpop.f32.mrf.mxu0
      %v610 = vadd.f32 %v489, %v609
      %611 = vmatmul.f32.gmra.mxu0 %v496
      %v612 = vpop.f32.mrf.mxu0
      %v613 = vadd.f32 %v489, %v612
      %614 = vmatmul.f32.gmra.mxu0 %v499
      %v615 = vpop.f32.mrf.mxu0
      %v616 = vadd.f32 %v489, %v615
      %617 = vmatmul.f32.gmra.mxu0 %v502
      %v618 = vpop.f32.mrf.mxu0
      %v619 = vadd.f32 %v489, %v618
      %620 = vmatmul.f32.gmra.mxu0 %v505
      %v621 = vpop.f32.mrf.mxu0
      %v622 = vadd.f32 %v489, %v621
      %623 = vmatmul.f32.gmra.mxu0 %v508
      %v624 = vpop.f32.mrf.mxu0
      %v625 = vadd.f32 %v489, %v624
      %626 = vmatmul.f32.gmra.mxu0 %v511
      %v627 = vpop.f32.mrf.mxu0
      %v628 = vadd.f32 %v489, %v627
      %629 = vmatmul.f32.gmra.mxu0 %v514
      %v630 = vpop.f32.mrf.mxu0
      %v631 = vadd.f32 %v489, %v630
      %632 = vmatmul.f32.gmra.mxu0 %v517
      %v633 = vpop.f32.mrf.mxu0
      %v634 = vadd.f32 %v489, %v633
      %635 = vmatmul.f32.gmra.mxu0 %v520
      %v636 = vpop.f32.mrf.mxu0
      %v637 = vadd.f32 %v489, %v636
      %638 = vmatmul.f32.gmra.mxu0 %v523
      %v639 = vpop.f32.mrf.mxu0
      %v640 = vadd.f32 %v489, %v639
      %641 = vmatmul.f32.gmra.mxu0 %v526
      %v642 = vpop.f32.mrf.mxu0
      %v643 = vadd.f32 %v489, %v642
      %644 = vmatmul.f32.gmra.mxu0 %v529
      %v645 = vpop.f32.mrf.mxu0
      %v646 = vadd.f32 %v489, %v645
      %647 = vmatmul.f32.gmra.mxu0 %v532
      %v648 = vpop.f32.mrf.mxu0
      %v649 = vadd.f32 %v489, %v648
      %650 = vmatmul.f32.gmra.mxu0 %v535
      %v651 = vpop.f32.mrf.mxu0
      %v652 = vadd.f32 %v489, %v651
      %653 = vmatmul.f32.gmra.mxu0 %v538
      %v654 = vpop.f32.mrf.mxu0
      %v655 = vadd.f32 %v489, %v654
      %656 = vmatmul.f32.gmra.mxu0 %v541
      %v657 = vpop.f32.mrf.mxu0
      %v658 = vadd.f32 %v489, %v657
      %659 = vmatmul.f32.gmra.mxu0 %v544
      %v660 = vpop.f32.mrf.mxu0
      %v661 = vadd.f32 %v489, %v660
      %662 = vmatmul.f32.gmra.mxu0 %v547
      %v663 = vpop.f32.mrf.mxu0
      %v664 = vadd.f32 %v489, %v663
      %665 = vmatmul.f32.gmra.mxu0 %v550
      %v666 = vpop.f32.mrf.mxu0
      %v667 = vadd.f32 %v489, %v666
      %668 = vmatmul.f32.gmra.mxu0 %v553
      %v669 = vpop.f32.mrf.mxu0
      %v670 = vadd.f32 %v489, %v669
      %671 = vmatmul.f32.gmra.mxu0 %v556
      %v672 = vpop.f32.mrf.mxu0
      %v673 = vadd.f32 %v489, %v672
      %674 = vmatmul.f32.gmra.mxu0 %v559
      %v675 = vpop.f32.mrf.mxu0
      %v676 = vadd.f32 %v489, %v675
      %677 = vmatmul.f32.gmra.mxu0 %v562
      %v678 = vpop.f32.mrf.mxu0
      %v679 = vadd.f32 %v489, %v678
      %680 = vmatmul.f32.gmra.mxu0 %v565
      %v681 = vpop.f32.mrf.mxu0
      %v682 = vadd.f32 %v489, %v681
      %683 = vmatmul.f32.gmra.mxu0 %v568
      %v684 = vpop.f32.mrf.mxu0
      %v685 = vadd.f32 %v489, %v684
      %686 = vmatmul.f32.gmra.mxu0 %v571
      %v687 = vpop.f32.mrf.mxu0
      %v688 = vadd.f32 %v489, %v687
      %689 = vmatmul.f32.gmra.mxu0 %v574
      %v690 = vpop.f32.mrf.mxu0
      %v691 = vadd.f32 %v489, %v690
      %692 = vmatmul.f32.gmra.mxu0 %v577
      %v693 = vpop.f32.mrf.mxu0
      %v694 = vadd.f32 %v489, %v693
      %695 = vmatmul.f32.gmra.mxu0 %v580
      %v696 = vpop.f32.mrf.mxu0
      %v697 = vadd.f32 %v489, %v696
      %698 = vmatmul.f32.gmra.mxu0 %v583
      %v699 = vpop.f32.mrf.mxu0
      %v700 = vadd.f32 %v489, %v699
      %701 = vmatmul.f32.gmra.mxu0 %v586
      %v702 = vpop.f32.mrf.mxu0
      %v703 = vadd.f32 %v489, %v702
      %704 = vdwg.mxu0
      %v705 = vld [vmem:[%s443] sm:$0xff]
      %v706 = vld [vmem:[%s443 + $0x8] sm:$0xff]
      %v707 = vld [vmem:[%s443 + $0x10] sm:$0xff]
      %v708 = vld [vmem:[%s443 + $0x18] sm:$0xff]
      %v709 = vld [vmem:[%s5] sm:$0xff]
      %v710 = vld [vmem:[%s5 + $0x8] sm:$0xff]
      %v711 = vld [vmem:[%s5 + $0x10] sm:$0xff]
      %v712 = vld [vmem:[%s5 + $0x18] sm:$0xff]
      %v713 = vld [vmem:[%s5 + $0x20] sm:$0xff]
      %v714 = vld [vmem:[%s5 + $0x28] sm:$0xff]
      %v715 = vld [vmem:[%s5 + $0x30] sm:$0xff]
      %v716 = vld [vmem:[%s5 + $0x38] sm:$0xff]
      %v717 = vld [vmem:[%s6] sm:$0x3]
      %v719 = vperm.slane %v717, 0
      %v720 = vperm.slane %v717, 1
      %vm723 = vcmask 261120
      %v725 = vsel %vm723, %v705, 0
      %v728 = vsel %vm723, %v706, 0
      %v731 = vsel %vm723, %v707, 0
      %v734 = vsel %vm723, %v708, 0
      %736 = vmatpush.msra.mxu0 0.0
      %737 = vmatpush.msra.mxu0 0.0
      %738 = vmatpush.msra.mxu0 0.0
      %739 = vmatpush.msra.mxu0 0.0
      %740 = vmatpush.msra.mxu0 0.0
      %741 = vmatpush.msra.mxu0 0.0
      %742 = vmatpush.msra.mxu0 0.0
      %743 = vmatpush.msra.mxu0 0.0
      %744 = vmatpush.msra.mxu0 0.0
      %745 = vmatpush.msra.mxu0 0.0
      %746 = vmatpush.msra.mxu0 0.0
      %747 = vmatpush.msra.mxu0 0.0
      %748 = vmatpush.msra.mxu0 %v715
      %749 = vmatpush.msra.mxu0 %v713
      %750 = vmatpush.msra.mxu0 %v711
      %751 = vmatpush.msra.mxu0 %v709
      %752 = vmatmul.f32.gmra.mxu0 %v725
      %v753 = vpop.f32.mrf.mxu0
      %v754 = vadd.f32 %v719, %v753
      %755 = vmatmul.f32.gmra.mxu0 %v728
      %v756 = vpop.f32.mrf.mxu0
      %v757 = vadd.f32 %v719, %v756
      %758 = vmatmul.f32.gmra.mxu0 %v731
      %v759 = vpop.f32.mrf.mxu0
      %v760 = vadd.f32 %v719, %v759
      %761 = vmatmul.f32.gmra.mxu0 %v734
      %v762 = vpop.f32.mrf.mxu0
      %v763 = vadd.f32 %v719, %v762
      %764 = vdwg.mxu0
      %765 = vmatpush.msra.mxu0 0.0
      %766 = vmatpush.msra.mxu0 0.0
      %767 = vmatpush.msra.mxu0 0.0
      %768 = vmatpush.msra.mxu0 0.0
      %769 = vmatpush.msra.mxu0 0.0
      %770 = vmatpush.msra.mxu0 0.0
      %771 = vmatpush.msra.mxu0 0.0
      %772 = vmatpush.msra.mxu0 0.0
      %773 = vmatpush.msra.mxu0 0.0
      %774 = vmatpush.msra.mxu0 0.0
      %775 = vmatpush.msra.mxu0 0.0
      %776 = vmatpush.msra.mxu0 0.0
      %777 = vmatpush.msra.mxu0 %v716
      %778 = vmatpush.msra.mxu0 %v714
      %779 = vmatpush.msra.mxu0 %v712
      %780 = vmatpush.msra.mxu0 %v710
      %781 = vmatmul.f32.gmra.mxu0 %v725
      %v782 = vpop.f32.mrf.mxu0
      %v783 = vadd.f32 %v720, %v782
      %784 = vmatmul.f32.gmra.mxu0 %v728
      %v785 = vpop.f32.mrf.mxu0
      %v786 = vadd.f32 %v720, %v785
      %787 = vmatmul.f32.gmra.mxu0 %v731
      %v788 = vpop.f32.mrf.mxu0
      %v789 = vadd.f32 %v720, %v788
      %790 = vmatmul.f32.gmra.mxu0 %v734
      %v791 = vpop.f32.mrf.mxu0
      %v792 = vadd.f32 %v720, %v791
      %793 = vdwg.mxu0
      %794 = vst [vmem:[#allocation2] sm:$0xff] %v754
      %795 = vst [vmem:[#allocation2 + $0x8] sm:$0xff] %v783
      %796 = vst [vmem:[#allocation2 + $0x10] sm:$0xff] %v757
      %797 = vst [vmem:[#allocation2 + $0x18] sm:$0xff] %v786
      %798 = vst [vmem:[#allocation2 + $0x20] sm:$0xff] %v760
      %799 = vst [vmem:[#allocation2 + $0x28] sm:$0xff] %v789
      %800 = vst [vmem:[#allocation2 + $0x30] sm:$0xff] %v763
      %801 = vst [vmem:[#allocation2 + $0x38] sm:$0xff] %v792
      %v802 = vld [vmem:[%s7] sm:$0xff]
      %v803 = vld [vmem:[%s7 + $0x8] sm:$0xff]
      %v804 = vld [vmem:[%s7 + $0x10] sm:$0xff]
      %v805 = vld [vmem:[%s7 + $0x18] sm:$0xff]
      %v807 = vsel %vm723, %v610, 0
      %v810 = vsel %vm723, %v613, 0
      %v813 = vsel %vm723, %v616, 0
      %v816 = vsel %vm723, %v619, 0
      %v819 = vsel %vm723, %v622, 0
      %v822 = vsel %vm723, %v625, 0
      %v825 = vsel %vm723, %v628, 0
      %v828 = vsel %vm723, %v631, 0
      %v831 = vsel %vm723, %v634, 0
      %v834 = vsel %vm723, %v637, 0
      %v837 = vsel %vm723, %v640, 0
      %v840 = vsel %vm723, %v643, 0
      %v843 = vsel %vm723, %v646, 0
      %v846 = vsel %vm723, %v649, 0
      %v849 = vsel %vm723, %v652, 0
      %v852 = vsel %vm723, %v655, 0
      %v855 = vsel %vm723, %v658, 0
      %v858 = vsel %vm723, %v661, 0
      %v861 = vsel %vm723, %v664, 0
      %v864 = vsel %vm723, %v667, 0
      %v867 = vsel %vm723, %v670, 0
      %v870 = vsel %vm723, %v673, 0
      %v873 = vsel %vm723, %v676, 0
      %v876 = vsel %vm723, %v679, 0
      %v879 = vsel %vm723, %v682, 0
      %v882 = vsel %vm723, %v685, 0
      %v885 = vsel %vm723, %v688, 0
      %v888 = vsel %vm723, %v691, 0
      %v891 = vsel %vm723, %v694, 0
      %v894 = vsel %vm723, %v697, 0
      %v897 = vsel %vm723, %v700, 0
      %v900 = vsel %vm723, %v703, 0
      %902 = vmatpush.msra.mxu0 0.0
      %903 = vmatpush.msra.mxu0 0.0
      %904 = vmatpush.msra.mxu0 0.0
      %905 = vmatpush.msra.mxu0 0.0
      %906 = vmatpush.msra.mxu0 0.0
      %907 = vmatpush.msra.mxu0 0.0
      %908 = vmatpush.msra.mxu0 0.0
      %909 = vmatpush.msra.mxu0 0.0
      %910 = vmatpush.msra.mxu0 0.0
      %911 = vmatpush.msra.mxu0 0.0
      %912 = vmatpush.msra.mxu0 0.0
      %913 = vmatpush.msra.mxu0 0.0
      %914 = vmatpush.msra.mxu0 %v805
      %915 = vmatpush.msra.mxu0 %v804
      %916 = vmatpush.msra.mxu0 %v803
      %917 = vmatpush.msra.mxu0 %v802
      %918 = vmatmul.f32.gmra.mxu0 %v807
      %v919 = vpop.f32.mrf.mxu0
      %v920 = vadd.f32 0.0, %v919
      %921 = vmatmul.f32.gmra.mxu0 %v810
      %v922 = vpop.f32.mrf.mxu0
      %v923 = vadd.f32 0.0, %v922
      %924 = vmatmul.f32.gmra.mxu0 %v813
      %v925 = vpop.f32.mrf.mxu0
      %v926 = vadd.f32 0.0, %v925
      %927 = vmatmul.f32.gmra.mxu0 %v816
      %v928 = vpop.f32.mrf.mxu0
      %v929 = vadd.f32 0.0, %v928
      %930 = vmatmul.f32.gmra.mxu0 %v819
      %v931 = vpop.f32.mrf.mxu0
      %v932 = vadd.f32 0.0, %v931
      %933 = vmatmul.f32.gmra.mxu0 %v822
      %v934 = vpop.f32.mrf.mxu0
      %v935 = vadd.f32 0.0, %v934
      %936 = vmatmul.f32.gmra.mxu0 %v825
      %v937 = vpop.f32.mrf.mxu0
      %v938 = vadd.f32 0.0, %v937
      %939 = vmatmul.f32.gmra.mxu0 %v828
      %v940 = vpop.f32.mrf.mxu0
      %v941 = vadd.f32 0.0, %v940
      %942 = vmatmul.f32.gmra.mxu0 %v831
      %v943 = vpop.f32.mrf.mxu0
      %v944 = vadd.f32 0.0, %v943
      %945 = vmatmul.f32.gmra.mxu0 %v834
      %v946 = vpop.f32.mrf.mxu0
      %v947 = vadd.f32 0.0, %v946
      %948 = vmatmul.f32.gmra.mxu0 %v837
      %v949 = vpop.f32.mrf.mxu0
      %v950 = vadd.f32 0.0, %v949
      %951 = vmatmul.f32.gmra.mxu0 %v840
      %v952 = vpop.f32.mrf.mxu0
      %v953 = vadd.f32 0.0, %v952
      %954 = vmatmul.f32.gmra.mxu0 %v843
      %v955 = vpop.f32.mrf.mxu0
      %v956 = vadd.f32 0.0, %v955
      %957 = vmatmul.f32.gmra.mxu0 %v846
      %v958 = vpop.f32.mrf.mxu0
      %v959 = vadd.f32 0.0, %v958
      %960 = vmatmul.f32.gmra.mxu0 %v849
      %v961 = vpop.f32.mrf.mxu0
      %v962 = vadd.f32 0.0, %v961
      %963 = vmatmul.f32.gmra.mxu0 %v852
      %v964 = vpop.f32.mrf.mxu0
      %v965 = vadd.f32 0.0, %v964
      %966 = vmatmul.f32.gmra.mxu0 %v855
      %v967 = vpop.f32.mrf.mxu0
      %v968 = vadd.f32 0.0, %v967
      %969 = vmatmul.f32.gmra.mxu0 %v858
      %v970 = vpop.f32.mrf.mxu0
      %v971 = vadd.f32 0.0, %v970
      %972 = vmatmul.f32.gmra.mxu0 %v861
      %v973 = vpop.f32.mrf.mxu0
      %v974 = vadd.f32 0.0, %v973
      %975 = vmatmul.f32.gmra.mxu0 %v864
      %v976 = vpop.f32.mrf.mxu0
      %v977 = vadd.f32 0.0, %v976
      %978 = vmatmul.f32.gmra.mxu0 %v867
      %v979 = vpop.f32.mrf.mxu0
      %v980 = vadd.f32 0.0, %v979
      %981 = vmatmul.f32.gmra.mxu0 %v870
      %v982 = vpop.f32.mrf.mxu0
      %v983 = vadd.f32 0.0, %v982
      %984 = vmatmul.f32.gmra.mxu0 %v873
      %v985 = vpop.f32.mrf.mxu0
      %v986 = vadd.f32 0.0, %v985
      %987 = vmatmul.f32.gmra.mxu0 %v876
      %v988 = vpop.f32.mrf.mxu0
      %v989 = vadd.f32 0.0, %v988
      %990 = vmatmul.f32.gmra.mxu0 %v879
      %v991 = vpop.f32.mrf.mxu0
      %v992 = vadd.f32 0.0, %v991
      %993 = vmatmul.f32.gmra.mxu0 %v882
      %v994 = vpop.f32.mrf.mxu0
      %v995 = vadd.f32 0.0, %v994
      %996 = vmatmul.f32.gmra.mxu0 %v885
      %v997 = vpop.f32.mrf.mxu0
      %v998 = vadd.f32 0.0, %v997
      %999 = vmatmul.f32.gmra.mxu0 %v888
      %v1000 = vpop.f32.mrf.mxu0
      %v1001 = vadd.f32 0.0, %v1000
      %1002 = vmatmul.f32.gmra.mxu0 %v891
      %v1003 = vpop.f32.mrf.mxu0
      %v1004 = vadd.f32 0.0, %v1003
      %1005 = vmatmul.f32.gmra.mxu0 %v894
      %v1006 = vpop.f32.mrf.mxu0
      %v1007 = vadd.f32 0.0, %v1006
      %1008 = vmatmul.f32.gmra.mxu0 %v897
      %v1009 = vpop.f32.mrf.mxu0
      %v1010 = vadd.f32 0.0, %v1009
      %1011 = vmatmul.f32.gmra.mxu0 %v900
      %v1012 = vpop.f32.mrf.mxu0
      %v1013 = vadd.f32 0.0, %v1012
      %1014 = vdwg.mxu0
      %1015 = vst [vmem:[#allocation3] sm:$0xff] %v920
      %1016 = vst [vmem:[#allocation3 + $0x8] sm:$0xff] %v923
      %1017 = vst [vmem:[#allocation3 + $0x10] sm:$0xff] %v926
      %1018 = vst [vmem:[#allocation3 + $0x18] sm:$0xff] %v929
      %1019 = vst [vmem:[#allocation3 + $0x20] sm:$0xff] %v932
      %1020 = vst [vmem:[#allocation3 + $0x28] sm:$0xff] %v935
      %1021 = vst [vmem:[#allocation3 + $0x30] sm:$0xff] %v938
      %1022 = vst [vmem:[#allocation3 + $0x38] sm:$0xff] %v941
      %1023 = vst [vmem:[#allocation3 + $0x40] sm:$0xff] %v944
      %1024 = vst [vmem:[#allocation3 + $0x48] sm:$0xff] %v947
      %1025 = vst [vmem:[#allocation3 + $0x50] sm:$0xff] %v950
      %1026 = vst [vmem:[#allocation3 + $0x58] sm:$0xff] %v953
      %1027 = vst [vmem:[#allocation3 + $0x60] sm:$0xff] %v956
      %1028 = vst [vmem:[#allocation3 + $0x68] sm:$0xff] %v959
      %1029 = vst [vmem:[#allocation3 + $0x70] sm:$0xff] %v962
      %1030 = vst [vmem:[#allocation3 + $0x78] sm:$0xff] %v965
      %1031 = vst [vmem:[#allocation3 + $0x80] sm:$0xff] %v968
      %1032 = vst [vmem:[#allocation3 + $0x88] sm:$0xff] %v971
      %1033 = vst [vmem:[#allocation3 + $0x90] sm:$0xff] %v974
      %1034 = vst [vmem:[#allocation3 + $0x98] sm:$0xff] %v977
      %1035 = vst [vmem:[#allocation3 + $0xa0] sm:$0xff] %v980
      %1036 = vst [vmem:[#allocation3 + $0xa8] sm:$0xff] %v983
      %1037 = vst [vmem:[#allocation3 + $0xb0] sm:$0xff] %v986
      %1038 = vst [vmem:[#allocation3 + $0xb8] sm:$0xff] %v989
      %1039 = vst [vmem:[#allocation3 + $0xc0] sm:$0xff] %v992
      %1040 = vst [vmem:[#allocation3 + $0xc8] sm:$0xff] %v995
      %1041 = vst [vmem:[#allocation3 + $0xd0] sm:$0xff] %v998
      %1042 = vst [vmem:[#allocation3 + $0xd8] sm:$0xff] %v1001
      %1043 = vst [vmem:[#allocation3 + $0xe0] sm:$0xff] %v1004
      %1044 = vst [vmem:[#allocation3 + $0xe8] sm:$0xff] %v1007
      %1045 = vst [vmem:[#allocation3 + $0xf0] sm:$0xff] %v1010
      %1046 = vst [vmem:[#allocation3 + $0xf8] sm:$0xff] %v1013
      %v1047 = vld [vmem:[%s448] sm:$0xff]
      %v1048 = vld [vmem:[%s448 + $0x8] sm:$0xff]
      %v1049 = vld [vmem:[%s448 + $0x10] sm:$0xff]
      %v1050 = vld [vmem:[%s448 + $0x18] sm:$0xff]
      %v1051 = vld [vmem:[#allocation3] sm:$0xff]
      %v1052 = vld [vmem:[#allocation3 + $0x8] sm:$0xff]
      %v1053 = vld [vmem:[#allocation3 + $0x10] sm:$0xff]
      %v1054 = vld [vmem:[#allocation3 + $0x18] sm:$0xff]
      %v1055 = vld [vmem:[#allocation3 + $0x20] sm:$0xff]
      %v1056 = vld [vmem:[#allocation3 + $0x28] sm:$0xff]
      %v1057 = vld [vmem:[#allocation3 + $0x30] sm:$0xff]
      %v1058 = vld [vmem:[#allocation3 + $0x38] sm:$0xff]
      %v1059 = vld [vmem:[#allocation3 + $0x40] sm:$0xff]
      %v1060 = vld [vmem:[#allocation3 + $0x48] sm:$0xff]
      %v1061 = vld [vmem:[#allocation3 + $0x50] sm:$0xff]
      %v1062 = vld [vmem:[#allocation3 + $0x58] sm:$0xff]
      %v1063 = vld [vmem:[#allocation3 + $0x60] sm:$0xff]
      %v1064 = vld [vmem:[#allocation3 + $0x68] sm:$0xff]
      %v1065 = vld [vmem:[#allocation3 + $0x70] sm:$0xff]
      %v1066 = vld [vmem:[#allocation3 + $0x78] sm:$0xff]
      %v1067 = vld [vmem:[#allocation3 + $0x80] sm:$0xff]
      %v1068 = vld [vmem:[#allocation3 + $0x88] sm:$0xff]
      %v1069 = vld [vmem:[#allocation3 + $0x90] sm:$0xff]
      %v1070 = vld [vmem:[#allocation3 + $0x98] sm:$0xff]
      %v1071 = vld [vmem:[#allocation3 + $0xa0] sm:$0xff]
      %v1072 = vld [vmem:[#allocation3 + $0xa8] sm:$0xff]
      %v1073 = vld [vmem:[#allocation3 + $0xb0] sm:$0xff]
      %v1074 = vld [vmem:[#allocation3 + $0xb8] sm:$0xff]
      %v1075 = vld [vmem:[#allocation3 + $0xc0] sm:$0xff]
      %v1076 = vld [vmem:[#allocation3 + $0xc8] sm:$0xff]
      %v1077 = vld [vmem:[#allocation3 + $0xd0] sm:$0xff]
      %v1078 = vld [vmem:[#allocation3 + $0xd8] sm:$0xff]
      %v1079 = vld [vmem:[#allocation3 + $0xe0] sm:$0xff]
      %v1080 = vld [vmem:[#allocation3 + $0xe8] sm:$0xff]
      %v1081 = vld [vmem:[#allocation3 + $0xf0] sm:$0xff]
      %v1082 = vld [vmem:[#allocation3 + $0xf8] sm:$0xff]
      %v1083 = vld [vmem:[%s8] sm:$0xff]
      %v1084 = vld [vmem:[%s8 + $0x8] sm:$0xff]
      %v1085 = vld [vmem:[%s8 + $0x10] sm:$0xff]
      %v1086 = vld [vmem:[%s8 + $0x18] sm:$0xff]
      %1088 = vset.pattern.permute.xlu0 0
      %1089 = vperm.xlu0 %1088, %v1047
      %v1090 = vpop.permute.xlu0 %1089
      %1093 = vset.pattern.permute.xlu0 0
      %1094 = vperm.xlu0 %1093, %v1048
      %v1095 = vpop.permute.xlu0 %1094
      %1098 = vset.pattern.permute.xlu0 0
      %1099 = vperm.xlu0 %1098, %v1049
      %v1100 = vpop.permute.xlu0 %1099
      %1103 = vset.pattern.permute.xlu0 0
      %1104 = vperm.xlu0 %1103, %v1050
      %v1105 = vpop.permute.xlu0 %1104
      %v1107 = vmul.f32 %v1090, %v1083
      %v1108 = vmul.f32 %v1095, %v1084
      %v1109 = vmul.f32 %v1100, %v1085
      %v1110 = vmul.f32 %v1105, %v1086
      %vm1111 = vcmask 523264
      %v1112 = vsel %vm1111, %v1107, 0.0
      %v1113 = vsel %vm1111, %v1108, 0.0
      %v1114 = vadd.f32 %v1112, %v1113
      %v1115 = vsel %vm1111, %v1109, 0.0
      %v1116 = vadd.f32 %v1114, %v1115
      %v1117 = vsel %vm1111, %v1110, 0.0
      %v1118 = vadd.f32 %v1116, %v1117
      %v1119 = vrot.slane %v1118, 4
      %v1120 = vadd.f32 %v1118, %v1119
      %v1121 = vrot.slane %v1120, 2
      %v1122 = vadd.f32 %v1120, %v1121
      %v1123 = vrot.slane %v1122, 1
      %v1124 = vadd.f32 %v1122, %v1123
      %v1125 = vld [vmem:[%s9] sm:$0x1]
      %v1126 = vadd.f32 %v1124, %v1125
      %v1127 = vperm.slane %v1126, 0
      %v1128 = vadd.f32 %v1051, %v1127
      %v1129 = vadd.f32 %v1052, %v1127
      %v1130 = vadd.f32 %v1053, %v1127
      %v1131 = vadd.f32 %v1054, %v1127
      %v1132 = vadd.f32 %v1055, %v1127
      %v1133 = vadd.f32 %v1056, %v1127
      %v1134 = vadd.f32 %v1057, %v1127
      %v1135 = vadd.f32 %v1058, %v1127
      %v1136 = vadd.f32 %v1059, %v1127
      %v1137 = vadd.f32 %v1060, %v1127
      %v1138 = vadd.f32 %v1061, %v1127
      %v1139 = vadd.f32 %v1062, %v1127
      %v1140 = vadd.f32 %v1063, %v1127
      %v1141 = vadd.f32 %v1064, %v1127
      %v1142 = vadd.f32 %v1065, %v1127
      %v1143 = vadd.f32 %v1066, %v1127
      %v1144 = vadd.f32 %v1067, %v1127
      %v1145 = vadd.f32 %v1068, %v1127
      %v1146 = vadd.f32 %v1069, %v1127
      %v1147 = vadd.f32 %v1070, %v1127
      %v1148 = vadd.f32 %v1071, %v1127
      %v1149 = vadd.f32 %v1072, %v1127
      %v1150 = vadd.f32 %v1073, %v1127
      %v1151 = vadd.f32 %v1074, %v1127
      %v1152 = vadd.f32 %v1075, %v1127
      %v1153 = vadd.f32 %v1076, %v1127
      %v1154 = vadd.f32 %v1077, %v1127
      %v1155 = vadd.f32 %v1078, %v1127
      %v1156 = vadd.f32 %v1079, %v1127
      %v1157 = vadd.f32 %v1080, %v1127
      %v1158 = vadd.f32 %v1081, %v1127
      %v1159 = vadd.f32 %v1082, %v1127
      %v1160 = vtanh.pop %v1128
      %v1161 = vtanh.pop %v1129
      %v1162 = vtanh.pop %v1130
      %v1163 = vtanh.pop %v1131
      %v1164 = vtanh.pop %v1132
      %v1165 = vtanh.pop %v1133
      %v1166 = vtanh.pop %v1134
      %v1167 = vtanh.pop %v1135
      %v1168 = vtanh.pop %v1136
      %v1169 = vtanh.pop %v1137
      %v1170 = vtanh.pop %v1138
      %v1171 = vtanh.pop %v1139
      %v1172 = vtanh.pop %v1140
      %v1173 = vtanh.pop %v1141
      %v1174 = vtanh.pop %v1142
      %v1175 = vtanh.pop %v1143
      %v1176 = vtanh.pop %v1144
      %v1177 = vtanh.pop %v1145
      %v1178 = vtanh.pop %v1146
      %v1179 = vtanh.pop %v1147
      %v1180 = vtanh.pop %v1148
      %v1181 = vtanh.pop %v1149
      %v1182 = vtanh.pop %v1150
      %v1183 = vtanh.pop %v1151
      %v1184 = vtanh.pop %v1152
      %v1185 = vtanh.pop %v1153
      %v1186 = vtanh.pop %v1154
      %v1187 = vtanh.pop %v1155
      %v1188 = vtanh.pop %v1156
      %v1189 = vtanh.pop %v1157
      %v1190 = vtanh.pop %v1158
      %v1191 = vtanh.pop %v1159
      %v1192 = vld [vmem:[%s10] sm:$0x1]
      %v1194 = vperm.slane %v1192, 0
      %v1196 = vmul.f32 %v1160, %v1194
      %v1197 = vmul.f32 %v1161, %v1194
      %v1198 = vmul.f32 %v1162, %v1194
      %v1199 = vmul.f32 %v1163, %v1194
      %v1200 = vmul.f32 %v1164, %v1194
      %v1201 = vmul.f32 %v1165, %v1194
      %v1202 = vmul.f32 %v1166, %v1194
      %v1203 = vmul.f32 %v1167, %v1194
      %v1204 = vmul.f32 %v1168, %v1194
      %v1205 = vmul.f32 %v1169, %v1194
      %v1206 = vmul.f32 %v1170, %v1194
      %v1207 = vmul.f32 %v1171, %v1194
      %v1208 = vmul.f32 %v1172, %v1194
      %v1209 = vmul.f32 %v1173, %v1194
      %v1210 = vmul.f32 %v1174, %v1194
      %v1211 = vmul.f32 %v1175, %v1194
      %v1212 = vmul.f32 %v1176, %v1194
      %v1213 = vmul.f32 %v1177, %v1194
      %v1214 = vmul.f32 %v1178, %v1194
      %v1215 = vmul.f32 %v1179, %v1194
      %v1216 = vmul.f32 %v1180, %v1194
      %v1217 = vmul.f32 %v1181, %v1194
      %v1218 = vmul.f32 %v1182, %v1194
      %v1219 = vmul.f32 %v1183, %v1194
      %v1220 = vmul.f32 %v1184, %v1194
      %v1221 = vmul.f32 %v1185, %v1194
      %v1222 = vmul.f32 %v1186, %v1194
      %v1223 = vmul.f32 %v1187, %v1194
      %v1224 = vmul.f32 %v1188, %v1194
      %v1225 = vmul.f32 %v1189, %v1194
      %v1226 = vmul.f32 %v1190, %v1194
      %v1227 = vmul.f32 %v1191, %v1194
      %v1228 = vsel %vm1111, %v1196, 0.0
      %1229 = vadd.xlane.f32.xlu0 %v1228
      %v1230 = vpop.xlane.xlu0 %1229
      %v1231 = vsel %vm1111, %v1197, 0.0
      %1232 = vadd.xlane.f32.xlu0 %v1231
      %v1233 = vpop.xlane.xlu0 %1232
      %v1234 = vsel %vm1111, %v1198, 0.0
      %1235 = vadd.xlane.f32.xlu0 %v1234
      %v1236 = vpop.xlane.xlu0 %1235
      %v1237 = vsel %vm1111, %v1199, 0.0
      %1238 = vadd.xlane.f32.xlu0 %v1237
      %v1239 = vpop.xlane.xlu0 %1238
      %v1240 = vsel %vm1111, %v1200, 0.0
      %1241 = vadd.xlane.f32.xlu0 %v1240
      %v1242 = vpop.xlane.xlu0 %1241
      %v1243 = vsel %vm1111, %v1201, 0.0
      %1244 = vadd.xlane.f32.xlu0 %v1243
      %v1245 = vpop.xlane.xlu0 %1244
      %v1246 = vsel %vm1111, %v1202, 0.0
      %1247 = vadd.xlane.f32.xlu0 %v1246
      %v1248 = vpop.xlane.xlu0 %1247
      %v1249 = vsel %vm1111, %v1203, 0.0
      %1250 = vadd.xlane.f32.xlu0 %v1249
      %v1251 = vpop.xlane.xlu0 %1250
      %v1252 = vsel %vm1111, %v1204, 0.0
      %1253 = vadd.xlane.f32.xlu0 %v1252
      %v1254 = vpop.xlane.xlu0 %1253
      %v1255 = vsel %vm1111, %v1205, 0.0
      %1256 = vadd.xlane.f32.xlu0 %v1255
      %v1257 = vpop.xlane.xlu0 %1256
      %v1258 = vsel %vm1111, %v1206, 0.0
      %1259 = vadd.xlane.f32.xlu0 %v1258
      %v1260 = vpop.xlane.xlu0 %1259
      %v1261 = vsel %vm1111, %v1207, 0.0
      %1262 = vadd.xlane.f32.xlu0 %v1261
      %v1263 = vpop.xlane.xlu0 %1262
      %v1264 = vsel %vm1111, %v1208, 0.0
      %1265 = vadd.xlane.f32.xlu0 %v1264
      %v1266 = vpop.xlane.xlu0 %1265
      %v1267 = vsel %vm1111, %v1209, 0.0
      %1268 = vadd.xlane.f32.xlu0 %v1267
      %v1269 = vpop.xlane.xlu0 %1268
      %v1270 = vsel %vm1111, %v1210, 0.0
      %1271 = vadd.xlane.f32.xlu0 %v1270
      %v1272 = vpop.xlane.xlu0 %1271
      %v1273 = vsel %vm1111, %v1211, 0.0
      %1274 = vadd.xlane.f32.xlu0 %v1273
      %v1275 = vpop.xlane.xlu0 %1274
      %v1276 = vsel %vm1111, %v1212, 0.0
      %1277 = vadd.xlane.f32.xlu0 %v1276
      %v1278 = vpop.xlane.xlu0 %1277
      %v1279 = vsel %vm1111, %v1213, 0.0
      %1280 = vadd.xlane.f32.xlu0 %v1279
      %v1281 = vpop.xlane.xlu0 %1280
      %v1282 = vsel %vm1111, %v1214, 0.0
      %1283 = vadd.xlane.f32.xlu0 %v1282
      %v1284 = vpop.xlane.xlu0 %1283
      %v1285 = vsel %vm1111, %v1215, 0.0
      %1286 = vadd.xlane.f32.xlu0 %v1285
      %v1287 = vpop.xlane.xlu0 %1286
      %v1288 = vsel %vm1111, %v1216, 0.0
      %1289 = vadd.xlane.f32.xlu0 %v1288
      %v1290 = vpop.xlane.xlu0 %1289
      %v1291 = vsel %vm1111, %v1217, 0.0
      %1292 = vadd.xlane.f32.xlu0 %v1291
      %v1293 = vpop.xlane.xlu0 %1292
      %v1294 = vsel %vm1111, %v1218, 0.0
      %1295 = vadd.xlane.f32.xlu0 %v1294
      %v1296 = vpop.xlane.xlu0 %1295
      %v1297 = vsel %vm1111, %v1219, 0.0
      %1298 = vadd.xlane.f32.xlu0 %v1297
      %v1299 = vpop.xlane.xlu0 %1298
      %v1300 = vsel %vm1111, %v1220, 0.0
      %1301 = vadd.xlane.f32.xlu0 %v1300
      %v1302 = vpop.xlane.xlu0 %1301
      %v1303 = vsel %vm1111, %v1221, 0.0
      %1304 = vadd.xlane.f32.xlu0 %v1303
      %v1305 = vpop.xlane.xlu0 %1304
      %v1306 = vsel %vm1111, %v1222, 0.0
      %1307 = vadd.xlane.f32.xlu0 %v1306
      %v1308 = vpop.xlane.xlu0 %1307
      %v1309 = vsel %vm1111, %v1223, 0.0
      %1310 = vadd.xlane.f32.xlu0 %v1309
      %v1311 = vpop.xlane.xlu0 %1310
      %v1312 = vsel %vm1111, %v1224, 0.0
      %1313 = vadd.xlane.f32.xlu0 %v1312
      %v1314 = vpop.xlane.xlu0 %1313
      %v1315 = vsel %vm1111, %v1225, 0.0
      %1316 = vadd.xlane.f32.xlu0 %v1315
      %v1317 = vpop.xlane.xlu0 %1316
      %v1318 = vsel %vm1111, %v1226, 0.0
      %1319 = vadd.xlane.f32.xlu0 %v1318
      %v1320 = vpop.xlane.xlu0 %1319
      %v1321 = vsel %vm1111, %v1227, 0.0
      %1322 = vadd.xlane.f32.xlu0 %v1321
      %v1323 = vpop.xlane.xlu0 %1322
      %v1324 = vld [vmem:[%s11] sm:$0x1]
      %v1326 = vperm.slane %v1324, 0
      %v1328 = vadd.f32 %v1230, %v1326
      %v1329 = vadd.f32 %v1233, %v1326
      %v1330 = vadd.f32 %v1236, %v1326
      %v1331 = vadd.f32 %v1239, %v1326
      %v1332 = vadd.f32 %v1242, %v1326
      %v1333 = vadd.f32 %v1245, %v1326
      %v1334 = vadd.f32 %v1248, %v1326
      %v1335 = vadd.f32 %v1251, %v1326
      %v1336 = vadd.f32 %v1254, %v1326
      %v1337 = vadd.f32 %v1257, %v1326
      %v1338 = vadd.f32 %v1260, %v1326
      %v1339 = vadd.f32 %v1263, %v1326
      %v1340 = vadd.f32 %v1266, %v1326
      %v1341 = vadd.f32 %v1269, %v1326
      %v1342 = vadd.f32 %v1272, %v1326
      %v1343 = vadd.f32 %v1275, %v1326
      %v1344 = vadd.f32 %v1278, %v1326
      %v1345 = vadd.f32 %v1281, %v1326
      %v1346 = vadd.f32 %v1284, %v1326
      %v1347 = vadd.f32 %v1287, %v1326
      %v1348 = vadd.f32 %v1290, %v1326
      %v1349 = vadd.f32 %v1293, %v1326
      %v1350 = vadd.f32 %v1296, %v1326
      %v1351 = vadd.f32 %v1299, %v1326
      %v1352 = vadd.f32 %v1302, %v1326
      %v1353 = vadd.f32 %v1305, %v1326
      %v1354 = vadd.f32 %v1308, %v1326
      %v1355 = vadd.f32 %v1311, %v1326
      %v1356 = vadd.f32 %v1314, %v1326
      %v1357 = vadd.f32 %v1317, %v1326
      %v1358 = vadd.f32 %v1320, %v1326
      %v1359 = vadd.f32 %v1323, %v1326
      %vm1360 = vcmask 7168
      %v1361 = vsel %vm1360, %v1328, -inf
      %v1362 = vsel %vm1360, %v1329, -inf
      %v1363 = vsel %vm1360, %v1330, -inf
      %v1364 = vsel %vm1360, %v1331, -inf
      %v1365 = vsel %vm1360, %v1332, -inf
      %v1366 = vmax.f32 %v1361, %v1365
      %v1367 = vsel %vm1360, %v1333, -inf
      %v1368 = vmax.f32 %v1362, %v1367
      %v1369 = vsel %vm1360, %v1334, -inf
      %v1370 = vmax.f32 %v1363, %v1369
      %v1371 = vsel %vm1360, %v1335, -inf
      %v1372 = vmax.f32 %v1364, %v1371
      %v1373 = vsel %vm1360, %v1336, -inf
      %v1374 = vmax.f32 %v1366, %v1373
      %v1375 = vsel %vm1360, %v1337, -inf
      %v1376 = vmax.f32 %v1368, %v1375
      %v1377 = vsel %vm1360, %v1338, -inf
      %v1378 = vmax.f32 %v1370, %v1377
      %v1379 = vsel %vm1360, %v1339, -inf
      %v1380 = vmax.f32 %v1372, %v1379
      %v1381 = vsel %vm1360, %v1340, -inf
      %v1382 = vmax.f32 %v1374, %v1381
      %v1383 = vsel %vm1360, %v1341, -inf
      %v1384 = vmax.f32 %v1376, %v1383
      %v1385 = vsel %vm1360, %v1342, -inf
      %v1386 = vmax.f32 %v1378, %v1385
      %v1387 = vsel %vm1360, %v1343, -inf
      %v1388 = vmax.f32 %v1380, %v1387
      %v1389 = vsel %vm1360, %v1344, -inf
      %v1390 = vmax.f32 %v1382, %v1389
      %v1391 = vsel %vm1360, %v1345, -inf
      %v1392 = vmax.f32 %v1384, %v1391
      %v1393 = vsel %vm1360, %v1346, -inf
      %v1394 = vmax.f32 %v1386, %v1393
      %v1395 = vsel %vm1360, %v1347, -inf
      %v1396 = vmax.f32 %v1388, %v1395
      %v1397 = vsel %vm1360, %v1348, -inf
      %v1398 = vmax.f32 %v1390, %v1397
      %v1399 = vsel %vm1360, %v1349, -inf
      %v1400 = vmax.f32 %v1392, %v1399
      %v1401 = vsel %vm1360, %v1350, -inf
      %v1402 = vmax.f32 %v1394, %v1401
      %v1403 = vsel %vm1360, %v1351, -inf
      %v1404 = vmax.f32 %v1396, %v1403
      %v1405 = vsel %vm1360, %v1352, -inf
      %v1406 = vmax.f32 %v1398, %v1405
      %v1407 = vsel %vm1360, %v1353, -inf
      %v1408 = vmax.f32 %v1400, %v1407
      %v1409 = vsel %vm1360, %v1354, -inf
      %v1410 = vmax.f32 %v1402, %v1409
      %v1411 = vsel %vm1360, %v1355, -inf
      %v1412 = vmax.f32 %v1404, %v1411
      %v1413 = vsel %vm1360, %v1356, -inf
      %v1414 = vmax.f32 %v1406, %v1413
      %v1415 = vsel %vm1360, %v1357, -inf
      %v1416 = vmax.f32 %v1408, %v1415
      %v1417 = vsel %vm1360, %v1358, -inf
      %v1418 = vmax.f32 %v1410, %v1417
      %v1419 = vsel %vm1360, %v1359, -inf
      %v1420 = vmax.f32 %v1412, %v1419
      %v1421 = vmax.f32 %v1414, %v1416
      %v1422 = vmax.f32 %v1418, %v1420
      %v1423 = vmax.f32 %v1421, %v1422
      %v1424 = vrot.slane %v1423, 4
      %v1425 = vmax.f32 %v1423, %v1424
      %v1426 = vrot.slane %v1425, 2
      %v1427 = vmax.f32 %v1425, %v1426
      %v1428 = vrot.slane %v1427, 1
      %v1429 = vmax.f32 %v1427, %v1428
      %v1430 = vsub.f32 %v1328, %v1429
      %v1431 = vsub.f32 %v1329, %v1429
      %v1432 = vsub.f32 %v1330, %v1429
      %v1433 = vsub.f32 %v1331, %v1429
      %v1434 = vsub.f32 %v1332, %v1429
      %v1435 = vsub.f32 %v1333, %v1429
      %v1436 = vsub.f32 %v1334, %v1429
      %v1437 = vsub.f32 %v1335, %v1429
      %v1438 = vsub.f32 %v1336, %v1429
      %v1439 = vsub.f32 %v1337, %v1429
      %v1440 = vsub.f32 %v1338, %v1429
      %v1441 = vsub.f32 %v1339, %v1429
      %v1442 = vsub.f32 %v1340, %v1429
      %v1443 = vsub.f32 %v1341, %v1429
      %v1444 = vsub.f32 %v1342, %v1429
      %v1445 = vsub.f32 %v1343, %v1429
      %v1446 = vsub.f32 %v1344, %v1429
      %v1447 = vsub.f32 %v1345, %v1429
      %v1448 = vsub.f32 %v1346, %v1429
      %v1449 = vsub.f32 %v1347, %v1429
      %v1450 = vsub.f32 %v1348, %v1429
      %v1451 = vsub.f32 %v1349, %v1429
      %v1452 = vsub.f32 %v1350, %v1429
      %v1453 = vsub.f32 %v1351, %v1429
      %v1454 = vsub.f32 %v1352, %v1429
      %v1455 = vsub.f32 %v1353, %v1429
      %v1456 = vsub.f32 %v1354, %v1429
      %v1457 = vsub.f32 %v1355, %v1429
      %v1458 = vsub.f32 %v1356, %v1429
      %v1459 = vsub.f32 %v1357, %v1429
      %v1460 = vsub.f32 %v1358, %v1429
      %v1461 = vsub.f32 %v1359, %v1429
      %v1462 = vmul.f32 %v1430, 1.442695
      %v1463 = vpow.pop %v1462
      %v1464 = vmul.f32 %v1431, 1.442695
      %v1465 = vpow.pop %v1464
      %v1466 = vmul.f32 %v1432, 1.442695
      %v1467 = vpow.pop %v1466
      %v1468 = vmul.f32 %v1433, 1.442695
      %v1469 = vpow.pop %v1468
      %v1470 = vmul.f32 %v1434, 1.442695
      %v1471 = vpow.pop %v1470
      %v1472 = vmul.f32 %v1435, 1.442695
      %v1473 = vpow.pop %v1472
      %v1474 = vmul.f32 %v1436, 1.442695
      %v1475 = vpow.pop %v1474
      %v1476 = vmul.f32 %v1437, 1.442695
      %v1477 = vpow.pop %v1476
      %v1478 = vmul.f32 %v1438, 1.442695
      %v1479 = vpow.pop %v1478
      %v1480 = vmul.f32 %v1439, 1.442695
      %v1481 = vpow.pop %v1480
      %v1482 = vmul.f32 %v1440, 1.442695
      %v1483 = vpow.pop %v1482
      %v1484 = vmul.f32 %v1441, 1.442695
      %v1485 = vpow.pop %v1484
      %v1486 = vmul.f32 %v1442, 1.442695
      %v1487 = vpow.pop %v1486
      %v1488 = vmul.f32 %v1443, 1.442695
      %v1489 = vpow.pop %v1488
      %v1490 = vmul.f32 %v1444, 1.442695
      %v1491 = vpow.pop %v1490
      %v1492 = vmul.f32 %v1445, 1.442695
      %v1493 = vpow.pop %v1492
      %v1494 = vmul.f32 %v1446, 1.442695
      %v1495 = vpow.pop %v1494
      %v1496 = vmul.f32 %v1447, 1.442695
      %v1497 = vpow.pop %v1496
      %v1498 = vmul.f32 %v1448, 1.442695
      %v1499 = vpow.pop %v1498
      %v1500 = vmul.f32 %v1449, 1.442695
      %v1501 = vpow.pop %v1500
      %v1502 = vmul.f32 %v1450, 1.442695
      %v1503 = vpow.pop %v1502
      %v1504 = vmul.f32 %v1451, 1.442695
      %v1505 = vpow.pop %v1504
      %v1506 = vmul.f32 %v1452, 1.442695
      %v1507 = vpow.pop %v1506
      %v1508 = vmul.f32 %v1453, 1.442695
      %v1509 = vpow.pop %v1508
      %v1510 = vmul.f32 %v1454, 1.442695
      %v1511 = vpow.pop %v1510
      %v1512 = vmul.f32 %v1455, 1.442695
      %v1513 = vpow.pop %v1512
      %v1514 = vmul.f32 %v1456, 1.442695
      %v1515 = vpow.pop %v1514
      %v1516 = vmul.f32 %v1457, 1.442695
      %v1517 = vpow.pop %v1516
      %v1518 = vmul.f32 %v1458, 1.442695
      %v1519 = vpow.pop %v1518
      %v1520 = vmul.f32 %v1459, 1.442695
      %v1521 = vpow.pop %v1520
      %v1522 = vmul.f32 %v1460, 1.442695
      %v1523 = vpow.pop %v1522
      %v1524 = vmul.f32 %v1461, 1.442695
      %v1525 = vpow.pop %v1524
      %v1526 = vsel %vm1360, %v1463, 0.0
      %v1527 = vsel %vm1360, %v1465, 0.0
      %v1528 = vadd.f32 %v1526, %v1527
      %v1529 = vsel %vm1360, %v1467, 0.0
      %v1530 = vadd.f32 %v1528, %v1529
      %v1531 = vsel %vm1360, %v1469, 0.0
      %v1532 = vadd.f32 %v1530, %v1531
      %v1533 = vsel %vm1360, %v1471, 0.0
      %v1534 = vadd.f32 %v1532, %v1533
      %v1535 = vsel %vm1360, %v1473, 0.0
      %v1536 = vadd.f32 %v1534, %v1535
      %v1537 = vsel %vm1360, %v1475, 0.0
      %v1538 = vadd.f32 %v1536, %v1537
      %v1539 = vsel %vm1360, %v1477, 0.0
      %v1540 = vadd.f32 %v1538, %v1539
      %v1541 = vsel %vm1360, %v1479, 0.0
      %v1542 = vadd.f32 %v1540, %v1541
      %v1543 = vsel %vm1360, %v1481, 0.0
      %v1544 = vadd.f32 %v1542, %v1543
      %v1545 = vsel %vm1360, %v1483, 0.0
      %v1546 = vadd.f32 %v1544, %v1545
      %v1547 = vsel %vm1360, %v1485, 0.0
      %v1548 = vadd.f32 %v1546, %v1547
      %v1549 = vsel %vm1360, %v1487, 0.0
      %v1550 = vadd.f32 %v1548, %v1549
      %v1551 = vsel %vm1360, %v1489, 0.0
      %v1552 = vadd.f32 %v1550, %v1551
      %v1553 = vsel %vm1360, %v1491, 0.0
      %v1554 = vadd.f32 %v1552, %v1553
      %v1555 = vsel %vm1360, %v1493, 0.0
      %v1556 = vadd.f32 %v1554, %v1555
      %v1557 = vsel %vm1360, %v1495, 0.0
      %v1558 = vadd.f32 %v1556, %v1557
      %v1559 = vsel %vm1360, %v1497, 0.0
      %v1560 = vadd.f32 %v1558, %v1559
      %v1561 = vsel %vm1360, %v1499, 0.0
      %v1562 = vadd.f32 %v1560, %v1561
      %v1563 = vsel %vm1360, %v1501, 0.0
      %v1564 = vadd.f32 %v1562, %v1563
      %v1565 = vsel %vm1360, %v1503, 0.0
      %v1566 = vadd.f32 %v1564, %v1565
      %v1567 = vsel %vm1360, %v1505, 0.0
      %v1568 = vadd.f32 %v1566, %v1567
      %v1569 = vsel %vm1360, %v1507, 0.0
      %v1570 = vadd.f32 %v1568, %v1569
      %v1571 = vsel %vm1360, %v1509, 0.0
      %v1572 = vadd.f32 %v1570, %v1571
      %v1573 = vsel %vm1360, %v1511, 0.0
      %v1574 = vadd.f32 %v1572, %v1573
      %v1575 = vsel %vm1360, %v1513, 0.0
      %v1576 = vadd.f32 %v1574, %v1575
      %v1577 = vsel %vm1360, %v1515, 0.0
      %v1578 = vadd.f32 %v1576, %v1577
      %v1579 = vsel %vm1360, %v1517, 0.0
      %v1580 = vadd.f32 %v1578, %v1579
      %v1581 = vsel %vm1360, %v1519, 0.0
      %v1582 = vadd.f32 %v1580, %v1581
      %v1583 = vsel %vm1360, %v1521, 0.0
      %v1584 = vadd.f32 %v1582, %v1583
      %v1585 = vsel %vm1360, %v1523, 0.0
      %v1586 = vadd.f32 %v1584, %v1585
      %v1587 = vsel %vm1360, %v1525, 0.0
      %v1588 = vadd.f32 %v1586, %v1587
      %v1589 = vrot.slane %v1588, 4
      %v1590 = vadd.f32 %v1588, %v1589
      %v1591 = vrot.slane %v1590, 2
      %v1592 = vadd.f32 %v1590, %v1591
      %v1593 = vrot.slane %v1592, 1
      %v1594 = vadd.f32 %v1592, %v1593
      %v1595 = vrcp.pop %v1594
      %v1596 = vmul.f32 %v1594, %v1595
      %v1597 = vsub.f32 1.0, %v1596
      %v1598 = vmul.f32 %v1595, %v1597
      %v1599 = vadd.f32 %v1595, %v1598
      %vm1600 = vweird.f32 %v1594
      %vm1601 = vweird.f32 %v1595
      %vm1602 = vmor %vm1600, %vm1601
      %v1603 = vsel %vm1602, %v1595, %v1599
      %v1604 = vand.u32 2147483647, %v1594
      %vm1605 = vcmp.eq.f32.partialorder %v1604, 8.507059e+37
      %v1606 = vand.u32 %v1594, 2147483648
      %v1607 = vor.u32 1.1754944e-38, %v1606
      %v1608 = vsel %vm1605, %v1607, %v1603
      %v1609 = vmul.f32 %v1463, %v1608
      %v1610 = vmul.f32 %v1465, %v1608
      %v1611 = vmul.f32 %v1467, %v1608
      %v1612 = vmul.f32 %v1469, %v1608
      %v1613 = vmul.f32 %v1471, %v1608
      %v1614 = vmul.f32 %v1473, %v1608
      %v1615 = vmul.f32 %v1475, %v1608
      %v1616 = vmul.f32 %v1477, %v1608
      %v1617 = vmul.f32 %v1479, %v1608
      %v1618 = vmul.f32 %v1481, %v1608
      %v1619 = vmul.f32 %v1483, %v1608
      %v1620 = vmul.f32 %v1485, %v1608
      %v1621 = vmul.f32 %v1487, %v1608
      %v1622 = vmul.f32 %v1489, %v1608
      %v1623 = vmul.f32 %v1491, %v1608
      %v1624 = vmul.f32 %v1493, %v1608
      %v1625 = vmul.f32 %v1495, %v1608
      %v1626 = vmul.f32 %v1497, %v1608
      %v1627 = vmul.f32 %v1499, %v1608
      %v1628 = vmul.f32 %v1501, %v1608
      %v1629 = vmul.f32 %v1503, %v1608
      %v1630 = vmul.f32 %v1505, %v1608
      %v1631 = vmul.f32 %v1507, %v1608
      %v1632 = vmul.f32 %v1509, %v1608
      %v1633 = vmul.f32 %v1511, %v1608
      %v1634 = vmul.f32 %v1513, %v1608
      %v1635 = vmul.f32 %v1515, %v1608
      %v1636 = vmul.f32 %v1517, %v1608
      %v1637 = vmul.f32 %v1519, %v1608
      %v1638 = vmul.f32 %v1521, %v1608
      %v1639 = vmul.f32 %v1523, %v1608
      %v1640 = vmul.f32 %v1525, %v1608
      %v1641 = vld [vmem:[#allocation2] sm:$0xff]
      %v1642 = vld [vmem:[#allocation2 + $0x8] sm:$0xff]
      %v1643 = vld [vmem:[#allocation2 + $0x10] sm:$0xff]
      %v1644 = vld [vmem:[#allocation2 + $0x18] sm:$0xff]
      %v1645 = vld [vmem:[#allocation2 + $0x20] sm:$0xff]
      %v1646 = vld [vmem:[#allocation2 + $0x28] sm:$0xff]
      %v1647 = vld [vmem:[#allocation2 + $0x30] sm:$0xff]
      %v1648 = vld [vmem:[#allocation2 + $0x38] sm:$0xff]
      %1649 = vmatpush.msra.mxu0 %v1624
      %1650 = vmatpush.msra.mxu0 %v1623
      %1651 = vmatpush.msra.mxu0 %v1622
      %1652 = vmatpush.msra.mxu0 %v1621
      %1653 = vmatpush.msra.mxu0 %v1620
      %1654 = vmatpush.msra.mxu0 %v1619
      %1655 = vmatpush.msra.mxu0 %v1618
      %1656 = vmatpush.msra.mxu0 %v1617
      %1657 = vmatpush.msra.mxu0 %v1616
      %1658 = vmatpush.msra.mxu0 %v1615
      %1659 = vmatpush.msra.mxu0 %v1614
      %1660 = vmatpush.msra.mxu0 %v1613
      %1661 = vmatpush.msra.mxu0 %v1612
      %1662 = vmatpush.msra.mxu0 %v1611
      %1663 = vmatpush.msra.mxu0 %v1610
      %1664 = vmatpush.msra.mxu0 %v1609
      %1665 = vmatmul.f32.gmra.mxu0 %v1641
      %v1666 = vpop.f32.mrf.mxu0
      %v1667 = vadd.f32 0.0, %v1666
      %1668 = vmatmul.f32.gmra.mxu0 %v1643
      %v1669 = vpop.f32.mrf.mxu0
      %v1670 = vadd.f32 0.0, %v1669
      %1671 = vmatmul.f32.gmra.mxu0 %v1645
      %v1672 = vpop.f32.mrf.mxu0
      %v1673 = vadd.f32 0.0, %v1672
      %1674 = vmatmul.f32.gmra.mxu0 %v1647
      %v1675 = vpop.f32.mrf.mxu0
      %v1676 = vadd.f32 0.0, %v1675
      %1677 = vdwg.mxu0
      %1678 = vmatpush.msra.mxu0 %v1640
      %1679 = vmatpush.msra.mxu0 %v1639
      %1680 = vmatpush.msra.mxu0 %v1638
      %1681 = vmatpush.msra.mxu0 %v1637
      %1682 = vmatpush.msra.mxu0 %v1636
      %1683 = vmatpush.msra.mxu0 %v1635
      %1684 = vmatpush.msra.mxu0 %v1634
      %1685 = vmatpush.msra.mxu0 %v1633
      %1686 = vmatpush.msra.mxu0 %v1632
      %1687 = vmatpush.msra.mxu0 %v1631
      %1688 = vmatpush.msra.mxu0 %v1630
      %1689 = vmatpush.msra.mxu0 %v1629
      %1690 = vmatpush.msra.mxu0 %v1628
      %1691 = vmatpush.msra.mxu0 %v1627
      %1692 = vmatpush.msra.mxu0 %v1626
      %1693 = vmatpush.msra.mxu0 %v1625
      %1694 = vmatmul.f32.gmra.mxu0 %v1642
      %v1695 = vpop.f32.mrf.mxu0
      %v1696 = vadd.f32 %v1667, %v1695
      %1697 = vmatmul.f32.gmra.mxu0 %v1644
      %v1698 = vpop.f32.mrf.mxu0
      %v1699 = vadd.f32 %v1670, %v1698
      %1700 = vmatmul.f32.gmra.mxu0 %v1646
      %v1701 = vpop.f32.mrf.mxu0
      %v1702 = vadd.f32 %v1673, %v1701
      %1703 = vmatmul.f32.gmra.mxu0 %v1648
      %v1704 = vpop.f32.mrf.mxu0
      %v1705 = vadd.f32 %v1676, %v1704
      %1706 = vdwg.mxu0
      %v1707 = vadd.f32 %v1047, %v1696
      %v1708 = vadd.f32 %v1048, %v1699
      %v1709 = vadd.f32 %v1049, %v1702
      %v1710 = vadd.f32 %v1050, %v1705
      %s1711 = scalar_lea.vmem %s8, 32
      %v1712 = vld [vmem:[%s1711] sm:$0xff]
      %v1713 = vld [vmem:[%s1711 + $0x8] sm:$0xff]
      %v1714 = vld [vmem:[%s1711 + $0x10] sm:$0xff]
      %v1715 = vld [vmem:[%s1711 + $0x18] sm:$0xff]
      %1717 = vset.pattern.permute.xlu0 0
      %1718 = vperm.xlu0 %1717, %v1707
      %v1719 = vpop.permute.xlu0 %1718
      %1722 = vset.pattern.permute.xlu0 0
      %1723 = vperm.xlu0 %1722, %v1708
      %v1724 = vpop.permute.xlu0 %1723
      %1727 = vset.pattern.permute.xlu0 0
      %1728 = vperm.xlu0 %1727, %v1709
      %v1729 = vpop.permute.xlu0 %1728
      %1732 = vset.pattern.permute.xlu0 0
      %1733 = vperm.xlu0 %1732, %v1710
      %v1734 = vpop.permute.xlu0 %1733
      %v1736 = vmul.f32 %v1719, %v1712
      %v1737 = vmul.f32 %v1724, %v1713
      %v1738 = vmul.f32 %v1729, %v1714
      %v1739 = vmul.f32 %v1734, %v1715
      %v1740 = vsel %vm1111, %v1736, 0.0
      %v1741 = vsel %vm1111, %v1737, 0.0
      %v1742 = vadd.f32 %v1740, %v1741
      %v1743 = vsel %vm1111, %v1738, 0.0
      %v1744 = vadd.f32 %v1742, %v1743
      %v1745 = vsel %vm1111, %v1739, 0.0
      %v1746 = vadd.f32 %v1744, %v1745
      %v1747 = vrot.slane %v1746, 4
      %v1748 = vadd.f32 %v1746, %v1747
      %v1749 = vrot.slane %v1748, 2
      %v1750 = vadd.f32 %v1748, %v1749
      %v1751 = vrot.slane %v1750, 1
      %v1752 = vadd.f32 %v1750, %v1751
      %s1753 = scalar_lea.vmem %s9, 1
      %v1754 = vld [vmem:[%s1753] sm:$0x1]
      %v1755 = vadd.f32 %v1752, %v1754
      %v1756 = vperm.slane %v1755, 0
      %1758 = vrot.lane.b32.xlu0 %v1756, 64
      %v1759 = vpop.permute.xlu0 %1758
      %v1761 = vadd.f32 %v1051, %v1759
      %v1762 = vadd.f32 %v1052, %v1759
      %v1763 = vadd.f32 %v1053, %v1759
      %v1764 = vadd.f32 %v1054, %v1759
      %v1765 = vadd.f32 %v1055, %v1759
      %v1766 = vadd.f32 %v1056, %v1759
      %v1767 = vadd.f32 %v1057, %v1759
      %v1768 = vadd.f32 %v1058, %v1759
      %v1769 = vadd.f32 %v1059, %v1759
      %v1770 = vadd.f32 %v1060, %v1759
      %v1771 = vadd.f32 %v1061, %v1759
      %v1772 = vadd.f32 %v1062, %v1759
      %v1773 = vadd.f32 %v1063, %v1759
      %v1774 = vadd.f32 %v1064, %v1759
      %v1775 = vadd.f32 %v1065, %v1759
      %v1776 = vadd.f32 %v1066, %v1759
      %v1777 = vadd.f32 %v1067, %v1759
      %v1778 = vadd.f32 %v1068, %v1759
      %v1779 = vadd.f32 %v1069, %v1759
      %v1780 = vadd.f32 %v1070, %v1759
      %v1781 = vadd.f32 %v1071, %v1759
      %v1782 = vadd.f32 %v1072, %v1759
      %v1783 = vadd.f32 %v1073, %v1759
      %v1784 = vadd.f32 %v1074, %v1759
      %v1785 = vadd.f32 %v1075, %v1759
      %v1786 = vadd.f32 %v1076, %v1759
      %v1787 = vadd.f32 %v1077, %v1759
      %v1788 = vadd.f32 %v1078, %v1759
      %v1789 = vadd.f32 %v1079, %v1759
      %v1790 = vadd.f32 %v1080, %v1759
      %v1791 = vadd.f32 %v1081, %v1759
      %v1792 = vadd.f32 %v1082, %v1759
      %v1793 = vtanh.pop %v1761
      %v1794 = vtanh.pop %v1762
      %v1795 = vtanh.pop %v1763
      %v1796 = vtanh.pop %v1764
      %v1797 = vtanh.pop %v1765
      %v1798 = vtanh.pop %v1766
      %v1799 = vtanh.pop %v1767
      %v1800 = vtanh.pop %v1768
      %v1801 = vtanh.pop %v1769
      %v1802 = vtanh.pop %v1770
      %v1803 = vtanh.pop %v1771
      %v1804 = vtanh.pop %v1772
      %v1805 = vtanh.pop %v1773
      %v1806 = vtanh.pop %v1774
      %v1807 = vtanh.pop %v1775
      %v1808 = vtanh.pop %v1776
      %v1809 = vtanh.pop %v1777
      %v1810 = vtanh.pop %v1778
      %v1811 = vtanh.pop %v1779
      %v1812 = vtanh.pop %v1780
      %v1813 = vtanh.pop %v1781
      %v1814 = vtanh.pop %v1782
      %v1815 = vtanh.pop %v1783
      %v1816 = vtanh.pop %v1784
      %v1817 = vtanh.pop %v1785
      %v1818 = vtanh.pop %v1786
      %v1819 = vtanh.pop %v1787
      %v1820 = vtanh.pop %v1788
      %v1821 = vtanh.pop %v1789
      %v1822 = vtanh.pop %v1790
      %v1823 = vtanh.pop %v1791
      %v1824 = vtanh.pop %v1792
      %s1825 = scalar_lea.vmem %s10, 1
      %v1826 = vld [vmem:[%s1825] sm:$0x1]
      %v1828 = vperm.slane %v1826, 0
      %1829 = vrot.lane.b32.xlu0 %v1828, 64
      %v1830 = vpop.permute.xlu0 %1829
      %v1832 = vmul.f32 %v1793, %v1830
      %v1833 = vmul.f32 %v1794, %v1830
      %v1834 = vmul.f32 %v1795, %v1830
      %v1835 = vmul.f32 %v1796, %v1830
      %v1836 = vmul.f32 %v1797, %v1830
      %v1837 = vmul.f32 %v1798, %v1830
      %v1838 = vmul.f32 %v1799, %v1830
      %v1839 = vmul.f32 %v1800, %v1830
      %v1840 = vmul.f32 %v1801, %v1830
      %v1841 = vmul.f32 %v1802, %v1830
      %v1842 = vmul.f32 %v1803, %v1830
      %v1843 = vmul.f32 %v1804, %v1830
      %v1844 = vmul.f32 %v1805, %v1830
      %v1845 = vmul.f32 %v1806, %v1830
      %v1846 = vmul.f32 %v1807, %v1830
      %v1847 = vmul.f32 %v1808, %v1830
      %v1848 = vmul.f32 %v1809, %v1830
      %v1849 = vmul.f32 %v1810, %v1830
      %v1850 = vmul.f32 %v1811, %v1830
      %v1851 = vmul.f32 %v1812, %v1830
      %v1852 = vmul.f32 %v1813, %v1830
      %v1853 = vmul.f32 %v1814, %v1830
      %v1854 = vmul.f32 %v1815, %v1830
      %v1855 = vmul.f32 %v1816, %v1830
      %v1856 = vmul.f32 %v1817, %v1830
      %v1857 = vmul.f32 %v1818, %v1830
      %v1858 = vmul.f32 %v1819, %v1830
      %v1859 = vmul.f32 %v1820, %v1830
      %v1860 = vmul.f32 %v1821, %v1830
      %v1861 = vmul.f32 %v1822, %v1830
      %v1862 = vmul.f32 %v1823, %v1830
      %v1863 = vmul.f32 %v1824, %v1830
      %1896 = vrot.lane.b32.xlu0 %v1832, 64
      %v1897 = vpop.permute.xlu0 %1896
      %1898 = vrot.lane.b32.xlu0 %v1833, 64
      %v1899 = vpop.permute.xlu0 %1898
      %1900 = vrot.lane.b32.xlu0 %v1834, 64
      %v1901 = vpop.permute.xlu0 %1900
      %1902 = vrot.lane.b32.xlu0 %v1835, 64
      %v1903 = vpop.permute.xlu0 %1902
      %1904 = vrot.lane.b32.xlu0 %v1836, 64
      %v1905 = vpop.permute.xlu0 %1904
      %1906 = vrot.lane.b32.xlu0 %v1837, 64
      %v1907 = vpop.permute.xlu0 %1906
      %1908 = vrot.lane.b32.xlu0 %v1838, 64
      %v1909 = vpop.permute.xlu0 %1908
      %1910 = vrot.lane.b32.xlu0 %v1839, 64
      %v1911 = vpop.permute.xlu0 %1910
      %1912 = vrot.lane.b32.xlu0 %v1840, 64
      %v1913 = vpop.permute.xlu0 %1912
      %1914 = vrot.lane.b32.xlu0 %v1841, 64
      %v1915 = vpop.permute.xlu0 %1914
      %1916 = vrot.lane.b32.xlu0 %v1842, 64
      %v1917 = vpop.permute.xlu0 %1916
      %1918 = vrot.lane.b32.xlu0 %v1843, 64
      %v1919 = vpop.permute.xlu0 %1918
      %1920 = vrot.lane.b32.xlu0 %v1844, 64
      %v1921 = vpop.permute.xlu0 %1920
      %1922 = vrot.lane.b32.xlu0 %v1845, 64
      %v1923 = vpop.permute.xlu0 %1922
      %1924 = vrot.lane.b32.xlu0 %v1846, 64
      %v1925 = vpop.permute.xlu0 %1924
      %1926 = vrot.lane.b32.xlu0 %v1847, 64
      %v1927 = vpop.permute.xlu0 %1926
      %1928 = vrot.lane.b32.xlu0 %v1848, 64
      %v1929 = vpop.permute.xlu0 %1928
      %1930 = vrot.lane.b32.xlu0 %v1849, 64
      %v1931 = vpop.permute.xlu0 %1930
      %1932 = vrot.lane.b32.xlu0 %v1850, 64
      %v1933 = vpop.permute.xlu0 %1932
      %1934 = vrot.lane.b32.xlu0 %v1851, 64
      %v1935 = vpop.permute.xlu0 %1934
      %1936 = vrot.lane.b32.xlu0 %v1852, 64
      %v1937 = vpop.permute.xlu0 %1936
      %1938 = vrot.lane.b32.xlu0 %v1853, 64
      %v1939 = vpop.permute.xlu0 %1938
      %1940 = vrot.lane.b32.xlu0 %v1854, 64
      %v1941 = vpop.permute.xlu0 %1940
      %1942 = vrot.lane.b32.xlu0 %v1855, 64
      %v1943 = vpop.permute.xlu0 %1942
      %1944 = vrot.lane.b32.xlu0 %v1856, 64
      %v1945 = vpop.permute.xlu0 %1944
      %1946 = vrot.lane.b32.xlu0 %v1857, 64
      %v1947 = vpop.permute.xlu0 %1946
      %1948 = vrot.lane.b32.xlu0 %v1858, 64
      %v1949 = vpop.permute.xlu0 %1948
      %1950 = vrot.lane.b32.xlu0 %v1859, 64
      %v1951 = vpop.permute.xlu0 %1950
      %1952 = vrot.lane.b32.xlu0 %v1860, 64
      %v1953 = vpop.permute.xlu0 %1952
      %1954 = vrot.lane.b32.xlu0 %v1861, 64
      %v1955 = vpop.permute.xlu0 %1954
      %1956 = vrot.lane.b32.xlu0 %v1862, 64
      %v1957 = vpop.permute.xlu0 %1956
      %1958 = vrot.lane.b32.xlu0 %v1863, 64
      %v1959 = vpop.permute.xlu0 %1958
      %v1992 = vsel %vm1111, %v1897, 0.0
      %1993 = vadd.xlane.f32.xlu0 %v1992
      %v1994 = vpop.xlane.xlu0 %1993
      %v1995 = vsel %vm1111, %v1899, 0.0
      %1996 = vadd.xlane.f32.xlu0 %v1995
      %v1997 = vpop.xlane.xlu0 %1996
      %v1998 = vsel %vm1111, %v1901, 0.0
      %1999 = vadd.xlane.f32.xlu0 %v1998
      %v2000 = vpop.xlane.xlu0 %1999
      %v2001 = vsel %vm1111, %v1903, 0.0
      %2002 = vadd.xlane.f32.xlu0 %v2001
      %v2003 = vpop.xlane.xlu0 %2002
      %v2004 = vsel %vm1111, %v1905, 0.0
      %2005 = vadd.xlane.f32.xlu0 %v2004
      %v2006 = vpop.xlane.xlu0 %2005
      %v2007 = vsel %vm1111, %v1907, 0.0
      %2008 = vadd.xlane.f32.xlu0 %v2007
      %v2009 = vpop.xlane.xlu0 %2008
      %v2010 = vsel %vm1111, %v1909, 0.0
      %2011 = vadd.xlane.f32.xlu0 %v2010
      %v2012 = vpop.xlane.xlu0 %2011
      %v2013 = vsel %vm1111, %v1911, 0.0
      %2014 = vadd.xlane.f32.xlu0 %v2013
      %v2015 = vpop.xlane.xlu0 %2014
      %v2016 = vsel %vm1111, %v1913, 0.0
      %2017 = vadd.xlane.f32.xlu0 %v2016
      %v2018 = vpop.xlane.xlu0 %2017
      %v2019 = vsel %vm1111, %v1915, 0.0
      %2020 = vadd.xlane.f32.xlu0 %v2019
      %v2021 = vpop.xlane.xlu0 %2020
      %v2022 = vsel %vm1111, %v1917, 0.0
      %2023 = vadd.xlane.f32.xlu0 %v2022
      %v2024 = vpop.xlane.xlu0 %2023
      %v2025 = vsel %vm1111, %v1919, 0.0
      %2026 = vadd.xlane.f32.xlu0 %v2025
      %v2027 = vpop.xlane.xlu0 %2026
      %v2028 = vsel %vm1111, %v1921, 0.0
      %2029 = vadd.xlane.f32.xlu0 %v2028
      %v2030 = vpop.xlane.xlu0 %2029
      %v2031 = vsel %vm1111, %v1923, 0.0
      %2032 = vadd.xlane.f32.xlu0 %v2031
      %v2033 = vpop.xlane.xlu0 %2032
      %v2034 = vsel %vm1111, %v1925, 0.0
      %2035 = vadd.xlane.f32.xlu0 %v2034
      %v2036 = vpop.xlane.xlu0 %2035
      %v2037 = vsel %vm1111, %v1927, 0.0
      %2038 = vadd.xlane.f32.xlu0 %v2037
      %v2039 = vpop.xlane.xlu0 %2038
      %v2040 = vsel %vm1111, %v1929, 0.0
      %2041 = vadd.xlane.f32.xlu0 %v2040
      %v2042 = vpop.xlane.xlu0 %2041
      %v2043 = vsel %vm1111, %v1931, 0.0
      %2044 = vadd.xlane.f32.xlu0 %v2043
      %v2045 = vpop.xlane.xlu0 %2044
      %v2046 = vsel %vm1111, %v1933, 0.0
      %2047 = vadd.xlane.f32.xlu0 %v2046
      %v2048 = vpop.xlane.xlu0 %2047
      %v2049 = vsel %vm1111, %v1935, 0.0
      %2050 = vadd.xlane.f32.xlu0 %v2049
      %v2051 = vpop.xlane.xlu0 %2050
      %v2052 = vsel %vm1111, %v1937, 0.0
      %2053 = vadd.xlane.f32.xlu0 %v2052
      %v2054 = vpop.xlane.xlu0 %2053
      %v2055 = vsel %vm1111, %v1939, 0.0
      %2056 = vadd.xlane.f32.xlu0 %v2055
      %v2057 = vpop.xlane.xlu0 %2056
      %v2058 = vsel %vm1111, %v1941, 0.0
      %2059 = vadd.xlane.f32.xlu0 %v2058
      %v2060 = vpop.xlane.xlu0 %2059
      %v2061 = vsel %vm1111, %v1943, 0.0
      %2062 = vadd.xlane.f32.xlu0 %v2061
      %v2063 = vpop.xlane.xlu0 %2062
      %v2064 = vsel %vm1111, %v1945, 0.0
      %2065 = vadd.xlane.f32.xlu0 %v2064
      %v2066 = vpop.xlane.xlu0 %2065
      %v2067 = vsel %vm1111, %v1947, 0.0
      %2068 = vadd.xlane.f32.xlu0 %v2067
      %v2069 = vpop.xlane.xlu0 %2068
      %v2070 = vsel %vm1111, %v1949, 0.0
      %2071 = vadd.xlane.f32.xlu0 %v2070
      %v2072 = vpop.xlane.xlu0 %2071
      %v2073 = vsel %vm1111, %v1951, 0.0
      %2074 = vadd.xlane.f32.xlu0 %v2073
      %v2075 = vpop.xlane.xlu0 %2074
      %v2076 = vsel %vm1111, %v1953, 0.0
      %2077 = vadd.xlane.f32.xlu0 %v2076
      %v2078 = vpop.xlane.xlu0 %2077
      %v2079 = vsel %vm1111, %v1955, 0.0
      %2080 = vadd.xlane.f32.xlu0 %v2079
      %v2081 = vpop.xlane.xlu0 %2080
      %v2082 = vsel %vm1111, %v1957, 0.0
      %2083 = vadd.xlane.f32.xlu0 %v2082
      %v2084 = vpop.xlane.xlu0 %2083
      %v2085 = vsel %vm1111, %v1959, 0.0
      %2086 = vadd.xlane.f32.xlu0 %v2085
      %v2087 = vpop.xlane.xlu0 %2086
      %s2088 = scalar_lea.vmem %s11, 1
      %v2089 = vld [vmem:[%s2088] sm:$0x1]
      %v2091 = vperm.slane %v2089, 0
      %v2093 = vadd.f32 %v1994, %v2091
      %v2094 = vadd.f32 %v1997, %v2091
      %v2095 = vadd.f32 %v2000, %v2091
      %v2096 = vadd.f32 %v2003, %v2091
      %v2097 = vadd.f32 %v2006, %v2091
      %v2098 = vadd.f32 %v2009, %v2091
      %v2099 = vadd.f32 %v2012, %v2091
      %v2100 = vadd.f32 %v2015, %v2091
      %v2101 = vadd.f32 %v2018, %v2091
      %v2102 = vadd.f32 %v2021, %v2091
      %v2103 = vadd.f32 %v2024, %v2091
      %v2104 = vadd.f32 %v2027, %v2091
      %v2105 = vadd.f32 %v2030, %v2091
      %v2106 = vadd.f32 %v2033, %v2091
      %v2107 = vadd.f32 %v2036, %v2091
      %v2108 = vadd.f32 %v2039, %v2091
      %v2109 = vadd.f32 %v2042, %v2091
      %v2110 = vadd.f32 %v2045, %v2091
      %v2111 = vadd.f32 %v2048, %v2091
      %v2112 = vadd.f32 %v2051, %v2091
      %v2113 = vadd.f32 %v2054, %v2091
      %v2114 = vadd.f32 %v2057, %v2091
      %v2115 = vadd.f32 %v2060, %v2091
      %v2116 = vadd.f32 %v2063, %v2091
      %v2117 = vadd.f32 %v2066, %v2091
      %v2118 = vadd.f32 %v2069, %v2091
      %v2119 = vadd.f32 %v2072, %v2091
      %v2120 = vadd.f32 %v2075, %v2091
      %v2121 = vadd.f32 %v2078, %v2091
      %v2122 = vadd.f32 %v2081, %v2091
      %v2123 = vadd.f32 %v2084, %v2091
      %v2124 = vadd.f32 %v2087, %v2091
      %v2125 = vsel %vm1360, %v2093, -inf
      %v2126 = vsel %vm1360, %v2094, -inf
      %v2127 = vsel %vm1360, %v2095, -inf
      %v2128 = vsel %vm1360, %v2096, -inf
      %v2129 = vsel %vm1360, %v2097, -inf
      %v2130 = vmax.f32 %v2125, %v2129
      %v2131 = vsel %vm1360, %v2098, -inf
      %v2132 = vmax.f32 %v2126, %v2131
      %v2133 = vsel %vm1360, %v2099, -inf
      %v2134 = vmax.f32 %v2127, %v2133
      %v2135 = vsel %vm1360, %v2100, -inf
      %v2136 = vmax.f32 %v2128, %v2135
      %v2137 = vsel %vm1360, %v2101, -inf
      %v2138 = vmax.f32 %v2130, %v2137
      %v2139 = vsel %vm1360, %v2102, -inf
      %v2140 = vmax.f32 %v2132, %v2139
      %v2141 = vsel %vm1360, %v2103, -inf
      %v2142 = vmax.f32 %v2134, %v2141
      %v2143 = vsel %vm1360, %v2104, -inf
      %v2144 = vmax.f32 %v2136, %v2143
      %v2145 = vsel %vm1360, %v2105, -inf
      %v2146 = vmax.f32 %v2138, %v2145
      %v2147 = vsel %vm1360, %v2106, -inf
      %v2148 = vmax.f32 %v2140, %v2147
      %v2149 = vsel %vm1360, %v2107, -inf
      %v2150 = vmax.f32 %v2142, %v2149
      %v2151 = vsel %vm1360, %v2108, -inf
      %v2152 = vmax.f32 %v2144, %v2151
      %v2153 = vsel %vm1360, %v2109, -inf
      %v2154 = vmax.f32 %v2146, %v2153
      %v2155 = vsel %vm1360, %v2110, -inf
      %v2156 = vmax.f32 %v2148, %v2155
      %v2157 = vsel %vm1360, %v2111, -inf
      %v2158 = vmax.f32 %v2150, %v2157
      %v2159 = vsel %vm1360, %v2112, -inf
      %v2160 = vmax.f32 %v2152, %v2159
      %v2161 = vsel %vm1360, %v2113, -inf
      %v2162 = vmax.f32 %v2154, %v2161
      %v2163 = vsel %vm1360, %v2114, -inf
      %v2164 = vmax.f32 %v2156, %v2163
      %v2165 = vsel %vm1360, %v2115, -inf
      %v2166 = vmax.f32 %v2158, %v2165
      %v2167 = vsel %vm1360, %v2116, -inf
      %v2168 = vmax.f32 %v2160, %v2167
      %v2169 = vsel %vm1360, %v2117, -inf
      %v2170 = vmax.f32 %v2162, %v2169
      %v2171 = vsel %vm1360, %v2118, -inf
      %v2172 = vmax.f32 %v2164, %v2171
      %v2173 = vsel %vm1360, %v2119, -inf
      %v2174 = vmax.f32 %v2166, %v2173
      %v2175 = vsel %vm1360, %v2120, -inf
      %v2176 = vmax.f32 %v2168, %v2175
      %v2177 = vsel %vm1360, %v2121, -inf
      %v2178 = vmax.f32 %v2170, %v2177
      %v2179 = vsel %vm1360, %v2122, -inf
      %v2180 = vmax.f32 %v2172, %v2179
      %v2181 = vsel %vm1360, %v2123, -inf
      %v2182 = vmax.f32 %v2174, %v2181
      %v2183 = vsel %vm1360, %v2124, -inf
      %v2184 = vmax.f32 %v2176, %v2183
      %v2185 = vmax.f32 %v2178, %v2180
      %v2186 = vmax.f32 %v2182, %v2184
      %v2187 = vmax.f32 %v2185, %v2186
      %v2188 = vrot.slane %v2187, 4
      %v2189 = vmax.f32 %v2187, %v2188
      %v2190 = vrot.slane %v2189, 2
      %v2191 = vmax.f32 %v2189, %v2190
      %v2192 = vrot.slane %v2191, 1
      %v2193 = vmax.f32 %v2191, %v2192
      %v2194 = vsub.f32 %v2093, %v2193
      %v2195 = vsub.f32 %v2094, %v2193
      %v2196 = vsub.f32 %v2095, %v2193
      %v2197 = vsub.f32 %v2096, %v2193
      %v2198 = vsub.f32 %v2097, %v2193
      %v2199 = vsub.f32 %v2098, %v2193
      %v2200 = vsub.f32 %v2099, %v2193
      %v2201 = vsub.f32 %v2100, %v2193
      %v2202 = vsub.f32 %v2101, %v2193
      %v2203 = vsub.f32 %v2102, %v2193
      %v2204 = vsub.f32 %v2103, %v2193
      %v2205 = vsub.f32 %v2104, %v2193
      %v2206 = vsub.f32 %v2105, %v2193
      %v2207 = vsub.f32 %v2106, %v2193
      %v2208 = vsub.f32 %v2107, %v2193
      %v2209 = vsub.f32 %v2108, %v2193
      %v2210 = vsub.f32 %v2109, %v2193
      %v2211 = vsub.f32 %v2110, %v2193
      %v2212 = vsub.f32 %v2111, %v2193
      %v2213 = vsub.f32 %v2112, %v2193
      %v2214 = vsub.f32 %v2113, %v2193
      %v2215 = vsub.f32 %v2114, %v2193
      %v2216 = vsub.f32 %v2115, %v2193
      %v2217 = vsub.f32 %v2116, %v2193
      %v2218 = vsub.f32 %v2117, %v2193
      %v2219 = vsub.f32 %v2118, %v2193
      %v2220 = vsub.f32 %v2119, %v2193
      %v2221 = vsub.f32 %v2120, %v2193
      %v2222 = vsub.f32 %v2121, %v2193
      %v2223 = vsub.f32 %v2122, %v2193
      %v2224 = vsub.f32 %v2123, %v2193
      %v2225 = vsub.f32 %v2124, %v2193
      %v2226 = vmul.f32 %v2194, 1.442695
      %v2227 = vpow.pop %v2226
      %v2228 = vmul.f32 %v2195, 1.442695
      %v2229 = vpow.pop %v2228
      %v2230 = vmul.f32 %v2196, 1.442695
      %v2231 = vpow.pop %v2230
      %v2232 = vmul.f32 %v2197, 1.442695
      %v2233 = vpow.pop %v2232
      %v2234 = vmul.f32 %v2198, 1.442695
      %v2235 = vpow.pop %v2234
      %v2236 = vmul.f32 %v2199, 1.442695
      %v2237 = vpow.pop %v2236
      %v2238 = vmul.f32 %v2200, 1.442695
      %v2239 = vpow.pop %v2238
      %v2240 = vmul.f32 %v2201, 1.442695
      %v2241 = vpow.pop %v2240
      %v2242 = vmul.f32 %v2202, 1.442695
      %v2243 = vpow.pop %v2242
      %v2244 = vmul.f32 %v2203, 1.442695
      %v2245 = vpow.pop %v2244
      %v2246 = vmul.f32 %v2204, 1.442695
      %v2247 = vpow.pop %v2246
      %v2248 = vmul.f32 %v2205, 1.442695
      %v2249 = vpow.pop %v2248
      %v2250 = vmul.f32 %v2206, 1.442695
      %v2251 = vpow.pop %v2250
      %v2252 = vmul.f32 %v2207, 1.442695
      %v2253 = vpow.pop %v2252
      %v2254 = vmul.f32 %v2208, 1.442695
      %v2255 = vpow.pop %v2254
      %v2256 = vmul.f32 %v2209, 1.442695
      %v2257 = vpow.pop %v2256
      %v2258 = vmul.f32 %v2210, 1.442695
      %v2259 = vpow.pop %v2258
      %v2260 = vmul.f32 %v2211, 1.442695
      %v2261 = vpow.pop %v2260
      %v2262 = vmul.f32 %v2212, 1.442695
      %v2263 = vpow.pop %v2262
      %v2264 = vmul.f32 %v2213, 1.442695
      %v2265 = vpow.pop %v2264
      %v2266 = vmul.f32 %v2214, 1.442695
      %v2267 = vpow.pop %v2266
      %v2268 = vmul.f32 %v2215, 1.442695
      %v2269 = vpow.pop %v2268
      %v2270 = vmul.f32 %v2216, 1.442695
      %v2271 = vpow.pop %v2270
      %v2272 = vmul.f32 %v2217, 1.442695
      %v2273 = vpow.pop %v2272
      %v2274 = vmul.f32 %v2218, 1.442695
      %v2275 = vpow.pop %v2274
      %v2276 = vmul.f32 %v2219, 1.442695
      %v2277 = vpow.pop %v2276
      %v2278 = vmul.f32 %v2220, 1.442695
      %v2279 = vpow.pop %v2278
      %v2280 = vmul.f32 %v2221, 1.442695
      %v2281 = vpow.pop %v2280
      %v2282 = vmul.f32 %v2222, 1.442695
      %v2283 = vpow.pop %v2282
      %v2284 = vmul.f32 %v2223, 1.442695
      %v2285 = vpow.pop %v2284
      %v2286 = vmul.f32 %v2224, 1.442695
      %v2287 = vpow.pop %v2286
      %v2288 = vmul.f32 %v2225, 1.442695
      %v2289 = vpow.pop %v2288
      %v2290 = vsel %vm1360, %v2227, 0.0
      %v2291 = vsel %vm1360, %v2229, 0.0
      %v2292 = vadd.f32 %v2290, %v2291
      %v2293 = vsel %vm1360, %v2231, 0.0
      %v2294 = vadd.f32 %v2292, %v2293
      %v2295 = vsel %vm1360, %v2233, 0.0
      %v2296 = vadd.f32 %v2294, %v2295
      %v2297 = vsel %vm1360, %v2235, 0.0
      %v2298 = vadd.f32 %v2296, %v2297
      %v2299 = vsel %vm1360, %v2237, 0.0
      %v2300 = vadd.f32 %v2298, %v2299
      %v2301 = vsel %vm1360, %v2239, 0.0
      %v2302 = vadd.f32 %v2300, %v2301
      %v2303 = vsel %vm1360, %v2241, 0.0
      %v2304 = vadd.f32 %v2302, %v2303
      %v2305 = vsel %vm1360, %v2243, 0.0
      %v2306 = vadd.f32 %v2304, %v2305
      %v2307 = vsel %vm1360, %v2245, 0.0
      %v2308 = vadd.f32 %v2306, %v2307
      %v2309 = vsel %vm1360, %v2247, 0.0
      %v2310 = vadd.f32 %v2308, %v2309
      %v2311 = vsel %vm1360, %v2249, 0.0
      %v2312 = vadd.f32 %v2310, %v2311
      %v2313 = vsel %vm1360, %v2251, 0.0
      %v2314 = vadd.f32 %v2312, %v2313
      %v2315 = vsel %vm1360, %v2253, 0.0
      %v2316 = vadd.f32 %v2314, %v2315
      %v2317 = vsel %vm1360, %v2255, 0.0
      %v2318 = vadd.f32 %v2316, %v2317
      %v2319 = vsel %vm1360, %v2257, 0.0
      %v2320 = vadd.f32 %v2318, %v2319
      %v2321 = vsel %vm1360, %v2259, 0.0
      %v2322 = vadd.f32 %v2320, %v2321
      %v2323 = vsel %vm1360, %v2261, 0.0
      %v2324 = vadd.f32 %v2322, %v2323
      %v2325 = vsel %vm1360, %v2263, 0.0
      %v2326 = vadd.f32 %v2324, %v2325
      %v2327 = vsel %vm1360, %v2265, 0.0
      %v2328 = vadd.f32 %v2326, %v2327
      %v2329 = vsel %vm1360, %v2267, 0.0
      %v2330 = vadd.f32 %v2328, %v2329
      %v2331 = vsel %vm1360, %v2269, 0.0
      %v2332 = vadd.f32 %v2330, %v2331
      %v2333 = vsel %vm1360, %v2271, 0.0
      %v2334 = vadd.f32 %v2332, %v2333
      %v2335 = vsel %vm1360, %v2273, 0.0
      %v2336 = vadd.f32 %v2334, %v2335
      %v2337 = vsel %vm1360, %v2275, 0.0
      %v2338 = vadd.f32 %v2336, %v2337
      %v2339 = vsel %vm1360, %v2277, 0.0
      %v2340 = vadd.f32 %v2338, %v2339
      %v2341 = vsel %vm1360, %v2279, 0.0
      %v2342 = vadd.f32 %v2340, %v2341
      %v2343 = vsel %vm1360, %v2281, 0.0
      %v2344 = vadd.f32 %v2342, %v2343
      %v2345 = vsel %vm1360, %v2283, 0.0
      %v2346 = vadd.f32 %v2344, %v2345
      %v2347 = vsel %vm1360, %v2285, 0.0
      %v2348 = vadd.f32 %v2346, %v2347
      %v2349 = vsel %vm1360, %v2287, 0.0
      %v2350 = vadd.f32 %v2348, %v2349
      %v2351 = vsel %vm1360, %v2289, 0.0
      %v2352 = vadd.f32 %v2350, %v2351
      %v2353 = vrot.slane %v2352, 4
      %v2354 = vadd.f32 %v2352, %v2353
      %v2355 = vrot.slane %v2354, 2
      %v2356 = vadd.f32 %v2354, %v2355
      %v2357 = vrot.slane %v2356, 1
      %v2358 = vadd.f32 %v2356, %v2357
      %v2359 = vrcp.pop %v2358
      %v2360 = vmul.f32 %v2358, %v2359
      %v2361 = vsub.f32 1.0, %v2360
      %v2362 = vmul.f32 %v2359, %v2361
      %v2363 = vadd.f32 %v2359, %v2362
      %vm2364 = vweird.f32 %v2358
      %vm2365 = vweird.f32 %v2359
      %vm2366 = vmor %vm2364, %vm2365
      %v2367 = vsel %vm2366, %v2359, %v2363
      %v2368 = vand.u32 2147483647, %v2358
      %vm2369 = vcmp.eq.f32.partialorder %v2368, 8.507059e+37
      %v2370 = vand.u32 %v2358, 2147483648
      %v2371 = vor.u32 1.1754944e-38, %v2370
      %v2372 = vsel %vm2369, %v2371, %v2367
      %v2373 = vmul.f32 %v2227, %v2372
      %v2374 = vmul.f32 %v2229, %v2372
      %v2375 = vmul.f32 %v2231, %v2372
      %v2376 = vmul.f32 %v2233, %v2372
      %v2377 = vmul.f32 %v2235, %v2372
      %v2378 = vmul.f32 %v2237, %v2372
      %v2379 = vmul.f32 %v2239, %v2372
      %v2380 = vmul.f32 %v2241, %v2372
      %v2381 = vmul.f32 %v2243, %v2372
      %v2382 = vmul.f32 %v2245, %v2372
      %v2383 = vmul.f32 %v2247, %v2372
      %v2384 = vmul.f32 %v2249, %v2372
      %v2385 = vmul.f32 %v2251, %v2372
      %v2386 = vmul.f32 %v2253, %v2372
      %v2387 = vmul.f32 %v2255, %v2372
      %v2388 = vmul.f32 %v2257, %v2372
      %v2389 = vmul.f32 %v2259, %v2372
      %v2390 = vmul.f32 %v2261, %v2372
      %v2391 = vmul.f32 %v2263, %v2372
      %v2392 = vmul.f32 %v2265, %v2372
      %v2393 = vmul.f32 %v2267, %v2372
      %v2394 = vmul.f32 %v2269, %v2372
      %v2395 = vmul.f32 %v2271, %v2372
      %v2396 = vmul.f32 %v2273, %v2372
      %v2397 = vmul.f32 %v2275, %v2372
      %v2398 = vmul.f32 %v2277, %v2372
      %v2399 = vmul.f32 %v2279, %v2372
      %v2400 = vmul.f32 %v2281, %v2372
      %v2401 = vmul.f32 %v2283, %v2372
      %v2402 = vmul.f32 %v2285, %v2372
      %v2403 = vmul.f32 %v2287, %v2372
      %v2404 = vmul.f32 %v2289, %v2372
      %2405 = vmatpush.msra.mxu0 %v2388
      %2406 = vmatpush.msra.mxu0 %v2387
      %2407 = vmatpush.msra.mxu0 %v2386
      %2408 = vmatpush.msra.mxu0 %v2385
      %2409 = vmatpush.msra.mxu0 %v2384
      %2410 = vmatpush.msra.mxu0 %v2383
      %2411 = vmatpush.msra.mxu0 %v2382
      %2412 = vmatpush.msra.mxu0 %v2381
      %2413 = vmatpush.msra.mxu0 %v2380
      %2414 = vmatpush.msra.mxu0 %v2379
      %2415 = vmatpush.msra.mxu0 %v2378
      %2416 = vmatpush.msra.mxu0 %v2377
      %2417 = vmatpush.msra.mxu0 %v2376
      %2418 = vmatpush.msra.mxu0 %v2375
      %2419 = vmatpush.msra.mxu0 %v2374
      %2420 = vmatpush.msra.mxu0 %v2373
      %2421 = vmatmul.f32.gmra.mxu0 %v1641
      %v2422 = vpop.f32.mrf.mxu0
      %v2423 = vadd.f32 0.0, %v2422
      %2424 = vmatmul.f32.gmra.mxu0 %v1643
      %v2425 = vpop.f32.mrf.mxu0
      %v2426 = vadd.f32 0.0, %v2425
      %2427 = vmatmul.f32.gmra.mxu0 %v1645
      %v2428 = vpop.f32.mrf.mxu0
      %v2429 = vadd.f32 0.0, %v2428
      %2430 = vmatmul.f32.gmra.mxu0 %v1647
      %v2431 = vpop.f32.mrf.mxu0
      %v2432 = vadd.f32 0.0, %v2431
      %2433 = vdwg.mxu0
      %2434 = vmatpush.msra.mxu0 %v2404
      %2435 = vmatpush.msra.mxu0 %v2403
      %2436 = vmatpush.msra.mxu0 %v2402
      %2437 = vmatpush.msra.mxu0 %v2401
      %2438 = vmatpush.msra.mxu0 %v2400
      %2439 = vmatpush.msra.mxu0 %v2399
      %2440 = vmatpush.msra.mxu0 %v2398
      %2441 = vmatpush.msra.mxu0 %v2397
      %2442 = vmatpush.msra.mxu0 %v2396
      %2443 = vmatpush.msra.mxu0 %v2395
      %2444 = vmatpush.msra.mxu0 %v2394
      %2445 = vmatpush.msra.mxu0 %v2393
      %2446 = vmatpush.msra.mxu0 %v2392
      %2447 = vmatpush.msra.mxu0 %v2391
      %2448 = vmatpush.msra.mxu0 %v2390
      %2449 = vmatpush.msra.mxu0 %v2389
      %2450 = vmatmul.f32.gmra.mxu0 %v1642
      %v2451 = vpop.f32.mrf.mxu0
      %v2452 = vadd.f32 %v2423, %v2451
      %2453 = vmatmul.f32.gmra.mxu0 %v1644
      %v2454 = vpop.f32.mrf.mxu0
      %v2455 = vadd.f32 %v2426, %v2454
      %2456 = vmatmul.f32.gmra.mxu0 %v1646
      %v2457 = vpop.f32.mrf.mxu0
      %v2458 = vadd.f32 %v2429, %v2457
      %2459 = vmatmul.f32.gmra.mxu0 %v1648
      %v2460 = vpop.f32.mrf.mxu0
      %v2461 = vadd.f32 %v2432, %v2460
      %2462 = vdwg.mxu0
      %v2463 = vadd.f32 %v1707, %v2452
      %v2464 = vadd.f32 %v1708, %v2455
      %v2465 = vadd.f32 %v1709, %v2458
      %v2466 = vadd.f32 %v1710, %v2461
      %2467 = vst.msk [vmem:[%s453] sm:$0xff] %vm1360, %v2463
      %2468 = vst.msk [vmem:[%s453 + $0x8] sm:$0xff] %vm1360, %v2464
      %2469 = vst.msk [vmem:[%s453 + $0x10] sm:$0xff] %vm1360, %v2465
      %2470 = vst.msk [vmem:[%s453 + $0x18] sm:$0xff] %vm1360, %v2466
      %p2471 = scmp.lt.s32.totalorder %s23, 1
      %s2472 = scalar_select %p2471, %s23, 1
      %s2473 = smul.addr %s2472, 4
      %s2474 = smul.addr %s2473, 8
      %s2475 = scalar_lea.vmem %s12, %s2474
      // Predicated region
      $region69: #{stacked_attention_forward.3} parent=67 // pred_check
        %p2476 = pneg %p308
      $region70: #{stacked_attention_forward.3} parent=67 // pred_check_branch
        %2478 = sbr.rel (%p2476) target = $region72
      $region71: #{stacked_attention_forward.3} parent=67 // pred_region
        _
      $region72: #{stacked_attention_forward.3} parent=67 // pred_fallthru
        _
    $region68: #{stacked_attention_forward.3} parent=5 // pred_fallthru
      _
    %p2479 = scmp.le.s32.totalorder 2, %s18
    // Predicated region
    $region73: #{stacked_attention_forward.3} parent=5 // pred_check
      %p2480 = pneg %p2479
    $region74: #{stacked_attention_forward.3} parent=5 // pred_check_branch
      %2482 = sbr.rel (%p2480) target = $region76
    $region75: #{stacked_attention_forward.3} parent=5 // pred_region
      %s2483 = ssub.s32 %s18, 2
      // Predicated region
      $region77: #{stacked_attention_forward.3} parent=75 // pred_check
        %p2484 = pneg %p314
      $region78: #{stacked_attention_forward.3} parent=75 // pred_check_branch
        %2486 = sbr.rel (%p2484) target = $region80
      $region79: #{stacked_attention_forward.3} parent=75 // pred_region
        %p2487 = scmp.lt.s32.totalorder %s24, 1
        %s2488 = scalar_select %p2487, %s24, 1
        %s2489 = smul.addr %s2488, 4
        %s2490 = smul.addr %s2489, 8
        %s2491 = scalar_lea.vmem %s12, %s2490
      $region80: #{stacked_attention_forward.3} parent=75 // pred_fallthru
        _
    $region76: #{stacked_attention_forward.3} parent=5 // pred_fallthru
      _
  $region6: #{stacked_attention_forward.3} parent=0 // loop_footer
    %s22 = sadd.s32 1, %s18
  $region7: #{stacked_attention_forward.3} parent=0 // loop_footer_branch
    %17 = sbr.rel target = $region3
  $region8: #{stacked_attention_forward.3} parent=0 // loop_exit
    _

</llo_original>
